<compile_context>
chip_gen: v7x
topology: tpu7x:2x2x1
jax: 0.10.0
libtpu: 0.0.40
codegen_flags: <defaults>
</compile_context>

<pallas_src>
import functools
import math

import jax
import jax.numpy as jnp
from jax.experimental import pallas as pl
from jax.experimental.pallas import tpu as pltpu


# -----------------------------------------------------------------------------
# Pallas kernel.  grid = (B, N // TQ).  One query tile per step; K/V for the
# full sequence live in bf16 VMEM scratch and are (re)computed at qi == 0.
# -----------------------------------------------------------------------------
def _transformer_block_kernel(
    x_ref,        # (1, N, C)  f32   full sequence (query tiles are sliced from it)
    a_ref,        # (1, 1, C)  f32   modulation scale
    b_ref,        # (1, 1, C)  f32   modulation shift
    c_ref,        # (1, 1, C)  f32   modulation gate
    wq_ref,       # (C, C)     bf16  (1/sqrt(hd) folded in)
    bq_ref,       # (1, C)     f32   (1/sqrt(hd) folded in)
    wkv_ref,      # (C, 2C)    bf16  fused [Wk | Wv]
    bkv_ref,      # (1, 2C)    f32
    wo_ref,       # (C, C)     bf16
    bo_ref,       # (1, C)     f32
    w1_ref,       # (C, H)     bf16
    b1_ref,       # (1, H)     f32
    w2_ref,       # (H, C)     bf16
    b2_ref,       # (1, C)     f32
    o_ref,        # (1, TQ, C)
    k_sc,         # (heads, N, hd) bf16 scratch (persists across q tiles)
    v_sc,         # (heads, N, hd) bf16 scratch
    *,
    heads: int,
    eps: float,
    exact_softmax: bool,
):
    f32 = jnp.float32
    bf16 = jnp.bfloat16

    N, C = x_ref.shape[1], x_ref.shape[2]
    TQ = o_ref.shape[1]
    hd = C // heads

    a = a_ref[0]        # (1, C)
    bm = b_ref[0]       # (1, C)
    cm = c_ref[0]       # (1, C)

    def norm_mod(t):
        # Parameter-free LayerNorm over channels (biased variance) + modulation.
        mean = jnp.mean(t, axis=-1, keepdims=True)
        var = jnp.mean(jnp.square(t - mean), axis=-1, keepdims=True)
        return (a + 1.0) * ((t - mean) * jax.lax.rsqrt(var + eps)) + bm

    # ---- K / V for the whole sequence: once per batch element ---------------
    @pl.when(pl.program_id(1) == 0)
    def _():
        yf = norm_mod(x_ref[0]).astype(bf16)                             # (N, C)
        kv = jnp.dot(yf, wkv_ref[...],
                     preferred_element_type=f32) + bkv_ref[0]            # (N, 2C) f32
        kvb = kv.astype(bf16)
        # Static per-head lane slices; done once per batch element.
        for h in range(heads):
            k_sc[h] = kvb[:, h * hd:(h + 1) * hd]                        # (N, hd) bf16
            v_sc[h] = kvb[:, C + h * hd:C + (h + 1) * hd]                # (N, hd) bf16

    # ---- query tile: slice from the resident full-sequence block ------------
    qi = pl.program_id(1)
    row0 = pl.multiple_of(qi * TQ, TQ)
    xt = x_ref[0, pl.ds(row0, TQ), :]                                    # (TQ, C) f32
    yt = norm_mod(xt)                                                    # (TQ, C) f32
    ytb = yt.astype(bf16)

    # ---- Q projection: one lane-dense (TQ, C) @ (C, C) matmul ---------------
    q2 = jnp.dot(ytb, wq_ref[...], preferred_element_type=f32) + bq_ref[0]
    q2b = q2.astype(bf16)
    q3 = jnp.stack([q2b[:, h * hd:(h + 1) * hd] for h in range(heads)],
                   axis=0)                                               # (h, TQ, hd)

    # ---- attention scores / softmax / PV (batched over heads) ---------------
    s = jnp.einsum("hqd,hkd->hqk", q3, k_sc[...],
                   preferred_element_type=f32)                           # (h, TQ, N)
    s = s - jnp.max(s, axis=-1, keepdims=True)
    p = jnp.exp(s)
    denom = jnp.sum(p, axis=-1, keepdims=True)
    if exact_softmax:
        p = p / denom
    else:
        p = p * pl.reciprocal(denom, approx=True)                        # EUP slot

    o3 = jnp.einsum("hqk,hkd->hqd", p.astype(bf16), v_sc[...],
                    preferred_element_type=f32)                          # (h, TQ, hd)

    # ---- output projection: merge heads, one depth-C matmul -----------------
    attn_in = jnp.concatenate([o3[h] for h in range(heads)], axis=-1)    # (TQ, C)
    attn = jnp.dot(attn_in.astype(bf16), wo_ref[...],
                   preferred_element_type=f32) + bo_ref[0]               # (TQ, C)

    y = yt + attn                                                        # (TQ, C)

    # ---- FFN: Linear -> SiLU -> Linear --------------------------------------
    h1 = jnp.dot(y.astype(bf16), w1_ref[...],
                 preferred_element_type=f32) + b1_ref[0]                 # (TQ, H)
    h1 = h1 * jax.nn.sigmoid(h1)                                         # SiLU (f32)
    y2 = jnp.dot(h1.astype(bf16), w2_ref[...],
                 preferred_element_type=f32) + b2_ref[0]                 # (TQ, C)

    # ---- gated residual:  (x + c*y) * rsqrt(1 + c*c) -------------------------
    out = (xt + cm * y2) * jax.lax.rsqrt(1.0 + cm * cm)
    o_ref[0] = out.astype(o_ref.dtype)


# -----------------------------------------------------------------------------
# Wrapper
# -----------------------------------------------------------------------------
def _vmem_capacity_bytes() -> int:
    try:
        info = pltpu.get_tpu_info()
        cap = getattr(info, "vmem_capacity_bytes", None)
        if cap:
            return int(cap)
    except Exception:
        pass
    return 128 << 20  # v5e / v6e default


def transformer_block(x, mod, params, *, heads: int, eps: float = 1e-5,
                      q_tile: int = 256, exact_softmax: bool = False):
    """x: (B, N, C) float32, mod: (B, D) float32."""
    B, N, C = x.shape
    assert C % heads == 0, "channels must be divisible by heads"
    hd = C // heads
    H = params["w1"].shape[1]
    f32, bf16 = jnp.float32, jnp.bfloat16

    # ---- Modulator (tiny MLP on the modulation vector) -- plain JAX glue ----
    m = jnp.dot(mod, params["wm1"]) + params["bm1"]
    m = m * jax.nn.sigmoid(m)                                  # SiLU
    abc = (jnp.dot(m, params["wm2"]) + params["bm2"]).reshape(B, 3, C)
    a = abc[:, 0, :][:, None, :]                               # (B, 1, C)
    b = abc[:, 1, :][:, None, :]
    c = abc[:, 2, :][:, None, :]

    # ---- query tile size: largest aligned divisor of N, capped at q_tile ----
    # v6e (128 MiB VMEM): 256/512 tiles are fine.  v5e: keep 128-multiples.
    TQ = N
    for cand in (512, 256, 128, 64, 32, 16, 8):
        if cand <= min(q_tile, N) and N % cand == 0:
            TQ = cand
            break
    NQ = N // TQ

    # ---- fused, lane-dense MXU weights (done once, in JAX) -------------------
    scale = 1.0 / math.sqrt(hd)
    wqkv, bqkv = params["wqkv"], params["bqkv"][0]

    wq = (wqkv[:, :C] * scale).astype(bf16)                 # (C, C)
    bq = (bqkv[:C] * scale)[None, :].astype(f32)            # (1, C)
    wkv = wqkv[:, C:].astype(bf16)                          # (C, 2C) = [Wk | Wv]
    bkv = bqkv[C:][None, :].astype(f32)                     # (1, 2C)
    wo = params["wo"].astype(bf16)                          # (C, C)
    bo = params["bo"].astype(f32)                           # (1, C)
    w1, b1 = params["w1"].astype(bf16), params["b1"].astype(f32)
    w2, b2 = params["w2"].astype(bf16), params["b2"].astype(f32)
    weights = (wq, bq, wkv, bkv, wo, bo, w1, b1, w2, b2)

    # ---- generation-aware scoped-VMEM budget ---------------------------------
    pC, pN, pH, phd = max(C, 128), max(N, 128), max(H, 128), max(hd, 128)
    weight_bytes = sum(int(w.size) * w.dtype.itemsize for w in weights)
    block_bytes = 2 * 4 * (N * pC + TQ * pC + 3 * pC)        # double-buffered x/out/a/b/c
    scratch_bytes = 2 * 2 * heads * N * phd                  # bf16 K and V (lane-padded)
    inter_bytes = (heads * TQ * pN * (4 + 2)                  # scores f32 + probs bf16
                   + TQ * pH * 4 + 6 * TQ * pC * 4)           # FFN + misc intermediates
    need = 2 * weight_bytes + block_bytes + scratch_bytes + inter_bytes + (4 << 20)
    cap = max(_vmem_capacity_bytes() - (8 << 20), 16 << 20)   # leave compiler headroom
    vmem_limit = int(min(cap, max(32 << 20, need)))

    def wspec(arr):
        nd = arr.ndim
        return pl.BlockSpec(arr.shape, lambda bi, qi, _nd=nd: (0,) * _nd)

    kernel = functools.partial(_transformer_block_kernel, heads=heads, eps=eps,
                               exact_softmax=exact_softmax)

    return pl.pallas_call(
        kernel,
        out_shape=jax.ShapeDtypeStruct((B, N, C), x.dtype),
        grid=(B, NQ),
        in_specs=[
            pl.BlockSpec((1, N, C), lambda bi, qi: (bi, 0, 0)),   # x (full seq, resident)
            pl.BlockSpec((1, 1, C), lambda bi, qi: (bi, 0, 0)),   # a
            pl.BlockSpec((1, 1, C), lambda bi, qi: (bi, 0, 0)),   # b
            pl.BlockSpec((1, 1, C), lambda bi, qi: (bi, 0, 0)),   # c
            wspec(wq), wspec(bq), wspec(wkv), wspec(bkv),
            wspec(wo), wspec(bo), wspec(w1), wspec(b1), wspec(w2), wspec(b2),
        ],
        out_specs=pl.BlockSpec((1, TQ, C), lambda bi, qi: (bi, qi, 0)),
        scratch_shapes=[
            pltpu.VMEM((heads, N, hd), jnp.bfloat16),   # K (per-head layout, bf16)
            pltpu.VMEM((heads, N, hd), jnp.bfloat16),   # V (per-head layout, bf16)
        ],
        compiler_params=pltpu.CompilerParams(
            dimension_semantics=("parallel", "arbitrary"),
            vmem_limit_bytes=vmem_limit),
    )(x, a, b, c, wq, bq, wkv, bkv, wo, bo, w1, b1, w2, b2)


# -----------------------------------------------------------------------------
# Pure-JAX f32 reference (same math) for a correctness sanity check.
# -----------------------------------------------------------------------------
def transformer_block_ref(x, mod, params, *, heads: int, eps: float = 1e-5):
    B, N, C = x.shape
    hd = C // heads

    m = jnp.dot(mod, params["wm1"]) + params["bm1"]
    m = m * jax.nn.sigmoid(m)
    abc = (jnp.dot(m, params["wm2"]) + params["bm2"]).reshape(B, 3, C)
    a, b, c = abc[:, 0, None, :], abc[:, 1, None, :], abc[:, 2, None, :]

    mean = jnp.mean(x, axis=-1, keepdims=True)
    var = jnp.mean(jnp.square(x - mean), axis=-1, keepdims=True)
    xn = (x - mean) * jax.lax.rsqrt(var + eps)
    y = (a + 1.0) * xn + b

    qkv = jnp.dot(y, params["wqkv"]) + params["bqkv"][0]
    q, k, v = qkv[..., :C], qkv[..., C:2 * C], qkv[..., 2 * C:]
    q = q.reshape(B, N, heads, hd).transpose(0, 2, 1, 3)
    k = k.reshape(B, N, heads, hd).transpose(0, 2, 1, 3)
    v = v.reshape(B, N, heads, hd).transpose(0, 2, 1, 3)
    s = jnp.einsum("bhqd,bhkd->bhqk", q, k) / math.sqrt(hd)
    p = jax.nn.softmax(s, axis=-1)
    attn = jnp.einsum("bhqk,bhkd->bhqd", p, v).transpose(0, 2, 1, 3).reshape(B, N, C)
    attn = jnp.dot(attn, params["wo"]) + params["bo"][0]
    y = y + attn

    h1 = jnp.dot(y, params["w1"]) + params["b1"][0]
    h1 = h1 * jax.nn.sigmoid(h1)
    y = jnp.dot(h1, params["w2"]) + params["b2"][0]

    return (x + c * y) * jax.lax.rsqrt(1.0 + c * c)


# -----------------------------------------------------------------------------
# Deterministic parameter construction (synthetic, no checkpoint).
# -----------------------------------------------------------------------------
def init_params(key, channels, mod_features, ffn_scaling):
    C, D, H = channels, mod_features, channels * ffn_scaling
    ks = jax.random.split(key, 6)

    def lin(k, fan_in, fan_out):
        return jax.random.normal(k, (fan_in, fan_out), jnp.float32) / math.sqrt(fan_in)

    return {
        # Modulator: Linear(D, D) -> SiLU -> Linear(D, 3C)
        "wm1": lin(ks[0], D, D), "bm1": jnp.zeros((D,), jnp.float32),
        "wm2": lin(ks[1], D, 3 * C), "bm2": jnp.zeros((3 * C,), jnp.float32),
        # SelfAttentionNd: qkv proj + out proj
        "wqkv": lin(ks[2], C, 3 * C), "bqkv": jnp.zeros((1, 3 * C), jnp.float32),
        "wo": lin(ks[3], C, C), "bo": jnp.zeros((1, C), jnp.float32),
        # FFN: Linear(C, H) -> SiLU -> Linear(H, C)
        "w1": lin(ks[4], C, H), "b1": jnp.zeros((1, H), jnp.float32),
        "w2": lin(ks[5], H, C), "b2": jnp.zeros((1, C), jnp.float32),
    }


if __name__ == "__main__":
    B, N, C, D = 2, 256, 32, 16
    heads, ffn_scaling = 4, 2

    key = jax.random.PRNGKey(0)
    kx, kmod, kp = jax.random.split(key, 3)
    x = jax.random.normal(kx, (B, N, C), jnp.float32)
    mod = jax.random.normal(kmod, (B, D), jnp.float32)
    params = init_params(kp, C, D, ffn_scaling)

    # q_tile=128 exercises the 2-query-tile pipeline path (N=256); on v6e the
    # default q_tile=256 gives a single larger tile per batch element.
    out = jax.block_until_ready(
        transformer_block(x, mod, params, heads=heads, q_tile=128))
    ref = jax.block_until_ready(
        transformer_block_ref(x, mod, params, heads=heads))

    assert out.shape == (B, N, C)
    err = float(jnp.max(jnp.abs(out - ref)))
    # bf16 MXU operands + approx softmax reciprocal vs. an exact-f32 reference.
    assert err < 1e-1, f"Pallas kernel mismatch vs JAX reference: max|diff|={err}"
    print("KERNEL_OK")
</pallas_src>

<mosaic_0001>
module attributes {stable_mosaic.version = 11 : i64} {
  func.func @_transformer_block_kernel(%arg0: i32, %arg1: i32, %arg2: memref<1x256x32xf32, #tpu.memory_space<vmem>>, %arg3: memref<1x1x32xf32, #tpu.memory_space<vmem>>, %arg4: memref<1x1x32xf32, #tpu.memory_space<vmem>>, %arg5: memref<1x1x32xf32, #tpu.memory_space<vmem>>, %arg6: memref<32x32xbf16, #tpu.memory_space<vmem>>, %arg7: memref<1x32xf32, #tpu.memory_space<vmem>>, %arg8: memref<32x64xbf16, #tpu.memory_space<vmem>>, %arg9: memref<1x64xf32, #tpu.memory_space<vmem>>, %arg10: memref<32x32xbf16, #tpu.memory_space<vmem>>, %arg11: memref<1x32xf32, #tpu.memory_space<vmem>>, %arg12: memref<32x64xbf16, #tpu.memory_space<vmem>>, %arg13: memref<1x64xf32, #tpu.memory_space<vmem>>, %arg14: memref<64x32xbf16, #tpu.memory_space<vmem>>, %arg15: memref<1x32xf32, #tpu.memory_space<vmem>>, %arg16: memref<1x128x32xf32, #tpu.memory_space<vmem>>, %arg17: memref<4x256x8xbf16, #tpu.memory_space<vmem>>, %arg18: memref<4x256x8xbf16, #tpu.memory_space<vmem>>) attributes {dimension_semantics = [#tpu.dimension_semantics<parallel>, #tpu.dimension_semantics<arbitrary>], iteration_bounds = array<i64: 2, 2>, scalar_prefetch = 0 : i64, scratch_operands = 2 : i64, tpu.core_type = #tpu.core_type<tc>, window_params = [{transform_indices = @transform_0, window_bounds = array<i64: 1, 256, 32>}, {transform_indices = @transform_1, window_bounds = array<i64: 1, 1, 32>}, {transform_indices = @transform_2, window_bounds = array<i64: 1, 1, 32>}, {transform_indices = @transform_3, window_bounds = array<i64: 1, 1, 32>}, {pipeline_mode = #tpu.pipeline_mode<synchronous>, transform_indices = @transform_4, window_bounds = array<i64: 32, 32>}, {pipeline_mode = #tpu.pipeline_mode<synchronous>, transform_indices = @transform_5, window_bounds = array<i64: 1, 32>}, {pipeline_mode = #tpu.pipeline_mode<synchronous>, transform_indices = @transform_6, window_bounds = array<i64: 32, 64>}, {pipeline_mode = #tpu.pipeline_mode<synchronous>, transform_indices = @transform_7, window_bounds = array<i64: 1, 64>}, {pipeline_mode = #tpu.pipeline_mode<synchronous>, transform_indices = @transform_8, window_bounds = array<i64: 32, 32>}, {pipeline_mode = #tpu.pipeline_mode<synchronous>, transform_indices = @transform_9, window_bounds = array<i64: 1, 32>}, {pipeline_mode = #tpu.pipeline_mode<synchronous>, transform_indices = @transform_10, window_bounds = array<i64: 32, 64>}, {pipeline_mode = #tpu.pipeline_mode<synchronous>, transform_indices = @transform_11, window_bounds = array<i64: 1, 64>}, {pipeline_mode = #tpu.pipeline_mode<synchronous>, transform_indices = @transform_12, window_bounds = array<i64: 64, 32>}, {pipeline_mode = #tpu.pipeline_mode<synchronous>, transform_indices = @transform_13, window_bounds = array<i64: 1, 32>}, {transform_indices = @transform_14, window_bounds = array<i64: 1, 128, 32>}]} {
    %c0 = arith.constant 0 : index
    %c0_0 = arith.constant 0 : index
    %c0_1 = arith.constant 0 : index
    %0 = vector.load %arg3[%c0, %c0_0, %c0_1] : memref<1x1x32xf32, #tpu.memory_space<vmem>>, vector<1x1x32xf32>
    %1 = vector.shape_cast %0 : vector<1x1x32xf32> to vector<1x32xf32>
    %c0_2 = arith.constant 0 : index
    %c0_3 = arith.constant 0 : index
    %c0_4 = arith.constant 0 : index
    %2 = vector.load %arg4[%c0_2, %c0_3, %c0_4] : memref<1x1x32xf32, #tpu.memory_space<vmem>>, vector<1x1x32xf32>
    %3 = vector.shape_cast %2 : vector<1x1x32xf32> to vector<1x32xf32>
    %c0_5 = arith.constant 0 : index
    %c0_6 = arith.constant 0 : index
    %c0_7 = arith.constant 0 : index
    %4 = vector.load %arg5[%c0_5, %c0_6, %c0_7] : memref<1x1x32xf32, #tpu.memory_space<vmem>>, vector<1x1x32xf32>
    %5 = vector.shape_cast %4 : vector<1x1x32xf32> to vector<1x32xf32>
    %c0_i32 = arith.constant 0 : i32
    %6 = arith.cmpi eq, %arg1, %c0_i32 : i32
    %7 = arith.extui %6 : i1 to i32
    %c0_i32_8 = arith.constant 0 : i32
    %8 = arith.cmpi ne, %7, %c0_i32_8 : i32
    scf.if %8 {
      %c0_51 = arith.constant 0 : index
      %c0_52 = arith.constant 0 : index
      %c0_53 = arith.constant 0 : index
      %123 = vector.load %arg2[%c0_51, %c0_52, %c0_53] : memref<1x256x32xf32, #tpu.memory_space<vmem>>, vector<1x256x32xf32>
      %124 = vector.shape_cast %123 : vector<1x256x32xf32> to vector<256x32xf32>
      %cst_54 = arith.constant dense<0.000000e+00> : vector<256xf32>
      %125 = vector.multi_reduction <add>, %124, %cst_54 [1] : vector<256x32xf32> to vector<256xf32>
      %126 = vector.shape_cast %125 : vector<256xf32> to vector<256x1xf32>
      %cst_55 = arith.constant 3.200000e+01 : f32
      %127 = vector.broadcast %cst_55 : f32 to vector<256x1xf32>
      %128 = arith.divf %126, %127 : vector<256x1xf32>
      %129 = vector.broadcast %128 : vector<256x1xf32> to vector<256x32xf32>
      %130 = arith.subf %124, %129 : vector<256x32xf32>
      %131 = arith.mulf %130, %130 : vector<256x32xf32>
      %cst_56 = arith.constant dense<0.000000e+00> : vector<256xf32>
      %132 = vector.multi_reduction <add>, %131, %cst_56 [1] : vector<256x32xf32> to vector<256xf32>
      %133 = vector.shape_cast %132 : vector<256xf32> to vector<256x1xf32>
      %cst_57 = arith.constant 3.200000e+01 : f32
      %134 = vector.broadcast %cst_57 : f32 to vector<256x1xf32>
      %135 = arith.divf %133, %134 : vector<256x1xf32>
      %cst_58 = arith.constant 1.000000e+00 : f32
      %136 = vector.broadcast %cst_58 : f32 to vector<1x32xf32>
      %137 = arith.addf %1, %136 : vector<1x32xf32>
      %138 = vector.broadcast %128 : vector<256x1xf32> to vector<256x32xf32>
      %139 = arith.subf %124, %138 : vector<256x32xf32>
      %cst_59 = arith.constant 9.99999974E-6 : f32
      %140 = vector.broadcast %cst_59 : f32 to vector<256x1xf32>
      %141 = arith.addf %135, %140 : vector<256x1xf32>
      %142 = math.rsqrt %141 : vector<256x1xf32>
      %143 = vector.broadcast %142 : vector<256x1xf32> to vector<256x32xf32>
      %144 = arith.mulf %139, %143 : vector<256x32xf32>
      %145 = vector.broadcast %137 : vector<1x32xf32> to vector<256x32xf32>
      %146 = arith.mulf %145, %144 : vector<256x32xf32>
      %147 = vector.broadcast %3 : vector<1x32xf32> to vector<256x32xf32>
      %148 = arith.addf %146, %147 : vector<256x32xf32>
      %149 = arith.truncf %148 : vector<256x32xf32> to vector<256x32xbf16>
      %c0_60 = arith.constant 0 : index
      %c0_61 = arith.constant 0 : index
      %150 = vector.load %arg8[%c0_60, %c0_61] : memref<32x64xbf16, #tpu.memory_space<vmem>>, vector<32x64xbf16>
      %cst_62 = arith.constant dense<0.000000e+00> : vector<256x64xf32>
      %151 = tpu.matmul %149, %150, %cst_62 {dimension_numbers = #tpu.dot_dimension_numbers<[1], [0], [0], [1], [0, 0, 1, 1], [], []>} : vector<256x32xbf16>, vector<32x64xbf16>, vector<256x64xf32> -> vector<256x64xf32>
      %c0_63 = arith.constant 0 : index
      %c0_64 = arith.constant 0 : index
      %152 = vector.load %arg9[%c0_63, %c0_64] : memref<1x64xf32, #tpu.memory_space<vmem>>, vector<1x64xf32>
      %153 = vector.shape_cast %152 : vector<1x64xf32> to vector<64xf32>
      %154 = vector.shape_cast %153 : vector<64xf32> to vector<1x64xf32>
      %155 = vector.broadcast %154 : vector<1x64xf32> to vector<256x64xf32>
      %156 = arith.addf %151, %155 : vector<256x64xf32>
      %157 = arith.truncf %156 : vector<256x64xf32> to vector<256x64xbf16>
      %158 = vector.extract_strided_slice %157 {offsets = [0, 0], sizes = [256, 8], strides = [1, 1]} : vector<256x64xbf16> to vector<256x8xbf16>
      %c0_65 = arith.constant 0 : index
      %c0_66 = arith.constant 0 : index
      %c0_67 = arith.constant 0 : index
      %159 = vector.load %arg17[%c0_65, %c0_66, %c0_67] : memref<4x256x8xbf16, #tpu.memory_space<vmem>>, vector<1x256x8xbf16>
      %160 = vector.shape_cast %159 : vector<1x256x8xbf16> to vector<256x8xbf16>
      %161 = vector.shape_cast %158 : vector<256x8xbf16> to vector<1x256x8xbf16>
      tpu.vector_store %arg17[%c0_65, %c0_66, %c0_67], %161 {strides = array<i32>} : memref<4x256x8xbf16, #tpu.memory_space<vmem>>, vector<1x256x8xbf16>,
      %162 = vector.extract_strided_slice %157 {offsets = [0, 32], sizes = [256, 8], strides = [1, 1]} : vector<256x64xbf16> to vector<256x8xbf16>
      %c0_68 = arith.constant 0 : index
      %c0_69 = arith.constant 0 : index
      %c0_70 = arith.constant 0 : index
      %163 = vector.load %arg18[%c0_68, %c0_69, %c0_70] : memref<4x256x8xbf16, #tpu.memory_space<vmem>>, vector<1x256x8xbf16>
      %164 = vector.shape_cast %163 : vector<1x256x8xbf16> to vector<256x8xbf16>
      %165 = vector.shape_cast %162 : vector<256x8xbf16> to vector<1x256x8xbf16>
      tpu.vector_store %arg18[%c0_68, %c0_69, %c0_70], %165 {strides = array<i32>} : memref<4x256x8xbf16, #tpu.memory_space<vmem>>, vector<1x256x8xbf16>,
      %166 = vector.extract_strided_slice %157 {offsets = [0, 8], sizes = [256, 8], strides = [1, 1]} : vector<256x64xbf16> to vector<256x8xbf16>
      %c1 = arith.constant 1 : index
      %c0_71 = arith.constant 0 : index
      %c0_72 = arith.constant 0 : index
      %167 = vector.load %arg17[%c1, %c0_71, %c0_72] : memref<4x256x8xbf16, #tpu.memory_space<vmem>>, vector<1x256x8xbf16>
      %168 = vector.shape_cast %167 : vector<1x256x8xbf16> to vector<256x8xbf16>
      %169 = vector.shape_cast %166 : vector<256x8xbf16> to vector<1x256x8xbf16>
      tpu.vector_store %arg17[%c1, %c0_71, %c0_72], %169 {strides = array<i32>} : memref<4x256x8xbf16, #tpu.memory_space<vmem>>, vector<1x256x8xbf16>,
      %170 = vector.extract_strided_slice %157 {offsets = [0, 40], sizes = [256, 8], strides = [1, 1]} : vector<256x64xbf16> to vector<256x8xbf16>
      %c1_73 = arith.constant 1 : index
      %c0_74 = arith.constant 0 : index
      %c0_75 = arith.constant 0 : index
      %171 = vector.load %arg18[%c1_73, %c0_74, %c0_75] : memref<4x256x8xbf16, #tpu.memory_space<vmem>>, vector<1x256x8xbf16>
      %172 = vector.shape_cast %171 : vector<1x256x8xbf16> to vector<256x8xbf16>
      %173 = vector.shape_cast %170 : vector<256x8xbf16> to vector<1x256x8xbf16>
      tpu.vector_store %arg18[%c1_73, %c0_74, %c0_75], %173 {strides = array<i32>} : memref<4x256x8xbf16, #tpu.memory_space<vmem>>, vector<1x256x8xbf16>,
      %174 = vector.extract_strided_slice %157 {offsets = [0, 16], sizes = [256, 8], strides = [1, 1]} : vector<256x64xbf16> to vector<256x8xbf16>
      %c2 = arith.constant 2 : index
      %c0_76 = arith.constant 0 : index
      %c0_77 = arith.constant 0 : index
      %175 = vector.load %arg17[%c2, %c0_76, %c0_77] : memref<4x256x8xbf16, #tpu.memory_space<vmem>>, vector<1x256x8xbf16>
      %176 = vector.shape_cast %175 : vector<1x256x8xbf16> to vector<256x8xbf16>
      %177 = vector.shape_cast %174 : vector<256x8xbf16> to vector<1x256x8xbf16>
      tpu.vector_store %arg17[%c2, %c0_76, %c0_77], %177 {strides = array<i32>} : memref<4x256x8xbf16, #tpu.memory_space<vmem>>, vector<1x256x8xbf16>,
      %178 = vector.extract_strided_slice %157 {offsets = [0, 48], sizes = [256, 8], strides = [1, 1]} : vector<256x64xbf16> to vector<256x8xbf16>
      %c2_78 = arith.constant 2 : index
      %c0_79 = arith.constant 0 : index
      %c0_80 = arith.constant 0 : index
      %179 = vector.load %arg18[%c2_78, %c0_79, %c0_80] : memref<4x256x8xbf16, #tpu.memory_space<vmem>>, vector<1x256x8xbf16>
      %180 = vector.shape_cast %179 : vector<1x256x8xbf16> to vector<256x8xbf16>
      %181 = vector.shape_cast %178 : vector<256x8xbf16> to vector<1x256x8xbf16>
      tpu.vector_store %arg18[%c2_78, %c0_79, %c0_80], %181 {strides = array<i32>} : memref<4x256x8xbf16, #tpu.memory_space<vmem>>, vector<1x256x8xbf16>,
      %182 = vector.extract_strided_slice %157 {offsets = [0, 24], sizes = [256, 8], strides = [1, 1]} : vector<256x64xbf16> to vector<256x8xbf16>
      %c3 = arith.constant 3 : index
      %c0_81 = arith.constant 0 : index
      %c0_82 = arith.constant 0 : index
      %183 = vector.load %arg17[%c3, %c0_81, %c0_82] : memref<4x256x8xbf16, #tpu.memory_space<vmem>>, vector<1x256x8xbf16>
      %184 = vector.shape_cast %183 : vector<1x256x8xbf16> to vector<256x8xbf16>
      %185 = vector.shape_cast %182 : vector<256x8xbf16> to vector<1x256x8xbf16>
      tpu.vector_store %arg17[%c3, %c0_81, %c0_82], %185 {strides = array<i32>} : memref<4x256x8xbf16, #tpu.memory_space<vmem>>, vector<1x256x8xbf16>,
      %186 = vector.extract_strided_slice %157 {offsets = [0, 56], sizes = [256, 8], strides = [1, 1]} : vector<256x64xbf16> to vector<256x8xbf16>
      %c3_83 = arith.constant 3 : index
      %c0_84 = arith.constant 0 : index
      %c0_85 = arith.constant 0 : index
      %187 = vector.load %arg18[%c3_83, %c0_84, %c0_85] : memref<4x256x8xbf16, #tpu.memory_space<vmem>>, vector<1x256x8xbf16>
      %188 = vector.shape_cast %187 : vector<1x256x8xbf16> to vector<256x8xbf16>
      %189 = vector.shape_cast %186 : vector<256x8xbf16> to vector<1x256x8xbf16>
      tpu.vector_store %arg18[%c3_83, %c0_84, %c0_85], %189 {strides = array<i32>} : memref<4x256x8xbf16, #tpu.memory_space<vmem>>, vector<1x256x8xbf16>,
    } else {
    }
    %c128_i32 = arith.constant 128 : i32
    %9 = arith.muli %arg1, %c128_i32 : i32
    %10 = tpu.assume_multiple %9, 128 : i32
    %c0_9 = arith.constant 0 : index
    %11 = arith.index_cast %10 : i32 to index
    %c0_10 = arith.constant 0 : index
    %12 = vector.load %arg2[%c0_9, %11, %c0_10] : memref<1x256x32xf32, #tpu.memory_space<vmem>>, vector<1x128x32xf32>
    %13 = vector.shape_cast %12 : vector<1x128x32xf32> to vector<128x32xf32>
    %cst = arith.constant dense<0.000000e+00> : vector<128xf32>
    %14 = vector.multi_reduction <add>, %13, %cst [1] : vector<128x32xf32> to vector<128xf32>
    %15 = vector.shape_cast %14 : vector<128xf32> to vector<128x1xf32>
    %cst_11 = arith.constant 3.200000e+01 : f32
    %16 = vector.broadcast %cst_11 : f32 to vector<128x1xf32>
    %17 = arith.divf %15, %16 : vector<128x1xf32>
    %18 = vector.broadcast %17 : vector<128x1xf32> to vector<128x32xf32>
    %19 = arith.subf %13, %18 : vector<128x32xf32>
    %20 = arith.mulf %19, %19 : vector<128x32xf32>
    %cst_12 = arith.constant dense<0.000000e+00> : vector<128xf32>
    %21 = vector.multi_reduction <add>, %20, %cst_12 [1] : vector<128x32xf32> to vector<128xf32>
    %22 = vector.shape_cast %21 : vector<128xf32> to vector<128x1xf32>
    %cst_13 = arith.constant 3.200000e+01 : f32
    %23 = vector.broadcast %cst_13 : f32 to vector<128x1xf32>
    %24 = arith.divf %22, %23 : vector<128x1xf32>
    %cst_14 = arith.constant 1.000000e+00 : f32
    %25 = vector.broadcast %cst_14 : f32 to vector<1x32xf32>
    %26 = arith.addf %1, %25 : vector<1x32xf32>
    %27 = vector.broadcast %17 : vector<128x1xf32> to vector<128x32xf32>
    %28 = arith.subf %13, %27 : vector<128x32xf32>
    %cst_15 = arith.constant 9.99999974E-6 : f32
    %29 = vector.broadcast %cst_15 : f32 to vector<128x1xf32>
    %30 = arith.addf %24, %29 : vector<128x1xf32>
    %31 = math.rsqrt %30 : vector<128x1xf32>
    %32 = vector.broadcast %31 : vector<128x1xf32> to vector<128x32xf32>
    %33 = arith.mulf %28, %32 : vector<128x32xf32>
    %34 = vector.broadcast %26 : vector<1x32xf32> to vector<128x32xf32>
    %35 = arith.mulf %34, %33 : vector<128x32xf32>
    %36 = vector.broadcast %3 : vector<1x32xf32> to vector<128x32xf32>
    %37 = arith.addf %35, %36 : vector<128x32xf32>
    %38 = arith.truncf %37 : vector<128x32xf32> to vector<128x32xbf16>
    %c0_16 = arith.constant 0 : index
    %c0_17 = arith.constant 0 : index
    %39 = vector.load %arg6[%c0_16, %c0_17] : memref<32x32xbf16, #tpu.memory_space<vmem>>, vector<32x32xbf16>
    %cst_18 = arith.constant dense<0.000000e+00> : vector<128x32xf32>
    %40 = tpu.matmul %38, %39, %cst_18 {dimension_numbers = #tpu.dot_dimension_numbers<[1], [0], [0], [1], [0, 0, 1, 1], [], []>} : vector<128x32xbf16>, vector<32x32xbf16>, vector<128x32xf32> -> vector<128x32xf32>
    %c0_19 = arith.constant 0 : index
    %c0_20 = arith.constant 0 : index
    %41 = vector.load %arg7[%c0_19, %c0_20] : memref<1x32xf32, #tpu.memory_space<vmem>>, vector<1x32xf32>
    %42 = vector.shape_cast %41 : vector<1x32xf32> to vector<32xf32>
    %43 = vector.shape_cast %42 : vector<32xf32> to vector<1x32xf32>
    %44 = vector.broadcast %43 : vector<1x32xf32> to vector<128x32xf32>
    %45 = arith.addf %40, %44 : vector<128x32xf32>
    %46 = arith.truncf %45 : vector<128x32xf32> to vector<128x32xbf16>
    %47 = vector.extract_strided_slice %46 {offsets = [0, 0], sizes = [128, 8], strides = [1, 1]} : vector<128x32xbf16> to vector<128x8xbf16>
    %48 = vector.extract_strided_slice %46 {offsets = [0, 8], sizes = [128, 8], strides = [1, 1]} : vector<128x32xbf16> to vector<128x8xbf16>
    %49 = vector.extract_strided_slice %46 {offsets = [0, 16], sizes = [128, 8], strides = [1, 1]} : vector<128x32xbf16> to vector<128x8xbf16>
    %50 = vector.extract_strided_slice %46 {offsets = [0, 24], sizes = [128, 8], strides = [1, 1]} : vector<128x32xbf16> to vector<128x8xbf16>
    %51 = vector.shape_cast %47 : vector<128x8xbf16> to vector<1x128x8xbf16>
    %52 = vector.shape_cast %48 : vector<128x8xbf16> to vector<1x128x8xbf16>
    %53 = vector.shape_cast %49 : vector<128x8xbf16> to vector<1x128x8xbf16>
    %54 = vector.shape_cast %50 : vector<128x8xbf16> to vector<1x128x8xbf16>
    %55 = tpu.concatenate %51, %52, %53, %54 in 0 : vector<1x128x8xbf16>, vector<1x128x8xbf16>, vector<1x128x8xbf16>, vector<1x128x8xbf16> -> vector<4x128x8xbf16>
    %c0_21 = arith.constant 0 : index
    %c0_22 = arith.constant 0 : index
    %c0_23 = arith.constant 0 : index
    %56 = vector.load %arg17[%c0_21, %c0_22, %c0_23] : memref<4x256x8xbf16, #tpu.memory_space<vmem>>, vector<4x256x8xbf16>
    "tpu.trace_start"() <{level = 10 : i32, message = "hqd,hkd->hqk"}> : () -> ()
    %cst_24 = arith.constant dense<0.000000e+00> : vector<4x128x256xf32>
    %57 = tpu.matmul %55, %56, %cst_24 {dimension_numbers = #tpu.dot_dimension_numbers<[2], [2], [1], [1], [0, 0, 0, 1, 1, 1], [0], [0]>} : vector<4x128x8xbf16>, vector<4x256x8xbf16>, vector<4x128x256xf32> -> vector<4x128x256xf32>
    "tpu.trace_stop"() : () -> ()
    %cst_25 = arith.constant dense<0xFF800000> : vector<4x128xf32>
    %58 = vector.multi_reduction <maximumf>, %57, %cst_25 [2] : vector<4x128x256xf32> to vector<4x128xf32>
    %59 = vector.shape_cast %58 : vector<4x128xf32> to vector<4x128x1xf32>
    %60 = vector.broadcast %59 : vector<4x128x1xf32> to vector<4x128x256xf32>
    %61 = arith.subf %57, %60 : vector<4x128x256xf32>
    %62 = math.exp %61 : vector<4x128x256xf32>
    %cst_26 = arith.constant dense<0.000000e+00> : vector<4x128xf32>
    %63 = vector.multi_reduction <add>, %62, %cst_26 [2] : vector<4x128x256xf32> to vector<4x128xf32>
    %64 = vector.shape_cast %63 : vector<4x128xf32> to vector<4x128x1xf32>
    %65 = tpu.reciprocal %64 {approx = true} : vector<4x128x1xf32> -> vector<4x128x1xf32>
    %66 = vector.broadcast %65 : vector<4x128x1xf32> to vector<4x128x256xf32>
    %67 = arith.mulf %62, %66 : vector<4x128x256xf32>
    %68 = arith.truncf %67 : vector<4x128x256xf32> to vector<4x128x256xbf16>
    %c0_27 = arith.constant 0 : index
    %c0_28 = arith.constant 0 : index
    %c0_29 = arith.constant 0 : index
    %69 = vector.load %arg18[%c0_27, %c0_28, %c0_29] : memref<4x256x8xbf16, #tpu.memory_space<vmem>>, vector<4x256x8xbf16>
    "tpu.trace_start"() <{level = 10 : i32, message = "hqk,hkd->hqd"}> : () -> ()
    %cst_30 = arith.constant dense<0.000000e+00> : vector<4x128x8xf32>
    %70 = tpu.matmul %68, %69, %cst_30 {dimension_numbers = #tpu.dot_dimension_numbers<[2], [1], [1], [2], [0, 0, 0, 1, 1, 2], [0], [0]>} : vector<4x128x256xbf16>, vector<4x256x8xbf16>, vector<4x128x8xf32> -> vector<4x128x8xf32>
    "tpu.trace_stop"() : () -> ()
    %71 = vector.extract_strided_slice %70 {offsets = [0, 0, 0], sizes = [1, 128, 8], strides = [1, 1, 1]} : vector<4x128x8xf32> to vector<1x128x8xf32>
    %72 = vector.shape_cast %71 : vector<1x128x8xf32> to vector<128x8xf32>
    %73 = vector.extract_strided_slice %70 {offsets = [1, 0, 0], sizes = [1, 128, 8], strides = [1, 1, 1]} : vector<4x128x8xf32> to vector<1x128x8xf32>
    %74 = vector.shape_cast %73 : vector<1x128x8xf32> to vector<128x8xf32>
    %75 = vector.extract_strided_slice %70 {offsets = [2, 0, 0], sizes = [1, 128, 8], strides = [1, 1, 1]} : vector<4x128x8xf32> to vector<1x128x8xf32>
    %76 = vector.shape_cast %75 : vector<1x128x8xf32> to vector<128x8xf32>
    %77 = vector.extract_strided_slice %70 {offsets = [3, 0, 0], sizes = [1, 128, 8], strides = [1, 1, 1]} : vector<4x128x8xf32> to vector<1x128x8xf32>
    %78 = vector.shape_cast %77 : vector<1x128x8xf32> to vector<128x8xf32>
    %79 = tpu.concatenate %72, %74, %76, %78 in 1 : vector<128x8xf32>, vector<128x8xf32>, vector<128x8xf32>, vector<128x8xf32> -> vector<128x32xf32>
    %80 = arith.truncf %79 : vector<128x32xf32> to vector<128x32xbf16>
    %c0_31 = arith.constant 0 : index
    %c0_32 = arith.constant 0 : index
    %81 = vector.load %arg10[%c0_31, %c0_32] : memref<32x32xbf16, #tpu.memory_space<vmem>>, vector<32x32xbf16>
    %cst_33 = arith.constant dense<0.000000e+00> : vector<128x32xf32>
    %82 = tpu.matmul %80, %81, %cst_33 {dimension_numbers = #tpu.dot_dimension_numbers<[1], [0], [0], [1], [0, 0, 1, 1], [], []>} : vector<128x32xbf16>, vector<32x32xbf16>, vector<128x32xf32> -> vector<128x32xf32>
    %c0_34 = arith.constant 0 : index
    %c0_35 = arith.constant 0 : index
    %83 = vector.load %arg11[%c0_34, %c0_35] : memref<1x32xf32, #tpu.memory_space<vmem>>, vector<1x32xf32>
    %84 = vector.shape_cast %83 : vector<1x32xf32> to vector<32xf32>
    %85 = vector.shape_cast %84 : vector<32xf32> to vector<1x32xf32>
    %86 = vector.broadcast %85 : vector<1x32xf32> to vector<128x32xf32>
    %87 = arith.addf %82, %86 : vector<128x32xf32>
    %88 = arith.addf %37, %87 : vector<128x32xf32>
    %89 = arith.truncf %88 : vector<128x32xf32> to vector<128x32xbf16>
    %c0_36 = arith.constant 0 : index
    %c0_37 = arith.constant 0 : index
    %90 = vector.load %arg12[%c0_36, %c0_37] : memref<32x64xbf16, #tpu.memory_space<vmem>>, vector<32x64xbf16>
    %cst_38 = arith.constant dense<0.000000e+00> : vector<128x64xf32>
    %91 = tpu.matmul %89, %90, %cst_38 {dimension_numbers = #tpu.dot_dimension_numbers<[1], [0], [0], [1], [0, 0, 1, 1], [], []>} : vector<128x32xbf16>, vector<32x64xbf16>, vector<128x64xf32> -> vector<128x64xf32>
    %c0_39 = arith.constant 0 : index
    %c0_40 = arith.constant 0 : index
    %92 = vector.load %arg13[%c0_39, %c0_40] : memref<1x64xf32, #tpu.memory_space<vmem>>, vector<1x64xf32>
    %93 = vector.shape_cast %92 : vector<1x64xf32> to vector<64xf32>
    %94 = vector.shape_cast %93 : vector<64xf32> to vector<1x64xf32>
    %95 = vector.broadcast %94 : vector<1x64xf32> to vector<128x64xf32>
    %96 = arith.addf %91, %95 : vector<128x64xf32>
    %97 = arith.negf %96 : vector<128x64xf32>
    %98 = math.exp %97 : vector<128x64xf32>
    %cst_41 = arith.constant 1.000000e+00 : f32
    %99 = vector.broadcast %cst_41 : f32 to vector<128x64xf32>
    %100 = arith.addf %99, %98 : vector<128x64xf32>
    %101 = arith.divf %99, %100 : vector<128x64xf32>
    %102 = arith.mulf %96, %101 : vector<128x64xf32>
    %103 = arith.truncf %102 : vector<128x64xf32> to vector<128x64xbf16>
    %c0_42 = arith.constant 0 : index
    %c0_43 = arith.constant 0 : index
    %104 = vector.load %arg14[%c0_42, %c0_43] : memref<64x32xbf16, #tpu.memory_space<vmem>>, vector<64x32xbf16>
    %cst_44 = arith.constant dense<0.000000e+00> : vector<128x32xf32>
    %105 = tpu.matmul %103, %104, %cst_44 {dimension_numbers = #tpu.dot_dimension_numbers<[1], [0], [0], [1], [0, 0, 1, 1], [], []>} : vector<128x64xbf16>, vector<64x32xbf16>, vector<128x32xf32> -> vector<128x32xf32>
    %c0_45 = arith.constant 0 : index
    %c0_46 = arith.constant 0 : index
    %106 = vector.load %arg15[%c0_45, %c0_46] : memref<1x32xf32, #tpu.memory_space<vmem>>, vector<1x32xf32>
    %107 = vector.shape_cast %106 : vector<1x32xf32> to vector<32xf32>
    %108 = vector.shape_cast %107 : vector<32xf32> to vector<1x32xf32>
    %109 = vector.broadcast %108 : vector<1x32xf32> to vector<128x32xf32>
    %110 = arith.addf %105, %109 : vector<128x32xf32>
    %111 = vector.broadcast %5 : vector<1x32xf32> to vector<128x32xf32>
    %112 = arith.mulf %111, %110 : vector<128x32xf32>
    %113 = arith.addf %13, %112 : vector<128x32xf32>
    %114 = arith.mulf %5, %5 : vector<1x32xf32>
    %cst_47 = arith.constant 1.000000e+00 : f32
    %115 = vector.broadcast %cst_47 : f32 to vector<1x32xf32>
    %116 = arith.addf %115, %114 : vector<1x32xf32>
    %117 = math.rsqrt %116 : vector<1x32xf32>
    %118 = vector.broadcast %117 : vector<1x32xf32> to vector<128x32xf32>
    %119 = arith.mulf %113, %118 : vector<128x32xf32>
    %c0_48 = arith.constant 0 : index
    %c0_49 = arith.constant 0 : index
    %c0_50 = arith.constant 0 : index
    %120 = vector.load %arg16[%c0_48, %c0_49, %c0_50] : memref<1x128x32xf32, #tpu.memory_space<vmem>>, vector<1x128x32xf32>
    %121 = vector.shape_cast %120 : vector<1x128x32xf32> to vector<128x32xf32>
    %122 = vector.shape_cast %119 : vector<128x32xf32> to vector<1x128x32xf32>
    tpu.vector_store %arg16[%c0_48, %c0_49, %c0_50], %122 {strides = array<i32>} : memref<1x128x32xf32, #tpu.memory_space<vmem>>, vector<1x128x32xf32>,
    return
  }
  func.func @transform_0(%arg0: i32, %arg1: i32) -> (i32, i32, i32) {
    %c0_i32 = arith.constant 0 : i32
    %c0_i32_0 = arith.constant 0 : i32
    %c0_i32_1 = arith.constant 0 : i32
    return %arg0, %c0_i32, %c0_i32_0 : i32, i32, i32
  }
  func.func @transform_1(%arg0: i32, %arg1: i32) -> (i32, i32, i32) {
    %c0_i32 = arith.constant 0 : i32
    %c0_i32_0 = arith.constant 0 : i32
    %c0_i32_1 = arith.constant 0 : i32
    return %arg0, %c0_i32, %c0_i32_0 : i32, i32, i32
  }
  func.func @transform_2(%arg0: i32, %arg1: i32) -> (i32, i32, i32) {
    %c0_i32 = arith.constant 0 : i32
    %c0_i32_0 = arith.constant 0 : i32
    %c0_i32_1 = arith.constant 0 : i32
    return %arg0, %c0_i32, %c0_i32_0 : i32, i32, i32
  }
  func.func @transform_3(%arg0: i32, %arg1: i32) -> (i32, i32, i32) {
    %c0_i32 = arith.constant 0 : i32
    %c0_i32_0 = arith.constant 0 : i32
    %c0_i32_1 = arith.constant 0 : i32
    return %arg0, %c0_i32, %c0_i32_0 : i32, i32, i32
  }
  func.func @transform_4(%arg0: i32, %arg1: i32) -> (i32, i32) {
    %c0_i32 = arith.constant 0 : i32
    %c0_i32_0 = arith.constant 0 : i32
    %c0_i32_1 = arith.constant 0 : i32
    return %c0_i32, %c0_i32_0 : i32, i32
  }
  func.func @transform_5(%arg0: i32, %arg1: i32) -> (i32, i32) {
    %c0_i32 = arith.constant 0 : i32
    %c0_i32_0 = arith.constant 0 : i32
    %c0_i32_1 = arith.constant 0 : i32
    return %c0_i32, %c0_i32_0 : i32, i32
  }
  func.func @transform_6(%arg0: i32, %arg1: i32) -> (i32, i32) {
    %c0_i32 = arith.constant 0 : i32
    %c0_i32_0 = arith.constant 0 : i32
    %c0_i32_1 = arith.constant 0 : i32
    return %c0_i32, %c0_i32_0 : i32, i32
  }
  func.func @transform_7(%arg0: i32, %arg1: i32) -> (i32, i32) {
    %c0_i32 = arith.constant 0 : i32
    %c0_i32_0 = arith.constant 0 : i32
    %c0_i32_1 = arith.constant 0 : i32
    return %c0_i32, %c0_i32_0 : i32, i32
  }
  func.func @transform_8(%arg0: i32, %arg1: i32) -> (i32, i32) {
    %c0_i32 = arith.constant 0 : i32
    %c0_i32_0 = arith.constant 0 : i32
    %c0_i32_1 = arith.constant 0 : i32
    return %c0_i32, %c0_i32_0 : i32, i32
  }
  func.func @transform_9(%arg0: i32, %arg1: i32) -> (i32, i32) {
    %c0_i32 = arith.constant 0 : i32
    %c0_i32_0 = arith.constant 0 : i32
    %c0_i32_1 = arith.constant 0 : i32
    return %c0_i32, %c0_i32_0 : i32, i32
  }
  func.func @transform_10(%arg0: i32, %arg1: i32) -> (i32, i32) {
    %c0_i32 = arith.constant 0 : i32
    %c0_i32_0 = arith.constant 0 : i32
    %c0_i32_1 = arith.constant 0 : i32
    return %c0_i32, %c0_i32_0 : i32, i32
  }
  func.func @transform_11(%arg0: i32, %arg1: i32) -> (i32, i32) {
    %c0_i32 = arith.constant 0 : i32
    %c0_i32_0 = arith.constant 0 : i32
    %c0_i32_1 = arith.constant 0 : i32
    return %c0_i32, %c0_i32_0 : i32, i32
  }
  func.func @transform_12(%arg0: i32, %arg1: i32) -> (i32, i32) {
    %c0_i32 = arith.constant 0 : i32
    %c0_i32_0 = arith.constant 0 : i32
    %c0_i32_1 = arith.constant 0 : i32
    return %c0_i32, %c0_i32_0 : i32, i32
  }
  func.func @transform_13(%arg0: i32, %arg1: i32) -> (i32, i32) {
    %c0_i32 = arith.constant 0 : i32
    %c0_i32_0 = arith.constant 0 : i32
    %c0_i32_1 = arith.constant 0 : i32
    return %c0_i32, %c0_i32_0 : i32, i32
  }
  func.func @transform_14(%arg0: i32, %arg1: i32) -> (i32, i32, i32) {
    %c0_i32 = arith.constant 0 : i32
    %c0_i32_0 = arith.constant 0 : i32
    return %arg0, %arg1, %c0_i32 : i32, i32, i32
  }
}

</mosaic_0001>

<llo_original>
// kernel: tpu_custom_call.1
$region0: #{tpu_custom_call.1}
  #allocation0 [shape = 'u32[]', space=smem, size = 0x4, offset = 0x4, fixed_abs, tag = 'smem constant byte address 0x4 - core index']
  #allocation1 [shape = 'u32[144,128]{1,0:T(1,128)}', space=vmem, size = 0x12000, scoped, tag = 'internal scratch']
  #allocation2 [shape = 'bf16[4,256,8]{2,1,0:T(16,128)(2,1)}', space=vmem, size = 0x40000, scoped, tag = 'scratch operand']
  #allocation3 [shape = 'bf16[4,256,8]{2,1,0:T(16,128)(2,1)}', space=vmem, size = 0x40000, scoped, tag = 'scratch operand']
  %s0 = inlined_call_operand.vmem [shape: f32[2,256,32], index: 0, kind: input, shape index: {}]
  %s1 = inlined_call_operand.vmem [shape: f32[2,1,32], index: 1, kind: input, shape index: {}]
  %s2 = inlined_call_operand.vmem [shape: f32[2,1,32], index: 2, kind: input, shape index: {}]
  %s3 = inlined_call_operand.vmem [shape: f32[2,1,32], index: 3, kind: input, shape index: {}]
  %s4 = inlined_call_operand.vmem [shape: bf16[32,32], index: 4, kind: input, shape index: {}]
  %s5 = inlined_call_operand.vmem [shape: f32[1,32], index: 5, kind: input, shape index: {}]
  %s6 = inlined_call_operand.vmem [shape: bf16[32,64], index: 6, kind: input, shape index: {}]
  %s7 = inlined_call_operand.vmem [shape: f32[1,64], index: 7, kind: input, shape index: {}]
  %s8 = inlined_call_operand.vmem [shape: bf16[32,32], index: 8, kind: input, shape index: {}]
  %s9 = inlined_call_operand.vmem [shape: f32[1,32], index: 9, kind: input, shape index: {}]
  %s10 = inlined_call_operand.vmem [shape: bf16[32,64], index: 10, kind: input, shape index: {}]
  %s11 = inlined_call_operand.vmem [shape: f32[1,64], index: 11, kind: input, shape index: {}]
  %s12 = inlined_call_operand.vmem [shape: bf16[64,32], index: 12, kind: input, shape index: {}]
  %s13 = inlined_call_operand.vmem [shape: f32[1,32], index: 13, kind: input, shape index: {}]
  %s14 = inlined_call_operand.vmem [shape: f32[2,256,32], index: 14, kind: output, shape index: {}]
  %s15 = sld [smem:[#allocation0]]
  $region93: #{tpu_custom_call.1} parent=0
    _
  %s17 = ssub.s32 1, %s15
  %s18 = scalar_select 0, %s17, %s15
  loop: start=0, step=1, limit=6
  $region2: #{tpu_custom_call.1} parent=0 // loop_pre_header
    _
  $region3: #{tpu_custom_call.1} parent=0 // loop_header
    %s20 = sphi 0, %s24
    %p21 = scmp.ge.s32.totalorder %s20, 6
    %s27 = sphi 0, %s39
    %s28 = sphi 0, %s35
    %s29 = sphi 0, %s27
    %s30 = sphi 0, %s28
    %s31 = sphi 0, %s29
    %s32 = sphi 0, %s30
    %s42 = sphi 0, %s44
    %s45 = sphi 0, %s42
    %s46 = sphi 0, %s45
    %s62 = sphi 0, %s46
    %s68 = sphi 0, %s70
    %s71 = sphi 0, %s68
    %s72 = sphi 0, %s71
    %s88 = sphi 0, %s72
    %s94 = sphi 0, %s96
    %s97 = sphi 0, %s94
    %s98 = sphi 0, %s97
    %s114 = sphi 0, %s98
    %s120 = sphi 0, %s122
    %s123 = sphi 0, %s120
    %s124 = sphi 0, %s123
    %s140 = sphi 0, %s124
    %s144 = sphi 0, %s144
    %s146 = sphi 0, %s144
    %s147 = sphi 0, %s146
    %s161 = sphi 0, %s147
    %s165 = sphi 0, %s165
    %s167 = sphi 0, %s165
    %s168 = sphi 0, %s167
    %s182 = sphi 0, %s168
    %s186 = sphi 0, %s186
    %s188 = sphi 0, %s186
    %s189 = sphi 0, %s188
    %s203 = sphi 0, %s189
    %s207 = sphi 0, %s207
    %s209 = sphi 0, %s207
    %s210 = sphi 0, %s209
    %s224 = sphi 0, %s210
    %s228 = sphi 0, %s228
    %s230 = sphi 0, %s228
    %s231 = sphi 0, %s230
    %s245 = sphi 0, %s231
    %s249 = sphi 0, %s249
    %s251 = sphi 0, %s249
    %s252 = sphi 0, %s251
    %s266 = sphi 0, %s252
    %s270 = sphi 0, %s270
    %s272 = sphi 0, %s270
    %s273 = sphi 0, %s272
    %s287 = sphi 0, %s273
    %s291 = sphi 0, %s291
    %s293 = sphi 0, %s291
    %s294 = sphi 0, %s293
    %s308 = sphi 0, %s294
    %s312 = sphi 0, %s312
    %s314 = sphi 0, %s312
    %s315 = sphi 0, %s314
    %s329 = sphi 0, %s315
    %s333 = sphi 0, %s333
    %s335 = sphi 0, %s333
    %s336 = sphi 0, %s335
    %s350 = sphi 0, %s336
    %s358 = sphi 0, %s360
    %s361 = sphi 0, %s358
    %s362 = sphi 0, %s361
    %s378 = sphi 0, %s362
  $region4: #{tpu_custom_call.1} parent=0 // loop_header_branch
    %23 = sbr.rel (%p21) target = $region8
  $region5: #{tpu_custom_call.1} parent=0 // loop_body
    %s25 = ssub.s32 %s20, 1
    %s26 = ssub.s32 %s20, 2
    %s33 = sadd.s32 1, %s28
    %p34 = scmp.ge.s32.totalorder %s33, 2
    %s35 = scalar_select %p34, 0, %s33
    %s36 = sadd.s32 1, %s27
    %s37 = scalar_select %p34, %s36, %s27
    %p38 = scmp.ge.s32.totalorder %s37, 2
    %s39 = scalar_select %p38, 0, %s37
    %s40 = ssub.s32 %s27, %s39
    %p41 = scmp.eq.s32.totalorder %s40, 0
    %s43 = sadd.s32 %s42, 1
    %s44 = scalar_select %p41, %s42, %s43
    %p47 = pneg %p41
    %p48 = scmp.eq.s32.totalorder %s20, 3
    %p49 = por %p47, %p48
    %p50 = scmp.ne.s32.totalorder %s42, %s45
    %p51 = scmp.eq.s32.totalorder %s20, 0
    %p52 = por %p50, %p51
    %p53 = scmp.ne.s32.totalorder %s42, %s45
    %p54 = scmp.eq.s32.totalorder %s25, 3
    %p55 = por %p53, %p54
    %p56 = scmp.ne.s32.totalorder %s45, %s46
    %p57 = scmp.eq.s32.totalorder %s25, 0
    %p58 = por %p56, %p57
    %p59 = scmp.ne.s32.totalorder %s45, %s46
    %p60 = scmp.eq.s32.totalorder %s26, 3
    %p61 = por %p59, %p60
    %p63 = scmp.ne.s32.totalorder %s46, %s62
    %p64 = scmp.eq.s32.totalorder %s26, 0
    %p65 = por %p63, %p64
    %s66 = ssub.s32 %s27, %s39
    %p67 = scmp.eq.s32.totalorder %s66, 0
    %s69 = sadd.s32 %s68, 1
    %s70 = scalar_select %p67, %s68, %s69
    %p73 = pneg %p67
    %p74 = scmp.eq.s32.totalorder %s20, 3
    %p75 = por %p73, %p74
    %p76 = scmp.ne.s32.totalorder %s68, %s71
    %p77 = scmp.eq.s32.totalorder %s20, 0
    %p78 = por %p76, %p77
    %p79 = scmp.ne.s32.totalorder %s68, %s71
    %p80 = scmp.eq.s32.totalorder %s25, 3
    %p81 = por %p79, %p80
    %p82 = scmp.ne.s32.totalorder %s71, %s72
    %p83 = scmp.eq.s32.totalorder %s25, 0
    %p84 = por %p82, %p83
    %p85 = scmp.ne.s32.totalorder %s71, %s72
    %p86 = scmp.eq.s32.totalorder %s26, 3
    %p87 = por %p85, %p86
    %p89 = scmp.ne.s32.totalorder %s72, %s88
    %p90 = scmp.eq.s32.totalorder %s26, 0
    %p91 = por %p89, %p90
    %s92 = ssub.s32 %s27, %s39
    %p93 = scmp.eq.s32.totalorder %s92, 0
    %s95 = sadd.s32 %s94, 1
    %s96 = scalar_select %p93, %s94, %s95
    %p99 = pneg %p93
    %p100 = scmp.eq.s32.totalorder %s20, 3
    %p101 = por %p99, %p100
    %p102 = scmp.ne.s32.totalorder %s94, %s97
    %p103 = scmp.eq.s32.totalorder %s20, 0
    %p104 = por %p102, %p103
    %p105 = scmp.ne.s32.totalorder %s94, %s97
    %p106 = scmp.eq.s32.totalorder %s25, 3
    %p107 = por %p105, %p106
    %p108 = scmp.ne.s32.totalorder %s97, %s98
    %p109 = scmp.eq.s32.totalorder %s25, 0
    %p110 = por %p108, %p109
    %p111 = scmp.ne.s32.totalorder %s97, %s98
    %p112 = scmp.eq.s32.totalorder %s26, 3
    %p113 = por %p111, %p112
    %p115 = scmp.ne.s32.totalorder %s98, %s114
    %p116 = scmp.eq.s32.totalorder %s26, 0
    %p117 = por %p115, %p116
    %s118 = ssub.s32 %s27, %s39
    %p119 = scmp.eq.s32.totalorder %s118, 0
    %s121 = sadd.s32 %s120, 1
    %s122 = scalar_select %p119, %s120, %s121
    %p125 = pneg %p119
    %p126 = scmp.eq.s32.totalorder %s20, 3
    %p127 = por %p125, %p126
    %p128 = scmp.ne.s32.totalorder %s120, %s123
    %p129 = scmp.eq.s32.totalorder %s20, 0
    %p130 = por %p128, %p129
    %p131 = scmp.ne.s32.totalorder %s120, %s123
    %p132 = scmp.eq.s32.totalorder %s25, 3
    %p133 = por %p131, %p132
    %p134 = scmp.ne.s32.totalorder %s123, %s124
    %p135 = scmp.eq.s32.totalorder %s25, 0
    %p136 = por %p134, %p135
    %p137 = scmp.ne.s32.totalorder %s123, %s124
    %p138 = scmp.eq.s32.totalorder %s26, 3
    %p139 = por %p137, %p138
    %p141 = scmp.ne.s32.totalorder %s124, %s140
    %p142 = scmp.eq.s32.totalorder %s26, 0
    %p143 = por %p141, %p142
    %s145 = sadd.s32 %s144, 1
    %p148 = scmp.eq.s32.totalorder %s20, 3
    %p149 = scmp.ne.s32.totalorder %s144, %s146
    %p150 = scmp.eq.s32.totalorder %s20, 0
    %p151 = por %p149, %p150
    %p152 = scmp.ne.s32.totalorder %s144, %s146
    %p153 = scmp.eq.s32.totalorder %s25, 3
    %p154 = por %p152, %p153
    %p155 = scmp.ne.s32.totalorder %s146, %s147
    %p156 = scmp.eq.s32.totalorder %s25, 0
    %p157 = por %p155, %p156
    %p158 = scmp.ne.s32.totalorder %s146, %s147
    %p159 = scmp.eq.s32.totalorder %s26, 3
    %p160 = por %p158, %p159
    %p162 = scmp.ne.s32.totalorder %s147, %s161
    %p163 = scmp.eq.s32.totalorder %s26, 0
    %p164 = por %p162, %p163
    %s166 = sadd.s32 %s165, 1
    %p169 = scmp.eq.s32.totalorder %s20, 3
    %p170 = scmp.ne.s32.totalorder %s165, %s167
    %p171 = scmp.eq.s32.totalorder %s20, 0
    %p172 = por %p170, %p171
    %p173 = scmp.ne.s32.totalorder %s165, %s167
    %p174 = scmp.eq.s32.totalorder %s25, 3
    %p175 = por %p173, %p174
    %p176 = scmp.ne.s32.totalorder %s167, %s168
    %p177 = scmp.eq.s32.totalorder %s25, 0
    %p178 = por %p176, %p177
    %p179 = scmp.ne.s32.totalorder %s167, %s168
    %p180 = scmp.eq.s32.totalorder %s26, 3
    %p181 = por %p179, %p180
    %p183 = scmp.ne.s32.totalorder %s168, %s182
    %p184 = scmp.eq.s32.totalorder %s26, 0
    %p185 = por %p183, %p184
    %s187 = sadd.s32 %s186, 1
    %p190 = scmp.eq.s32.totalorder %s20, 3
    %p191 = scmp.ne.s32.totalorder %s186, %s188
    %p192 = scmp.eq.s32.totalorder %s20, 0
    %p193 = por %p191, %p192
    %p194 = scmp.ne.s32.totalorder %s186, %s188
    %p195 = scmp.eq.s32.totalorder %s25, 3
    %p196 = por %p194, %p195
    %p197 = scmp.ne.s32.totalorder %s188, %s189
    %p198 = scmp.eq.s32.totalorder %s25, 0
    %p199 = por %p197, %p198
    %p200 = scmp.ne.s32.totalorder %s188, %s189
    %p201 = scmp.eq.s32.totalorder %s26, 3
    %p202 = por %p200, %p201
    %p204 = scmp.ne.s32.totalorder %s189, %s203
    %p205 = scmp.eq.s32.totalorder %s26, 0
    %p206 = por %p204, %p205
    %s208 = sadd.s32 %s207, 1
    %p211 = scmp.eq.s32.totalorder %s20, 3
    %p212 = scmp.ne.s32.totalorder %s207, %s209
    %p213 = scmp.eq.s32.totalorder %s20, 0
    %p214 = por %p212, %p213
    %p215 = scmp.ne.s32.totalorder %s207, %s209
    %p216 = scmp.eq.s32.totalorder %s25, 3
    %p217 = por %p215, %p216
    %p218 = scmp.ne.s32.totalorder %s209, %s210
    %p219 = scmp.eq.s32.totalorder %s25, 0
    %p220 = por %p218, %p219
    %p221 = scmp.ne.s32.totalorder %s209, %s210
    %p222 = scmp.eq.s32.totalorder %s26, 3
    %p223 = por %p221, %p222
    %p225 = scmp.ne.s32.totalorder %s210, %s224
    %p226 = scmp.eq.s32.totalorder %s26, 0
    %p227 = por %p225, %p226
    %s229 = sadd.s32 %s228, 1
    %p232 = scmp.eq.s32.totalorder %s20, 3
    %p233 = scmp.ne.s32.totalorder %s228, %s230
    %p234 = scmp.eq.s32.totalorder %s20, 0
    %p235 = por %p233, %p234
    %p236 = scmp.ne.s32.totalorder %s228, %s230
    %p237 = scmp.eq.s32.totalorder %s25, 3
    %p238 = por %p236, %p237
    %p239 = scmp.ne.s32.totalorder %s230, %s231
    %p240 = scmp.eq.s32.totalorder %s25, 0
    %p241 = por %p239, %p240
    %p242 = scmp.ne.s32.totalorder %s230, %s231
    %p243 = scmp.eq.s32.totalorder %s26, 3
    %p244 = por %p242, %p243
    %p246 = scmp.ne.s32.totalorder %s231, %s245
    %p247 = scmp.eq.s32.totalorder %s26, 0
    %p248 = por %p246, %p247
    %s250 = sadd.s32 %s249, 1
    %p253 = scmp.eq.s32.totalorder %s20, 3
    %p254 = scmp.ne.s32.totalorder %s249, %s251
    %p255 = scmp.eq.s32.totalorder %s20, 0
    %p256 = por %p254, %p255
    %p257 = scmp.ne.s32.totalorder %s249, %s251
    %p258 = scmp.eq.s32.totalorder %s25, 3
    %p259 = por %p257, %p258
    %p260 = scmp.ne.s32.totalorder %s251, %s252
    %p261 = scmp.eq.s32.totalorder %s25, 0
    %p262 = por %p260, %p261
    %p263 = scmp.ne.s32.totalorder %s251, %s252
    %p264 = scmp.eq.s32.totalorder %s26, 3
    %p265 = por %p263, %p264
    %p267 = scmp.ne.s32.totalorder %s252, %s266
    %p268 = scmp.eq.s32.totalorder %s26, 0
    %p269 = por %p267, %p268
    %s271 = sadd.s32 %s270, 1
    %p274 = scmp.eq.s32.totalorder %s20, 3
    %p275 = scmp.ne.s32.totalorder %s270, %s272
    %p276 = scmp.eq.s32.totalorder %s20, 0
    %p277 = por %p275, %p276
    %p278 = scmp.ne.s32.totalorder %s270, %s272
    %p279 = scmp.eq.s32.totalorder %s25, 3
    %p280 = por %p278, %p279
    %p281 = scmp.ne.s32.totalorder %s272, %s273
    %p282 = scmp.eq.s32.totalorder %s25, 0
    %p283 = por %p281, %p282
    %p284 = scmp.ne.s32.totalorder %s272, %s273
    %p285 = scmp.eq.s32.totalorder %s26, 3
    %p286 = por %p284, %p285
    %p288 = scmp.ne.s32.totalorder %s273, %s287
    %p289 = scmp.eq.s32.totalorder %s26, 0
    %p290 = por %p288, %p289
    %s292 = sadd.s32 %s291, 1
    %p295 = scmp.eq.s32.totalorder %s20, 3
    %p296 = scmp.ne.s32.totalorder %s291, %s293
    %p297 = scmp.eq.s32.totalorder %s20, 0
    %p298 = por %p296, %p297
    %p299 = scmp.ne.s32.totalorder %s291, %s293
    %p300 = scmp.eq.s32.totalorder %s25, 3
    %p301 = por %p299, %p300
    %p302 = scmp.ne.s32.totalorder %s293, %s294
    %p303 = scmp.eq.s32.totalorder %s25, 0
    %p304 = por %p302, %p303
    %p305 = scmp.ne.s32.totalorder %s293, %s294
    %p306 = scmp.eq.s32.totalorder %s26, 3
    %p307 = por %p305, %p306
    %p309 = scmp.ne.s32.totalorder %s294, %s308
    %p310 = scmp.eq.s32.totalorder %s26, 0
    %p311 = por %p309, %p310
    %s313 = sadd.s32 %s312, 1
    %p316 = scmp.eq.s32.totalorder %s20, 3
    %p317 = scmp.ne.s32.totalorder %s312, %s314
    %p318 = scmp.eq.s32.totalorder %s20, 0
    %p319 = por %p317, %p318
    %p320 = scmp.ne.s32.totalorder %s312, %s314
    %p321 = scmp.eq.s32.totalorder %s25, 3
    %p322 = por %p320, %p321
    %p323 = scmp.ne.s32.totalorder %s314, %s315
    %p324 = scmp.eq.s32.totalorder %s25, 0
    %p325 = por %p323, %p324
    %p326 = scmp.ne.s32.totalorder %s314, %s315
    %p327 = scmp.eq.s32.totalorder %s26, 3
    %p328 = por %p326, %p327
    %p330 = scmp.ne.s32.totalorder %s315, %s329
    %p331 = scmp.eq.s32.totalorder %s26, 0
    %p332 = por %p330, %p331
    %s334 = sadd.s32 %s333, 1
    %p337 = scmp.eq.s32.totalorder %s20, 3
    %p338 = scmp.ne.s32.totalorder %s333, %s335
    %p339 = scmp.eq.s32.totalorder %s20, 0
    %p340 = por %p338, %p339
    %p341 = scmp.ne.s32.totalorder %s333, %s335
    %p342 = scmp.eq.s32.totalorder %s25, 3
    %p343 = por %p341, %p342
    %p344 = scmp.ne.s32.totalorder %s335, %s336
    %p345 = scmp.eq.s32.totalorder %s25, 0
    %p346 = por %p344, %p345
    %p347 = scmp.ne.s32.totalorder %s335, %s336
    %p348 = scmp.eq.s32.totalorder %s26, 3
    %p349 = por %p347, %p348
    %p351 = scmp.ne.s32.totalorder %s336, %s350
    %p352 = scmp.eq.s32.totalorder %s26, 0
    %p353 = por %p351, %p352
    %s354 = ssub.s32 %s27, %s39
    %s355 = ssub.s32 %s28, %s35
    %s356 = sor.u32 %s354, %s355
    %p357 = scmp.eq.s32.totalorder %s356, 0
    %s359 = sadd.s32 %s358, 1
    %s360 = scalar_select %p357, %s358, %s359
    %p363 = pneg %p357
    %p364 = scmp.eq.s32.totalorder %s20, 3
    %p365 = por %p363, %p364
    %p366 = scmp.ne.s32.totalorder %s358, %s361
    %p367 = scmp.eq.s32.totalorder %s20, 0
    %p368 = por %p366, %p367
    %p369 = scmp.ne.s32.totalorder %s358, %s361
    %p370 = scmp.eq.s32.totalorder %s25, 3
    %p371 = por %p369, %p370
    %p372 = scmp.ne.s32.totalorder %s361, %s362
    %p373 = scmp.eq.s32.totalorder %s25, 0
    %p374 = por %p372, %p373
    %p375 = scmp.ne.s32.totalorder %s361, %s362
    %p376 = scmp.eq.s32.totalorder %s26, 3
    %p377 = por %p375, %p376
    %p379 = scmp.ne.s32.totalorder %s362, %s378
    %p380 = scmp.eq.s32.totalorder %s26, 0
    %p381 = por %p379, %p380
    %p382 = scmp.le.s32.totalorder 1, %s20
    %p383 = scmp.lt.s32.totalorder %s20, 5
    %p384 = pnand %p382, %p383
    %p385 = pneg %p384
    // Predicated region
    $region9: #{tpu_custom_call.1} parent=5 // pred_check
      _
    $region10: #{tpu_custom_call.1} parent=5 // pred_check_branch
      %387 = sbr.rel (%p384) target = $region12
    $region11: #{tpu_custom_call.1} parent=5 // pred_region
      %s388 = ssub.s32 %s20, 1
      // Predicated region
      $region13: #{tpu_custom_call.1} parent=11 // pred_check
        %p389 = pneg %p157
      $region14: #{tpu_custom_call.1} parent=11 // pred_check_branch
        %391 = sbr.rel (%p389) target = $region16
      $region15: #{tpu_custom_call.1} parent=11 // pred_region
        _
      $region16: #{tpu_custom_call.1} parent=11 // pred_fallthru
        _
      // Predicated region
      $region17: #{tpu_custom_call.1} parent=11 // pred_check
        %p392 = pneg %p178
      $region18: #{tpu_custom_call.1} parent=11 // pred_check_branch
        %394 = sbr.rel (%p392) target = $region20
      $region19: #{tpu_custom_call.1} parent=11 // pred_region
        _
      $region20: #{tpu_custom_call.1} parent=11 // pred_fallthru
        _
      // Predicated region
      $region21: #{tpu_custom_call.1} parent=11 // pred_check
        %p395 = pneg %p199
      $region22: #{tpu_custom_call.1} parent=11 // pred_check_branch
        %397 = sbr.rel (%p395) target = $region24
      $region23: #{tpu_custom_call.1} parent=11 // pred_region
        _
      $region24: #{tpu_custom_call.1} parent=11 // pred_fallthru
        _
      // Predicated region
      $region25: #{tpu_custom_call.1} parent=11 // pred_check
        %p398 = pneg %p220
      $region26: #{tpu_custom_call.1} parent=11 // pred_check_branch
        %400 = sbr.rel (%p398) target = $region28
      $region27: #{tpu_custom_call.1} parent=11 // pred_region
        _
      $region28: #{tpu_custom_call.1} parent=11 // pred_fallthru
        _
      // Predicated region
      $region29: #{tpu_custom_call.1} parent=11 // pred_check
        %p401 = pneg %p241
      $region30: #{tpu_custom_call.1} parent=11 // pred_check_branch
        %403 = sbr.rel (%p401) target = $region32
      $region31: #{tpu_custom_call.1} parent=11 // pred_region
        _
      $region32: #{tpu_custom_call.1} parent=11 // pred_fallthru
        _
      // Predicated region
      $region33: #{tpu_custom_call.1} parent=11 // pred_check
        %p404 = pneg %p262
      $region34: #{tpu_custom_call.1} parent=11 // pred_check_branch
        %406 = sbr.rel (%p404) target = $region36
      $region35: #{tpu_custom_call.1} parent=11 // pred_region
        _
      $region36: #{tpu_custom_call.1} parent=11 // pred_fallthru
        _
      // Predicated region
      $region37: #{tpu_custom_call.1} parent=11 // pred_check
        %p407 = pneg %p283
      $region38: #{tpu_custom_call.1} parent=11 // pred_check_branch
        %409 = sbr.rel (%p407) target = $region40
      $region39: #{tpu_custom_call.1} parent=11 // pred_region
        _
      $region40: #{tpu_custom_call.1} parent=11 // pred_fallthru
        _
      // Predicated region
      $region41: #{tpu_custom_call.1} parent=11 // pred_check
        %p410 = pneg %p304
      $region42: #{tpu_custom_call.1} parent=11 // pred_check_branch
        %412 = sbr.rel (%p410) target = $region44
      $region43: #{tpu_custom_call.1} parent=11 // pred_region
        _
      $region44: #{tpu_custom_call.1} parent=11 // pred_fallthru
        _
      // Predicated region
      $region45: #{tpu_custom_call.1} parent=11 // pred_check
        %p413 = pneg %p325
      $region46: #{tpu_custom_call.1} parent=11 // pred_check_branch
        %415 = sbr.rel (%p413) target = $region48
      $region47: #{tpu_custom_call.1} parent=11 // pred_region
        _
      $region48: #{tpu_custom_call.1} parent=11 // pred_fallthru
        _
      // Predicated region
      $region49: #{tpu_custom_call.1} parent=11 // pred_check
        %p416 = pneg %p346
      $region50: #{tpu_custom_call.1} parent=11 // pred_check_branch
        %418 = sbr.rel (%p416) target = $region52
      $region51: #{tpu_custom_call.1} parent=11 // pred_region
        _
      $region52: #{tpu_custom_call.1} parent=11 // pred_fallthru
        _
    $region12: #{tpu_custom_call.1} parent=5 // pred_fallthru
      _
    %p419 = scmp.lt.s32.totalorder %s20, 4
    // Predicated region
    $region53: #{tpu_custom_call.1} parent=5 // pred_check
      %p420 = pneg %p419
    $region54: #{tpu_custom_call.1} parent=5 // pred_check_branch
      %422 = sbr.rel (%p420) target = $region56
    $region55: #{tpu_custom_call.1} parent=5 // pred_region
      // Predicated region
      $region57: #{tpu_custom_call.1} parent=55 // pred_check
        %p423 = pneg %p52
      $region58: #{tpu_custom_call.1} parent=55 // pred_check_branch
        %425 = sbr.rel (%p423) target = $region60
      $region59: #{tpu_custom_call.1} parent=55 // pred_region
        %p426 = scmp.lt.s32.totalorder %s27, 1
        %s427 = scalar_select %p426, %s27, 1
        %s428 = smul.addr %s427, 32
        %s429 = smul.addr %s428, 8
        %s430 = scalar_lea.vmem %s0, %s429
      $region60: #{tpu_custom_call.1} parent=55 // pred_fallthru
        _
      // Predicated region
      $region61: #{tpu_custom_call.1} parent=55 // pred_check
        %p431 = pneg %p78
      $region62: #{tpu_custom_call.1} parent=55 // pred_check_branch
        %433 = sbr.rel (%p431) target = $region64
      $region63: #{tpu_custom_call.1} parent=55 // pred_region
        %p434 = scmp.lt.s32.totalorder %s27, 1
        %s435 = scalar_select %p434, %s27, 1
        %s436 = scalar_lea.vmem %s1, %s435
      $region64: #{tpu_custom_call.1} parent=55 // pred_fallthru
        _
      // Predicated region
      $region65: #{tpu_custom_call.1} parent=55 // pred_check
        %p437 = pneg %p104
      $region66: #{tpu_custom_call.1} parent=55 // pred_check_branch
        %439 = sbr.rel (%p437) target = $region68
      $region67: #{tpu_custom_call.1} parent=55 // pred_region
        %p440 = scmp.lt.s32.totalorder %s27, 1
        %s441 = scalar_select %p440, %s27, 1
        %s442 = scalar_lea.vmem %s2, %s441
      $region68: #{tpu_custom_call.1} parent=55 // pred_fallthru
        _
      // Predicated region
      $region69: #{tpu_custom_call.1} parent=55 // pred_check
        %p443 = pneg %p130
      $region70: #{tpu_custom_call.1} parent=55 // pred_check_branch
        %445 = sbr.rel (%p443) target = $region72
      $region71: #{tpu_custom_call.1} parent=55 // pred_region
        %p446 = scmp.lt.s32.totalorder %s27, 1
        %s447 = scalar_select %p446, %s27, 1
        %s448 = scalar_lea.vmem %s3, %s447
      $region72: #{tpu_custom_call.1} parent=55 // pred_fallthru
        _
    $region56: #{tpu_custom_call.1} parent=5 // pred_fallthru
      _
    %p449 = scmp.le.s32.totalorder 1, %s20
    %p450 = scmp.lt.s32.totalorder %s20, 5
    %p451 = pnand %p449, %p450
    %p452 = pneg %p451
    // Predicated region
    $region73: #{tpu_custom_call.1} parent=5 // pred_check
      _
    $region74: #{tpu_custom_call.1} parent=5 // pred_check_branch
      %454 = sbr.rel (%p451) target = $region76
    $region75: #{tpu_custom_call.1} parent=5 // pred_region
      %s455 = ssub.s32 %s20, 1
      %p456 = scmp.lt.s32.totalorder %s29, 1
      %s457 = scalar_select %p456, %s29, 1
      %s458 = smul.addr %s457, 32
      %s459 = smul.addr %s458, 8
      %s460 = scalar_lea.vmem %s0, %s459
      %p461 = pneg %p58
      %p462 = pneg %p55
      %p463 = scmp.lt.s32.totalorder %s29, 1
      %s464 = scalar_select %p463, %s29, 1
      %s465 = scalar_lea.vmem %s1, %s464
      %p466 = pneg %p84
      %p467 = pneg %p81
      %p468 = scmp.lt.s32.totalorder %s29, 1
      %s469 = scalar_select %p468, %s29, 1
      %s470 = scalar_lea.vmem %s2, %s469
      %p471 = pneg %p110
      %p472 = pneg %p107
      %p473 = scmp.lt.s32.totalorder %s29, 1
      %s474 = scalar_select %p473, %s29, 1
      %s475 = scalar_lea.vmem %s3, %s474
      %p476 = pneg %p136
      %p477 = pneg %p133
      %p478 = pneg %p157
      %p479 = pneg %p154
      %p480 = pneg %p178
      %p481 = pneg %p175
      %p482 = pneg %p199
      %p483 = pneg %p196
      %p484 = pneg %p220
      %p485 = pneg %p217
      %p486 = pneg %p241
      %p487 = pneg %p238
      %p488 = pneg %p262
      %p489 = pneg %p259
      %p490 = pneg %p283
      %p491 = pneg %p280
      %p492 = pneg %p304
      %p493 = pneg %p301
      %p494 = pneg %p325
      %p495 = pneg %p322
      %p496 = pneg %p346
      %p497 = pneg %p343
      %p498 = pneg %p374
      %p499 = pneg %p371
      %s500 = smul.u32 16, %s30
      %p501 = scmp.lt.s32.totalorder %s29, 1
      %s502 = scalar_select %p501, %s29, 1
      %p503 = scmp.lt.s32.totalorder %s500, 31
      %s504 = scalar_select %p503, %s500, 31
      %s505 = smul.addr %s502, 32
      %s506 = sadd.s32 %s504, %s505
      %s507 = smul.addr %s506, 8
      %s508 = scalar_lea.vmem %s14, %s507
      %p509 = scmp.lt.s32.totalorder %s29, 1
      %s510 = scalar_select %p509, %s29, 1
      %s511 = smul.addr %s510, 32
      %s512 = smul.addr %s511, 8
      %s513 = scalar_lea.vmem %s0, %s512
      %p514 = scmp.lt.s32.totalorder %s29, 1
      %s515 = scalar_select %p514, %s29, 1
      %s516 = scalar_lea.vmem %s1, %s515
      %p517 = scmp.lt.s32.totalorder %s29, 1
      %s518 = scalar_select %p517, %s29, 1
      %s519 = scalar_lea.vmem %s2, %s518
      %p520 = scmp.lt.s32.totalorder %s29, 1
      %s521 = scalar_select %p520, %s29, 1
      %s522 = scalar_lea.vmem %s3, %s521
      %s523 = smul.u32 16, %s30
      %p524 = scmp.lt.s32.totalorder %s29, 1
      %s525 = scalar_select %p524, %s29, 1
      %p526 = scmp.lt.s32.totalorder %s523, 31
      %s527 = scalar_select %p526, %s523, 31
      %s528 = smul.addr %s525, 32
      %s529 = sadd.s32 %s527, %s528
      %s530 = smul.addr %s529, 8
      %s531 = scalar_lea.vmem %s14, %s530
      %s532 = smul.u32 16, %s30
      %v534 = vld [vmem:[%s516] sm:$0x1]
      %v535 = vld [vmem:[%s519] sm:$0x1]
      %v536 = vld [vmem:[%s522] sm:$0x1]
      %p537 = scmp.eq.s32.totalorder %s30, 0
      // Predicated region
      $region77: #{tpu_custom_call.1} parent=75 // pred_check
        %p538 = pneg %p537
      $region78: #{tpu_custom_call.1} parent=75 // pred_check_branch
        %540 = sbr.rel (%p538) target = $region80
      $region79: #{tpu_custom_call.1} parent=75 // pred_region
        %v541 = vld [vmem:[%s513] sm:$0xff]
        %v542 = vld [vmem:[%s513 + $0x8] sm:$0xff]
        %v543 = vld [vmem:[%s513 + $0x10] sm:$0xff]
        %v544 = vld [vmem:[%s513 + $0x18] sm:$0xff]
        %v545 = vld [vmem:[%s513 + $0x20] sm:$0xff]
        %v546 = vld [vmem:[%s513 + $0x28] sm:$0xff]
        %v547 = vld [vmem:[%s513 + $0x30] sm:$0xff]
        %v548 = vld [vmem:[%s513 + $0x38] sm:$0xff]
        %v549 = vld [vmem:[%s513 + $0x40] sm:$0xff]
        %v550 = vld [vmem:[%s513 + $0x48] sm:$0xff]
        %v551 = vld [vmem:[%s513 + $0x50] sm:$0xff]
        %v552 = vld [vmem:[%s513 + $0x58] sm:$0xff]
        %v553 = vld [vmem:[%s513 + $0x60] sm:$0xff]
        %v554 = vld [vmem:[%s513 + $0x68] sm:$0xff]
        %v555 = vld [vmem:[%s513 + $0x70] sm:$0xff]
        %v556 = vld [vmem:[%s513 + $0x78] sm:$0xff]
        %v557 = vld [vmem:[%s513 + $0x80] sm:$0xff]
        %v558 = vld [vmem:[%s513 + $0x88] sm:$0xff]
        %v559 = vld [vmem:[%s513 + $0x90] sm:$0xff]
        %v560 = vld [vmem:[%s513 + $0x98] sm:$0xff]
        %v561 = vld [vmem:[%s513 + $0xa0] sm:$0xff]
        %v562 = vld [vmem:[%s513 + $0xa8] sm:$0xff]
        %v563 = vld [vmem:[%s513 + $0xb0] sm:$0xff]
        %v564 = vld [vmem:[%s513 + $0xb8] sm:$0xff]
        %v565 = vld [vmem:[%s513 + $0xc0] sm:$0xff]
        %v566 = vld [vmem:[%s513 + $0xc8] sm:$0xff]
        %v567 = vld [vmem:[%s513 + $0xd0] sm:$0xff]
        %v568 = vld [vmem:[%s513 + $0xd8] sm:$0xff]
        %v569 = vld [vmem:[%s513 + $0xe0] sm:$0xff]
        %v570 = vld [vmem:[%s513 + $0xe8] sm:$0xff]
        %v571 = vld [vmem:[%s513 + $0xf0] sm:$0xff]
        %v572 = vld [vmem:[%s513 + $0xf8] sm:$0xff]
        %vm573 = vcmask 261120
        %v574 = vsel %vm573, %v541, 0.0
        %575 = vadd.xlane.f32.xlu0 %v574
        %v576 = vpop.xlane.xlu0 %575
        %v577 = vsel %vm573, %v542, 0.0
        %578 = vadd.xlane.f32.xlu0 %v577
        %v579 = vpop.xlane.xlu0 %578
        %v580 = vsel %vm573, %v543, 0.0
        %581 = vadd.xlane.f32.xlu0 %v580
        %v582 = vpop.xlane.xlu0 %581
        %v583 = vsel %vm573, %v544, 0.0
        %584 = vadd.xlane.f32.xlu0 %v583
        %v585 = vpop.xlane.xlu0 %584
        %v586 = vsel %vm573, %v545, 0.0
        %587 = vadd.xlane.f32.xlu0 %v586
        %v588 = vpop.xlane.xlu0 %587
        %v589 = vsel %vm573, %v546, 0.0
        %590 = vadd.xlane.f32.xlu0 %v589
        %v591 = vpop.xlane.xlu0 %590
        %v592 = vsel %vm573, %v547, 0.0
        %593 = vadd.xlane.f32.xlu0 %v592
        %v594 = vpop.xlane.xlu0 %593
        %v595 = vsel %vm573, %v548, 0.0
        %596 = vadd.xlane.f32.xlu0 %v595
        %v597 = vpop.xlane.xlu0 %596
        %v598 = vsel %vm573, %v549, 0.0
        %599 = vadd.xlane.f32.xlu0 %v598
        %v600 = vpop.xlane.xlu0 %599
        %v601 = vsel %vm573, %v550, 0.0
        %602 = vadd.xlane.f32.xlu0 %v601
        %v603 = vpop.xlane.xlu0 %602
        %v604 = vsel %vm573, %v551, 0.0
        %605 = vadd.xlane.f32.xlu0 %v604
        %v606 = vpop.xlane.xlu0 %605
        %v607 = vsel %vm573, %v552, 0.0
        %608 = vadd.xlane.f32.xlu0 %v607
        %v609 = vpop.xlane.xlu0 %608
        %v610 = vsel %vm573, %v553, 0.0
        %611 = vadd.xlane.f32.xlu0 %v610
        %v612 = vpop.xlane.xlu0 %611
        %v613 = vsel %vm573, %v554, 0.0
        %614 = vadd.xlane.f32.xlu0 %v613
        %v615 = vpop.xlane.xlu0 %614
        %v616 = vsel %vm573, %v555, 0.0
        %617 = vadd.xlane.f32.xlu0 %v616
        %v618 = vpop.xlane.xlu0 %617
        %v619 = vsel %vm573, %v556, 0.0
        %620 = vadd.xlane.f32.xlu0 %v619
        %v621 = vpop.xlane.xlu0 %620
        %v622 = vsel %vm573, %v557, 0.0
        %623 = vadd.xlane.f32.xlu0 %v622
        %v624 = vpop.xlane.xlu0 %623
        %v625 = vsel %vm573, %v558, 0.0
        %626 = vadd.xlane.f32.xlu0 %v625
        %v627 = vpop.xlane.xlu0 %626
        %v628 = vsel %vm573, %v559, 0.0
        %629 = vadd.xlane.f32.xlu0 %v628
        %v630 = vpop.xlane.xlu0 %629
        %v631 = vsel %vm573, %v560, 0.0
        %632 = vadd.xlane.f32.xlu0 %v631
        %v633 = vpop.xlane.xlu0 %632
        %v634 = vsel %vm573, %v561, 0.0
        %635 = vadd.xlane.f32.xlu0 %v634
        %v636 = vpop.xlane.xlu0 %635
        %v637 = vsel %vm573, %v562, 0.0
        %638 = vadd.xlane.f32.xlu0 %v637
        %v639 = vpop.xlane.xlu0 %638
        %v640 = vsel %vm573, %v563, 0.0
        %641 = vadd.xlane.f32.xlu0 %v640
        %v642 = vpop.xlane.xlu0 %641
        %v643 = vsel %vm573, %v564, 0.0
        %644 = vadd.xlane.f32.xlu0 %v643
        %v645 = vpop.xlane.xlu0 %644
        %v646 = vsel %vm573, %v565, 0.0
        %647 = vadd.xlane.f32.xlu0 %v646
        %v648 = vpop.xlane.xlu0 %647
        %v649 = vsel %vm573, %v566, 0.0
        %650 = vadd.xlane.f32.xlu0 %v649
        %v651 = vpop.xlane.xlu0 %650
        %v652 = vsel %vm573, %v567, 0.0
        %653 = vadd.xlane.f32.xlu0 %v652
        %v654 = vpop.xlane.xlu0 %653
        %v655 = vsel %vm573, %v568, 0.0
        %656 = vadd.xlane.f32.xlu0 %v655
        %v657 = vpop.xlane.xlu0 %656
        %v658 = vsel %vm573, %v569, 0.0
        %659 = vadd.xlane.f32.xlu0 %v658
        %v660 = vpop.xlane.xlu0 %659
        %v661 = vsel %vm573, %v570, 0.0
        %662 = vadd.xlane.f32.xlu0 %v661
        %v663 = vpop.xlane.xlu0 %662
        %v664 = vsel %vm573, %v571, 0.0
        %665 = vadd.xlane.f32.xlu0 %v664
        %v666 = vpop.xlane.xlu0 %665
        %v667 = vsel %vm573, %v572, 0.0
        %668 = vadd.xlane.f32.xlu0 %v667
        %v669 = vpop.xlane.xlu0 %668
        %v670 = vrcp.pop 32.0
        %v671 = vmul.f32 %v576, %v670
        %v672 = vmul.f32 %v579, %v670
        %v673 = vmul.f32 %v582, %v670
        %v674 = vmul.f32 %v585, %v670
        %v675 = vmul.f32 %v588, %v670
        %v676 = vmul.f32 %v591, %v670
        %v677 = vmul.f32 %v594, %v670
        %v678 = vmul.f32 %v597, %v670
        %v679 = vmul.f32 %v600, %v670
        %v680 = vmul.f32 %v603, %v670
        %v681 = vmul.f32 %v606, %v670
        %v682 = vmul.f32 %v609, %v670
        %v683 = vmul.f32 %v612, %v670
        %v684 = vmul.f32 %v615, %v670
        %v685 = vmul.f32 %v618, %v670
        %v686 = vmul.f32 %v621, %v670
        %v687 = vmul.f32 %v624, %v670
        %v688 = vmul.f32 %v627, %v670
        %v689 = vmul.f32 %v630, %v670
        %v690 = vmul.f32 %v633, %v670
        %v691 = vmul.f32 %v636, %v670
        %v692 = vmul.f32 %v639, %v670
        %v693 = vmul.f32 %v642, %v670
        %v694 = vmul.f32 %v645, %v670
        %v695 = vmul.f32 %v648, %v670
        %v696 = vmul.f32 %v651, %v670
        %v697 = vmul.f32 %v654, %v670
        %v698 = vmul.f32 %v657, %v670
        %v699 = vmul.f32 %v660, %v670
        %v700 = vmul.f32 %v663, %v670
        %v701 = vmul.f32 %v666, %v670
        %v702 = vmul.f32 %v669, %v670
        %v703 = vsub.f32 %v541, %v671
        %v704 = vsub.f32 %v542, %v672
        %v705 = vsub.f32 %v543, %v673
        %v706 = vsub.f32 %v544, %v674
        %v707 = vsub.f32 %v545, %v675
        %v708 = vsub.f32 %v546, %v676
        %v709 = vsub.f32 %v547, %v677
        %v710 = vsub.f32 %v548, %v678
        %v711 = vsub.f32 %v549, %v679
        %v712 = vsub.f32 %v550, %v680
        %v713 = vsub.f32 %v551, %v681
        %v714 = vsub.f32 %v552, %v682
        %v715 = vsub.f32 %v553, %v683
        %v716 = vsub.f32 %v554, %v684
        %v717 = vsub.f32 %v555, %v685
        %v718 = vsub.f32 %v556, %v686
        %v719 = vsub.f32 %v557, %v687
        %v720 = vsub.f32 %v558, %v688
        %v721 = vsub.f32 %v559, %v689
        %v722 = vsub.f32 %v560, %v690
        %v723 = vsub.f32 %v561, %v691
        %v724 = vsub.f32 %v562, %v692
        %v725 = vsub.f32 %v563, %v693
        %v726 = vsub.f32 %v564, %v694
        %v727 = vsub.f32 %v565, %v695
        %v728 = vsub.f32 %v566, %v696
        %v729 = vsub.f32 %v567, %v697
        %v730 = vsub.f32 %v568, %v698
        %v731 = vsub.f32 %v569, %v699
        %v732 = vsub.f32 %v570, %v700
        %v733 = vsub.f32 %v571, %v701
        %v734 = vsub.f32 %v572, %v702
        %v735 = vmul.f32 %v703, %v703
        %v736 = vmul.f32 %v704, %v704
        %v737 = vmul.f32 %v705, %v705
        %v738 = vmul.f32 %v706, %v706
        %v739 = vmul.f32 %v707, %v707
        %v740 = vmul.f32 %v708, %v708
        %v741 = vmul.f32 %v709, %v709
        %v742 = vmul.f32 %v710, %v710
        %v743 = vmul.f32 %v711, %v711
        %v744 = vmul.f32 %v712, %v712
        %v745 = vmul.f32 %v713, %v713
        %v746 = vmul.f32 %v714, %v714
        %v747 = vmul.f32 %v715, %v715
        %v748 = vmul.f32 %v716, %v716
        %v749 = vmul.f32 %v717, %v717
        %v750 = vmul.f32 %v718, %v718
        %v751 = vmul.f32 %v719, %v719
        %v752 = vmul.f32 %v720, %v720
        %v753 = vmul.f32 %v721, %v721
        %v754 = vmul.f32 %v722, %v722
        %v755 = vmul.f32 %v723, %v723
        %v756 = vmul.f32 %v724, %v724
        %v757 = vmul.f32 %v725, %v725
        %v758 = vmul.f32 %v726, %v726
        %v759 = vmul.f32 %v727, %v727
        %v760 = vmul.f32 %v728, %v728
        %v761 = vmul.f32 %v729, %v729
        %v762 = vmul.f32 %v730, %v730
        %v763 = vmul.f32 %v731, %v731
        %v764 = vmul.f32 %v732, %v732
        %v765 = vmul.f32 %v733, %v733
        %v766 = vmul.f32 %v734, %v734
        %v767 = vsel %vm573, %v735, 0.0
        %768 = vadd.xlane.f32.xlu0 %v767
        %v769 = vpop.xlane.xlu0 %768
        %v770 = vsel %vm573, %v736, 0.0
        %771 = vadd.xlane.f32.xlu0 %v770
        %v772 = vpop.xlane.xlu0 %771
        %v773 = vsel %vm573, %v737, 0.0
        %774 = vadd.xlane.f32.xlu0 %v773
        %v775 = vpop.xlane.xlu0 %774
        %v776 = vsel %vm573, %v738, 0.0
        %777 = vadd.xlane.f32.xlu0 %v776
        %v778 = vpop.xlane.xlu0 %777
        %v779 = vsel %vm573, %v739, 0.0
        %780 = vadd.xlane.f32.xlu0 %v779
        %v781 = vpop.xlane.xlu0 %780
        %v782 = vsel %vm573, %v740, 0.0
        %783 = vadd.xlane.f32.xlu0 %v782
        %v784 = vpop.xlane.xlu0 %783
        %v785 = vsel %vm573, %v741, 0.0
        %786 = vadd.xlane.f32.xlu0 %v785
        %v787 = vpop.xlane.xlu0 %786
        %v788 = vsel %vm573, %v742, 0.0
        %789 = vadd.xlane.f32.xlu0 %v788
        %v790 = vpop.xlane.xlu0 %789
        %v791 = vsel %vm573, %v743, 0.0
        %792 = vadd.xlane.f32.xlu0 %v791
        %v793 = vpop.xlane.xlu0 %792
        %v794 = vsel %vm573, %v744, 0.0
        %795 = vadd.xlane.f32.xlu0 %v794
        %v796 = vpop.xlane.xlu0 %795
        %v797 = vsel %vm573, %v745, 0.0
        %798 = vadd.xlane.f32.xlu0 %v797
        %v799 = vpop.xlane.xlu0 %798
        %v800 = vsel %vm573, %v746, 0.0
        %801 = vadd.xlane.f32.xlu0 %v800
        %v802 = vpop.xlane.xlu0 %801
        %v803 = vsel %vm573, %v747, 0.0
        %804 = vadd.xlane.f32.xlu0 %v803
        %v805 = vpop.xlane.xlu0 %804
        %v806 = vsel %vm573, %v748, 0.0
        %807 = vadd.xlane.f32.xlu0 %v806
        %v808 = vpop.xlane.xlu0 %807
        %v809 = vsel %vm573, %v749, 0.0
        %810 = vadd.xlane.f32.xlu0 %v809
        %v811 = vpop.xlane.xlu0 %810
        %v812 = vsel %vm573, %v750, 0.0
        %813 = vadd.xlane.f32.xlu0 %v812
        %v814 = vpop.xlane.xlu0 %813
        %v815 = vsel %vm573, %v751, 0.0
        %816 = vadd.xlane.f32.xlu0 %v815
        %v817 = vpop.xlane.xlu0 %816
        %v818 = vsel %vm573, %v752, 0.0
        %819 = vadd.xlane.f32.xlu0 %v818
        %v820 = vpop.xlane.xlu0 %819
        %v821 = vsel %vm573, %v753, 0.0
        %822 = vadd.xlane.f32.xlu0 %v821
        %v823 = vpop.xlane.xlu0 %822
        %v824 = vsel %vm573, %v754, 0.0
        %825 = vadd.xlane.f32.xlu0 %v824
        %v826 = vpop.xlane.xlu0 %825
        %v827 = vsel %vm573, %v755, 0.0
        %828 = vadd.xlane.f32.xlu0 %v827
        %v829 = vpop.xlane.xlu0 %828
        %v830 = vsel %vm573, %v756, 0.0
        %831 = vadd.xlane.f32.xlu0 %v830
        %v832 = vpop.xlane.xlu0 %831
        %v833 = vsel %vm573, %v757, 0.0
        %834 = vadd.xlane.f32.xlu0 %v833
        %v835 = vpop.xlane.xlu0 %834
        %v836 = vsel %vm573, %v758, 0.0
        %837 = vadd.xlane.f32.xlu0 %v836
        %v838 = vpop.xlane.xlu0 %837
        %v839 = vsel %vm573, %v759, 0.0
        %840 = vadd.xlane.f32.xlu0 %v839
        %v841 = vpop.xlane.xlu0 %840
        %v842 = vsel %vm573, %v760, 0.0
        %843 = vadd.xlane.f32.xlu0 %v842
        %v844 = vpop.xlane.xlu0 %843
        %v845 = vsel %vm573, %v761, 0.0
        %846 = vadd.xlane.f32.xlu0 %v845
        %v847 = vpop.xlane.xlu0 %846
        %v848 = vsel %vm573, %v762, 0.0
        %849 = vadd.xlane.f32.xlu0 %v848
        %v850 = vpop.xlane.xlu0 %849
        %v851 = vsel %vm573, %v763, 0.0
        %852 = vadd.xlane.f32.xlu0 %v851
        %v853 = vpop.xlane.xlu0 %852
        %v854 = vsel %vm573, %v764, 0.0
        %855 = vadd.xlane.f32.xlu0 %v854
        %v856 = vpop.xlane.xlu0 %855
        %v857 = vsel %vm573, %v765, 0.0
        %858 = vadd.xlane.f32.xlu0 %v857
        %v859 = vpop.xlane.xlu0 %858
        %v860 = vsel %vm573, %v766, 0.0
        %861 = vadd.xlane.f32.xlu0 %v860
        %v862 = vpop.xlane.xlu0 %861
        %v863 = vmul.f32 %v769, %v670
        %v864 = vmul.f32 %v772, %v670
        %v865 = vmul.f32 %v775, %v670
        %v866 = vmul.f32 %v778, %v670
        %v867 = vmul.f32 %v781, %v670
        %v868 = vmul.f32 %v784, %v670
        %v869 = vmul.f32 %v787, %v670
        %v870 = vmul.f32 %v790, %v670
        %v871 = vmul.f32 %v793, %v670
        %v872 = vmul.f32 %v796, %v670
        %v873 = vmul.f32 %v799, %v670
        %v874 = vmul.f32 %v802, %v670
        %v875 = vmul.f32 %v805, %v670
        %v876 = vmul.f32 %v808, %v670
        %v877 = vmul.f32 %v811, %v670
        %v878 = vmul.f32 %v814, %v670
        %v879 = vmul.f32 %v817, %v670
        %v880 = vmul.f32 %v820, %v670
        %v881 = vmul.f32 %v823, %v670
        %v882 = vmul.f32 %v826, %v670
        %v883 = vmul.f32 %v829, %v670
        %v884 = vmul.f32 %v832, %v670
        %v885 = vmul.f32 %v835, %v670
        %v886 = vmul.f32 %v838, %v670
        %v887 = vmul.f32 %v841, %v670
        %v888 = vmul.f32 %v844, %v670
        %v889 = vmul.f32 %v847, %v670
        %v890 = vmul.f32 %v850, %v670
        %v891 = vmul.f32 %v853, %v670
        %v892 = vmul.f32 %v856, %v670
        %v893 = vmul.f32 %v859, %v670
        %v894 = vmul.f32 %v862, %v670
        %v895 = vadd.f32 %v534, 1.0
        %v896 = vadd.f32 %v863, 1e-05
        %v897 = vadd.f32 %v864, 1e-05
        %v898 = vadd.f32 %v865, 1e-05
        %v899 = vadd.f32 %v866, 1e-05
        %v900 = vadd.f32 %v867, 1e-05
        %v901 = vadd.f32 %v868, 1e-05
        %v902 = vadd.f32 %v869, 1e-05
        %v903 = vadd.f32 %v870, 1e-05
        %v904 = vadd.f32 %v871, 1e-05
        %v905 = vadd.f32 %v872, 1e-05
        %v906 = vadd.f32 %v873, 1e-05
        %v907 = vadd.f32 %v874, 1e-05
        %v908 = vadd.f32 %v875, 1e-05
        %v909 = vadd.f32 %v876, 1e-05
        %v910 = vadd.f32 %v877, 1e-05
        %v911 = vadd.f32 %v878, 1e-05
        %v912 = vadd.f32 %v879, 1e-05
        %v913 = vadd.f32 %v880, 1e-05
        %v914 = vadd.f32 %v881, 1e-05
        %v915 = vadd.f32 %v882, 1e-05
        %v916 = vadd.f32 %v883, 1e-05
        %v917 = vadd.f32 %v884, 1e-05
        %v918 = vadd.f32 %v885, 1e-05
        %v919 = vadd.f32 %v886, 1e-05
        %v920 = vadd.f32 %v887, 1e-05
        %v921 = vadd.f32 %v888, 1e-05
        %v922 = vadd.f32 %v889, 1e-05
        %v923 = vadd.f32 %v890, 1e-05
        %v924 = vadd.f32 %v891, 1e-05
        %v925 = vadd.f32 %v892, 1e-05
        %v926 = vadd.f32 %v893, 1e-05
        %v927 = vadd.f32 %v894, 1e-05
        %v928 = vrsqrt.pop %v896
        %v929 = vrsqrt.pop %v897
        %v930 = vrsqrt.pop %v898
        %v931 = vrsqrt.pop %v899
        %v932 = vrsqrt.pop %v900
        %v933 = vrsqrt.pop %v901
        %v934 = vrsqrt.pop %v902
        %v935 = vrsqrt.pop %v903
        %v936 = vrsqrt.pop %v904
        %v937 = vrsqrt.pop %v905
        %v938 = vrsqrt.pop %v906
        %v939 = vrsqrt.pop %v907
        %v940 = vrsqrt.pop %v908
        %v941 = vrsqrt.pop %v909
        %v942 = vrsqrt.pop %v910
        %v943 = vrsqrt.pop %v911
        %v944 = vrsqrt.pop %v912
        %v945 = vrsqrt.pop %v913
        %v946 = vrsqrt.pop %v914
        %v947 = vrsqrt.pop %v915
        %v948 = vrsqrt.pop %v916
        %v949 = vrsqrt.pop %v917
        %v950 = vrsqrt.pop %v918
        %v951 = vrsqrt.pop %v919
        %v952 = vrsqrt.pop %v920
        %v953 = vrsqrt.pop %v921
        %v954 = vrsqrt.pop %v922
        %v955 = vrsqrt.pop %v923
        %v956 = vrsqrt.pop %v924
        %v957 = vrsqrt.pop %v925
        %v958 = vrsqrt.pop %v926
        %v959 = vrsqrt.pop %v927
        %v960 = vmul.f32 %v703, %v928
        %v961 = vmul.f32 %v704, %v929
        %v962 = vmul.f32 %v705, %v930
        %v963 = vmul.f32 %v706, %v931
        %v964 = vmul.f32 %v707, %v932
        %v965 = vmul.f32 %v708, %v933
        %v966 = vmul.f32 %v709, %v934
        %v967 = vmul.f32 %v710, %v935
        %v968 = vmul.f32 %v711, %v936
        %v969 = vmul.f32 %v712, %v937
        %v970 = vmul.f32 %v713, %v938
        %v971 = vmul.f32 %v714, %v939
        %v972 = vmul.f32 %v715, %v940
        %v973 = vmul.f32 %v716, %v941
        %v974 = vmul.f32 %v717, %v942
        %v975 = vmul.f32 %v718, %v943
        %v976 = vmul.f32 %v719, %v944
        %v977 = vmul.f32 %v720, %v945
        %v978 = vmul.f32 %v721, %v946
        %v979 = vmul.f32 %v722, %v947
        %v980 = vmul.f32 %v723, %v948
        %v981 = vmul.f32 %v724, %v949
        %v982 = vmul.f32 %v725, %v950
        %v983 = vmul.f32 %v726, %v951
        %v984 = vmul.f32 %v727, %v952
        %v985 = vmul.f32 %v728, %v953
        %v986 = vmul.f32 %v729, %v954
        %v987 = vmul.f32 %v730, %v955
        %v988 = vmul.f32 %v731, %v956
        %v989 = vmul.f32 %v732, %v957
        %v990 = vmul.f32 %v733, %v958
        %v991 = vmul.f32 %v734, %v959
        %v993 = vlaneseq
        %v994 = vshrl.u32 %v993, 7
        %v995 = vsub.s32 0, %v994
        %v996 = vrot.slane %v895, %v995
        %v998 = vmul.f32 %v996, %v960
        %v999 = vmul.f32 %v996, %v961
        %v1000 = vmul.f32 %v996, %v962
        %v1001 = vmul.f32 %v996, %v963
        %v1002 = vmul.f32 %v996, %v964
        %v1003 = vmul.f32 %v996, %v965
        %v1004 = vmul.f32 %v996, %v966
        %v1005 = vmul.f32 %v996, %v967
        %v1006 = vmul.f32 %v996, %v968
        %v1007 = vmul.f32 %v996, %v969
        %v1008 = vmul.f32 %v996, %v970
        %v1009 = vmul.f32 %v996, %v971
        %v1010 = vmul.f32 %v996, %v972
        %v1011 = vmul.f32 %v996, %v973
        %v1012 = vmul.f32 %v996, %v974
        %v1013 = vmul.f32 %v996, %v975
        %v1014 = vmul.f32 %v996, %v976
        %v1015 = vmul.f32 %v996, %v977
        %v1016 = vmul.f32 %v996, %v978
        %v1017 = vmul.f32 %v996, %v979
        %v1018 = vmul.f32 %v996, %v980
        %v1019 = vmul.f32 %v996, %v981
        %v1020 = vmul.f32 %v996, %v982
        %v1021 = vmul.f32 %v996, %v983
        %v1022 = vmul.f32 %v996, %v984
        %v1023 = vmul.f32 %v996, %v985
        %v1024 = vmul.f32 %v996, %v986
        %v1025 = vmul.f32 %v996, %v987
        %v1026 = vmul.f32 %v996, %v988
        %v1027 = vmul.f32 %v996, %v989
        %v1028 = vmul.f32 %v996, %v990
        %v1029 = vmul.f32 %v996, %v991
        %v1031 = vlaneseq
        %v1032 = vshrl.u32 %v1031, 7
        %v1033 = vsub.s32 0, %v1032
        %v1034 = vrot.slane %v535, %v1033
        %v1036 = vadd.f32 %v998, %v1034
        %v1037 = vadd.f32 %v999, %v1034
        %v1038 = vadd.f32 %v1000, %v1034
        %v1039 = vadd.f32 %v1001, %v1034
        %v1040 = vadd.f32 %v1002, %v1034
        %v1041 = vadd.f32 %v1003, %v1034
        %v1042 = vadd.f32 %v1004, %v1034
        %v1043 = vadd.f32 %v1005, %v1034
        %v1044 = vadd.f32 %v1006, %v1034
        %v1045 = vadd.f32 %v1007, %v1034
        %v1046 = vadd.f32 %v1008, %v1034
        %v1047 = vadd.f32 %v1009, %v1034
        %v1048 = vadd.f32 %v1010, %v1034
        %v1049 = vadd.f32 %v1011, %v1034
        %v1050 = vadd.f32 %v1012, %v1034
        %v1051 = vadd.f32 %v1013, %v1034
        %v1052 = vadd.f32 %v1014, %v1034
        %v1053 = vadd.f32 %v1015, %v1034
        %v1054 = vadd.f32 %v1016, %v1034
        %v1055 = vadd.f32 %v1017, %v1034
        %v1056 = vadd.f32 %v1018, %v1034
        %v1057 = vadd.f32 %v1019, %v1034
        %v1058 = vadd.f32 %v1020, %v1034
        %v1059 = vadd.f32 %v1021, %v1034
        %v1060 = vadd.f32 %v1022, %v1034
        %v1061 = vadd.f32 %v1023, %v1034
        %v1062 = vadd.f32 %v1024, %v1034
        %v1063 = vadd.f32 %v1025, %v1034
        %v1064 = vadd.f32 %v1026, %v1034
        %v1065 = vadd.f32 %v1027, %v1034
        %v1066 = vadd.f32 %v1028, %v1034
        %v1067 = vadd.f32 %v1029, %v1034
        %v1068 = vpack.c.bf16 %v1037, %v1036
        %v1069 = vpack.c.bf16 %v1039, %v1038
        %v1070 = vpack.c.bf16 %v1041, %v1040
        %v1071 = vpack.c.bf16 %v1043, %v1042
        %v1072 = vpack.c.bf16 %v1045, %v1044
        %v1073 = vpack.c.bf16 %v1047, %v1046
        %v1074 = vpack.c.bf16 %v1049, %v1048
        %v1075 = vpack.c.bf16 %v1051, %v1050
        %v1076 = vpack.c.bf16 %v1053, %v1052
        %v1077 = vpack.c.bf16 %v1055, %v1054
        %v1078 = vpack.c.bf16 %v1057, %v1056
        %v1079 = vpack.c.bf16 %v1059, %v1058
        %v1080 = vpack.c.bf16 %v1061, %v1060
        %v1081 = vpack.c.bf16 %v1063, %v1062
        %v1082 = vpack.c.bf16 %v1065, %v1064
        %v1083 = vpack.c.bf16 %v1067, %v1066
        %v1084 = vld [vmem:[%s6] sm:$0xf]
        %v1085 = vld [vmem:[%s6 + $0x4] sm:$0xf]
        %v1086 = vld [vmem:[%s6 + $0x8] sm:$0xf]
        %v1087 = vld [vmem:[%s6 + $0xc] sm:$0xf]
        %v1088 = vld [vmem:[%s7] sm:$0x1]
        %v1090 = vlaneseq
        %v1091 = vshrl.u32 %v1090, 7
        %v1092 = vsub.s32 0, %v1091
        %v1093 = vrot.slane %v1088, %v1092
        %v1099 = vunpack.c.l.b16 %v1084
        %v1100 = vunpack.c.l.b16 %v1085
        %v1101 = vunpack.c.l.b16 %v1086
        %v1102 = vunpack.c.l.b16 %v1087
        %v1103 = vpack.c.b16 %v1100, %v1099
        %v1104 = vpack.c.b16 %v1102, %v1101
        %v1108 = vsel %vm573, %v1068, 0
        %v1111 = vsel %vm573, %v1069, 0
        %v1114 = vsel %vm573, %v1070, 0
        %v1117 = vsel %vm573, %v1071, 0
        %v1120 = vsel %vm573, %v1072, 0
        %v1123 = vsel %vm573, %v1073, 0
        %v1126 = vsel %vm573, %v1074, 0
        %v1129 = vsel %vm573, %v1075, 0
        %v1132 = vsel %vm573, %v1076, 0
        %v1135 = vsel %vm573, %v1077, 0
        %v1138 = vsel %vm573, %v1078, 0
        %v1141 = vsel %vm573, %v1079, 0
        %v1144 = vsel %vm573, %v1080, 0
        %v1147 = vsel %vm573, %v1081, 0
        %v1150 = vsel %vm573, %v1082, 0
        %v1153 = vsel %vm573, %v1083, 0
        %1155 = vmatprep.subr.bf16.mxu0 0
        %1156 = vmatpush1.bf16.msra.mxu0 %v1103
        %1157 = vmatprep.subr.bf16.mxu0 0
        %1158 = vmatpush1.bf16.msra.mxu0 %v1104
        %1159 = vmatprep.subr.bf16.mxu0 0
        %1160 = vmatpush1.bf16.msra.mxu0 0
        %1161 = vmatprep.subr.bf16.mxu0 0
        %1162 = vmatpush1.bf16.msra.mxu0 0
        %1163 = vmatprep.subr.bf16.mxu0 0
        %1164 = vmatpush1.bf16.msra.mxu0 0
        %1165 = vmatprep.subr.bf16.mxu0 0
        %1166 = vmatpush1.bf16.msra.mxu0 0
        %1167 = vmatprep.subr.bf16.mxu0 0
        %1168 = vmatpush1.bf16.msra.mxu0 0
        %1169 = vmatprep.subr.bf16.mxu0 0
        %1170 = vmatpush1.bf16.msra.mxu0 0
        %1171 = vmatprep.subr.bf16.mxu0 0
        %1172 = vmatpush1.bf16.msra.mxu0 0
        %1173 = vmatprep.subr.bf16.mxu0 0
        %1174 = vmatpush1.bf16.msra.mxu0 0
        %1175 = vmatprep.subr.bf16.mxu0 0
        %1176 = vmatpush1.bf16.msra.mxu0 0
        %1177 = vmatprep.subr.bf16.mxu0 0
        %1178 = vmatpush1.bf16.msra.mxu0 0
        %1179 = vmatprep.subr.bf16.mxu0 0
        %1180 = vmatpush1.bf16.msra.mxu0 0
        %1181 = vmatprep.subr.bf16.mxu0 0
        %1182 = vmatpush1.bf16.msra.mxu0 0
        %1183 = vmatprep.subr.bf16.mxu0 0
        %1184 = vmatpush1.bf16.msra.mxu0 0
        %1185 = vmatprep.subr.bf16.mxu0 0
        %1186 = vmatpush1.bf16.msra.mxu0 0
        %1187 = vmatprep.mubr.bf16.mxu0 0
        %1188 = vmatmul.mubr.bf16.gmra.mrb[0].mxu0 %v1108
        %v1189 = vpop.f32.mrb[0].mxu0
        %v1190 = vadd.f32 %v1093, %v1189
        %v1191 = vpop.f32.mrb[0].mxu0
        %v1192 = vpop.f32.mrb[0].mxu0
        %v1193 = vadd.f32 %v1093, %v1192
        %v1194 = vpop.f32.mrb[0].mxu0
        %1195 = vmatprep.mubr.bf16.mxu0 0
        %1196 = vmatmul.mubr.bf16.gmra.mrb[0].mxu0 %v1111
        %v1197 = vpop.f32.mrb[0].mxu0
        %v1198 = vadd.f32 %v1093, %v1197
        %v1199 = vpop.f32.mrb[0].mxu0
        %v1200 = vpop.f32.mrb[0].mxu0
        %v1201 = vadd.f32 %v1093, %v1200
        %v1202 = vpop.f32.mrb[0].mxu0
        %1203 = vmatprep.mubr.bf16.mxu0 0
        %1204 = vmatmul.mubr.bf16.gmra.mrb[0].mxu0 %v1114
        %v1205 = vpop.f32.mrb[0].mxu0
        %v1206 = vadd.f32 %v1093, %v1205
        %v1207 = vpop.f32.mrb[0].mxu0
        %v1208 = vpop.f32.mrb[0].mxu0
        %v1209 = vadd.f32 %v1093, %v1208
        %v1210 = vpop.f32.mrb[0].mxu0
        %1211 = vmatprep.mubr.bf16.mxu0 0
        %1212 = vmatmul.mubr.bf16.gmra.mrb[0].mxu0 %v1117
        %v1213 = vpop.f32.mrb[0].mxu0
        %v1214 = vadd.f32 %v1093, %v1213
        %v1215 = vpop.f32.mrb[0].mxu0
        %v1216 = vpop.f32.mrb[0].mxu0
        %v1217 = vadd.f32 %v1093, %v1216
        %v1218 = vpop.f32.mrb[0].mxu0
        %1219 = vmatprep.mubr.bf16.mxu0 0
        %1220 = vmatmul.mubr.bf16.gmra.mrb[0].mxu0 %v1120
        %v1221 = vpop.f32.mrb[0].mxu0
        %v1222 = vadd.f32 %v1093, %v1221
        %v1223 = vpop.f32.mrb[0].mxu0
        %v1224 = vpop.f32.mrb[0].mxu0
        %v1225 = vadd.f32 %v1093, %v1224
        %v1226 = vpop.f32.mrb[0].mxu0
        %1227 = vmatprep.mubr.bf16.mxu0 0
        %1228 = vmatmul.mubr.bf16.gmra.mrb[0].mxu0 %v1123
        %v1229 = vpop.f32.mrb[0].mxu0
        %v1230 = vadd.f32 %v1093, %v1229
        %v1231 = vpop.f32.mrb[0].mxu0
        %v1232 = vpop.f32.mrb[0].mxu0
        %v1233 = vadd.f32 %v1093, %v1232
        %v1234 = vpop.f32.mrb[0].mxu0
        %1235 = vmatprep.mubr.bf16.mxu0 0
        %1236 = vmatmul.mubr.bf16.gmra.mrb[0].mxu0 %v1126
        %v1237 = vpop.f32.mrb[0].mxu0
        %v1238 = vadd.f32 %v1093, %v1237
        %v1239 = vpop.f32.mrb[0].mxu0
        %v1240 = vpop.f32.mrb[0].mxu0
        %v1241 = vadd.f32 %v1093, %v1240
        %v1242 = vpop.f32.mrb[0].mxu0
        %1243 = vmatprep.mubr.bf16.mxu0 0
        %1244 = vmatmul.mubr.bf16.gmra.mrb[0].mxu0 %v1129
        %v1245 = vpop.f32.mrb[0].mxu0
        %v1246 = vadd.f32 %v1093, %v1245
        %v1247 = vpop.f32.mrb[0].mxu0
        %v1248 = vpop.f32.mrb[0].mxu0
        %v1249 = vadd.f32 %v1093, %v1248
        %v1250 = vpop.f32.mrb[0].mxu0
        %1251 = vmatprep.mubr.bf16.mxu0 0
        %1252 = vmatmul.mubr.bf16.gmra.mrb[0].mxu0 %v1132
        %v1253 = vpop.f32.mrb[0].mxu0
        %v1254 = vadd.f32 %v1093, %v1253
        %v1255 = vpop.f32.mrb[0].mxu0
        %v1256 = vpop.f32.mrb[0].mxu0
        %v1257 = vadd.f32 %v1093, %v1256
        %v1258 = vpop.f32.mrb[0].mxu0
        %1259 = vmatprep.mubr.bf16.mxu0 0
        %1260 = vmatmul.mubr.bf16.gmra.mrb[0].mxu0 %v1135
        %v1261 = vpop.f32.mrb[0].mxu0
        %v1262 = vadd.f32 %v1093, %v1261
        %v1263 = vpop.f32.mrb[0].mxu0
        %v1264 = vpop.f32.mrb[0].mxu0
        %v1265 = vadd.f32 %v1093, %v1264
        %v1266 = vpop.f32.mrb[0].mxu0
        %1267 = vmatprep.mubr.bf16.mxu0 0
        %1268 = vmatmul.mubr.bf16.gmra.mrb[0].mxu0 %v1138
        %v1269 = vpop.f32.mrb[0].mxu0
        %v1270 = vadd.f32 %v1093, %v1269
        %v1271 = vpop.f32.mrb[0].mxu0
        %v1272 = vpop.f32.mrb[0].mxu0
        %v1273 = vadd.f32 %v1093, %v1272
        %v1274 = vpop.f32.mrb[0].mxu0
        %1275 = vmatprep.mubr.bf16.mxu0 0
        %1276 = vmatmul.mubr.bf16.gmra.mrb[0].mxu0 %v1141
        %v1277 = vpop.f32.mrb[0].mxu0
        %v1278 = vadd.f32 %v1093, %v1277
        %v1279 = vpop.f32.mrb[0].mxu0
        %v1280 = vpop.f32.mrb[0].mxu0
        %v1281 = vadd.f32 %v1093, %v1280
        %v1282 = vpop.f32.mrb[0].mxu0
        %1283 = vmatprep.mubr.bf16.mxu0 0
        %1284 = vmatmul.mubr.bf16.gmra.mrb[0].mxu0 %v1144
        %v1285 = vpop.f32.mrb[0].mxu0
        %v1286 = vadd.f32 %v1093, %v1285
        %v1287 = vpop.f32.mrb[0].mxu0
        %v1288 = vpop.f32.mrb[0].mxu0
        %v1289 = vadd.f32 %v1093, %v1288
        %v1290 = vpop.f32.mrb[0].mxu0
        %1291 = vmatprep.mubr.bf16.mxu0 0
        %1292 = vmatmul.mubr.bf16.gmra.mrb[0].mxu0 %v1147
        %v1293 = vpop.f32.mrb[0].mxu0
        %v1294 = vadd.f32 %v1093, %v1293
        %v1295 = vpop.f32.mrb[0].mxu0
        %v1296 = vpop.f32.mrb[0].mxu0
        %v1297 = vadd.f32 %v1093, %v1296
        %v1298 = vpop.f32.mrb[0].mxu0
        %1299 = vmatprep.mubr.bf16.mxu0 0
        %1300 = vmatmul.mubr.bf16.gmra.mrb[0].mxu0 %v1150
        %v1301 = vpop.f32.mrb[0].mxu0
        %v1302 = vadd.f32 %v1093, %v1301
        %v1303 = vpop.f32.mrb[0].mxu0
        %v1304 = vpop.f32.mrb[0].mxu0
        %v1305 = vadd.f32 %v1093, %v1304
        %v1306 = vpop.f32.mrb[0].mxu0
        %1307 = vmatprep.mubr.bf16.mxu0 0
        %1308 = vmatmul.mubr.bf16.gmra.mrb[0].mxu0 %v1153
        %v1309 = vpop.f32.mrb[0].mxu0
        %v1310 = vadd.f32 %v1093, %v1309
        %v1311 = vpop.f32.mrb[0].mxu0
        %v1312 = vpop.f32.mrb[0].mxu0
        %v1313 = vadd.f32 %v1093, %v1312
        %v1314 = vpop.f32.mrb[0].mxu0
        %1315 = vdwg.mxu0
        %v1316 = vpack.c.bf16 %v1193, %v1190
        %v1317 = vpack.c.bf16 %v1201, %v1198
        %v1318 = vpack.c.bf16 %v1209, %v1206
        %v1319 = vpack.c.bf16 %v1217, %v1214
        %v1320 = vpack.c.bf16 %v1225, %v1222
        %v1321 = vpack.c.bf16 %v1233, %v1230
        %v1322 = vpack.c.bf16 %v1241, %v1238
        %v1323 = vpack.c.bf16 %v1249, %v1246
        %v1324 = vpack.c.bf16 %v1257, %v1254
        %v1325 = vpack.c.bf16 %v1265, %v1262
        %v1326 = vpack.c.bf16 %v1273, %v1270
        %v1327 = vpack.c.bf16 %v1281, %v1278
        %v1328 = vpack.c.bf16 %v1289, %v1286
        %v1329 = vpack.c.bf16 %v1297, %v1294
        %v1330 = vpack.c.bf16 %v1305, %v1302
        %v1331 = vpack.c.bf16 %v1313, %v1310
        %vm1332 = vcmask 64512
        %1333 = vst.msk [vmem:[#allocation2] sm:$0xff] %vm1332, %v1316
        %1334 = vst.msk [vmem:[#allocation2 + $0x8] sm:$0xff] %vm1332, %v1317
        %1335 = vst.msk [vmem:[#allocation2 + $0x10] sm:$0xff] %vm1332, %v1318
        %1336 = vst.msk [vmem:[#allocation2 + $0x18] sm:$0xff] %vm1332, %v1319
        %1337 = vst.msk [vmem:[#allocation2 + $0x20] sm:$0xff] %vm1332, %v1320
        %1338 = vst.msk [vmem:[#allocation2 + $0x28] sm:$0xff] %vm1332, %v1321
        %1339 = vst.msk [vmem:[#allocation2 + $0x30] sm:$0xff] %vm1332, %v1322
        %1340 = vst.msk [vmem:[#allocation2 + $0x38] sm:$0xff] %vm1332, %v1323
        %1341 = vst.msk [vmem:[#allocation2 + $0x40] sm:$0xff] %vm1332, %v1324
        %1342 = vst.msk [vmem:[#allocation2 + $0x48] sm:$0xff] %vm1332, %v1325
        %1343 = vst.msk [vmem:[#allocation2 + $0x50] sm:$0xff] %vm1332, %v1326
        %1344 = vst.msk [vmem:[#allocation2 + $0x58] sm:$0xff] %vm1332, %v1327
        %1345 = vst.msk [vmem:[#allocation2 + $0x60] sm:$0xff] %vm1332, %v1328
        %1346 = vst.msk [vmem:[#allocation2 + $0x68] sm:$0xff] %vm1332, %v1329
        %1347 = vst.msk [vmem:[#allocation2 + $0x70] sm:$0xff] %vm1332, %v1330
        %1348 = vst.msk [vmem:[#allocation2 + $0x78] sm:$0xff] %vm1332, %v1331
        %1365 = vrot.lane.b32.xlu0 %v1316, 96
        %v1366 = vpop.permute.xlu0 %1365
        %1367 = vrot.lane.b32.xlu0 %v1317, 96
        %v1368 = vpop.permute.xlu0 %1367
        %1369 = vrot.lane.b32.xlu0 %v1318, 96
        %v1370 = vpop.permute.xlu0 %1369
        %1371 = vrot.lane.b32.xlu0 %v1319, 96
        %v1372 = vpop.permute.xlu0 %1371
        %1373 = vrot.lane.b32.xlu0 %v1320, 96
        %v1374 = vpop.permute.xlu0 %1373
        %1375 = vrot.lane.b32.xlu0 %v1321, 96
        %v1376 = vpop.permute.xlu0 %1375
        %1377 = vrot.lane.b32.xlu0 %v1322, 96
        %v1378 = vpop.permute.xlu0 %1377
        %1379 = vrot.lane.b32.xlu0 %v1323, 96
        %v1380 = vpop.permute.xlu0 %1379
        %1381 = vrot.lane.b32.xlu0 %v1324, 96
        %v1382 = vpop.permute.xlu0 %1381
        %1383 = vrot.lane.b32.xlu0 %v1325, 96
        %v1384 = vpop.permute.xlu0 %1383
        %1385 = vrot.lane.b32.xlu0 %v1326, 96
        %v1386 = vpop.permute.xlu0 %1385
        %1387 = vrot.lane.b32.xlu0 %v1327, 96
        %v1388 = vpop.permute.xlu0 %1387
        %1389 = vrot.lane.b32.xlu0 %v1328, 96
        %v1390 = vpop.permute.xlu0 %1389
        %1391 = vrot.lane.b32.xlu0 %v1329, 96
        %v1392 = vpop.permute.xlu0 %1391
        %1393 = vrot.lane.b32.xlu0 %v1330, 96
        %v1394 = vpop.permute.xlu0 %1393
        %1395 = vrot.lane.b32.xlu0 %v1331, 96
        %v1396 = vpop.permute.xlu0 %1395
        %1413 = vst.msk [vmem:[#allocation3] sm:$0xff] %vm1332, %v1366
        %1414 = vst.msk [vmem:[#allocation3 + $0x8] sm:$0xff] %vm1332, %v1368
        %1415 = vst.msk [vmem:[#allocation3 + $0x10] sm:$0xff] %vm1332, %v1370
        %1416 = vst.msk [vmem:[#allocation3 + $0x18] sm:$0xff] %vm1332, %v1372
        %1417 = vst.msk [vmem:[#allocation3 + $0x20] sm:$0xff] %vm1332, %v1374
        %1418 = vst.msk [vmem:[#allocation3 + $0x28] sm:$0xff] %vm1332, %v1376
        %1419 = vst.msk [vmem:[#allocation3 + $0x30] sm:$0xff] %vm1332, %v1378
        %1420 = vst.msk [vmem:[#allocation3 + $0x38] sm:$0xff] %vm1332, %v1380
        %1421 = vst.msk [vmem:[#allocation3 + $0x40] sm:$0xff] %vm1332, %v1382
        %1422 = vst.msk [vmem:[#allocation3 + $0x48] sm:$0xff] %vm1332, %v1384
        %1423 = vst.msk [vmem:[#allocation3 + $0x50] sm:$0xff] %vm1332, %v1386
        %1424 = vst.msk [vmem:[#allocation3 + $0x58] sm:$0xff] %vm1332, %v1388
        %1425 = vst.msk [vmem:[#allocation3 + $0x60] sm:$0xff] %vm1332, %v1390
        %1426 = vst.msk [vmem:[#allocation3 + $0x68] sm:$0xff] %vm1332, %v1392
        %1427 = vst.msk [vmem:[#allocation3 + $0x70] sm:$0xff] %vm1332, %v1394
        %1428 = vst.msk [vmem:[#allocation3 + $0x78] sm:$0xff] %vm1332, %v1396
        %1429 = vrot.lane.b32.xlu0 %v1316, 120
        %v1430 = vpop.permute.xlu0 %1429
        %1431 = vrot.lane.b32.xlu0 %v1317, 120
        %v1432 = vpop.permute.xlu0 %1431
        %1433 = vrot.lane.b32.xlu0 %v1318, 120
        %v1434 = vpop.permute.xlu0 %1433
        %1435 = vrot.lane.b32.xlu0 %v1319, 120
        %v1436 = vpop.permute.xlu0 %1435
        %1437 = vrot.lane.b32.xlu0 %v1320, 120
        %v1438 = vpop.permute.xlu0 %1437
        %1439 = vrot.lane.b32.xlu0 %v1321, 120
        %v1440 = vpop.permute.xlu0 %1439
        %1441 = vrot.lane.b32.xlu0 %v1322, 120
        %v1442 = vpop.permute.xlu0 %1441
        %1443 = vrot.lane.b32.xlu0 %v1323, 120
        %v1444 = vpop.permute.xlu0 %1443
        %1445 = vrot.lane.b32.xlu0 %v1324, 120
        %v1446 = vpop.permute.xlu0 %1445
        %1447 = vrot.lane.b32.xlu0 %v1325, 120
        %v1448 = vpop.permute.xlu0 %1447
        %1449 = vrot.lane.b32.xlu0 %v1326, 120
        %v1450 = vpop.permute.xlu0 %1449
        %1451 = vrot.lane.b32.xlu0 %v1327, 120
        %v1452 = vpop.permute.xlu0 %1451
        %1453 = vrot.lane.b32.xlu0 %v1328, 120
        %v1454 = vpop.permute.xlu0 %1453
        %1455 = vrot.lane.b32.xlu0 %v1329, 120
        %v1456 = vpop.permute.xlu0 %1455
        %1457 = vrot.lane.b32.xlu0 %v1330, 120
        %v1458 = vpop.permute.xlu0 %1457
        %1459 = vrot.lane.b32.xlu0 %v1331, 120
        %v1460 = vpop.permute.xlu0 %1459
        %s1477 = scalar_lea.vmem [#allocation2], 128
        %1478 = vst.msk [vmem:[%s1477] sm:$0xff] %vm1332, %v1430
        %1479 = vst.msk [vmem:[%s1477 + $0x8] sm:$0xff] %vm1332, %v1432
        %1480 = vst.msk [vmem:[%s1477 + $0x10] sm:$0xff] %vm1332, %v1434
        %1481 = vst.msk [vmem:[%s1477 + $0x18] sm:$0xff] %vm1332, %v1436
        %1482 = vst.msk [vmem:[%s1477 + $0x20] sm:$0xff] %vm1332, %v1438
        %1483 = vst.msk [vmem:[%s1477 + $0x28] sm:$0xff] %vm1332, %v1440
        %1484 = vst.msk [vmem:[%s1477 + $0x30] sm:$0xff] %vm1332, %v1442
        %1485 = vst.msk [vmem:[%s1477 + $0x38] sm:$0xff] %vm1332, %v1444
        %1486 = vst.msk [vmem:[%s1477 + $0x40] sm:$0xff] %vm1332, %v1446
        %1487 = vst.msk [vmem:[%s1477 + $0x48] sm:$0xff] %vm1332, %v1448
        %1488 = vst.msk [vmem:[%s1477 + $0x50] sm:$0xff] %vm1332, %v1450
        %1489 = vst.msk [vmem:[%s1477 + $0x58] sm:$0xff] %vm1332, %v1452
        %1490 = vst.msk [vmem:[%s1477 + $0x60] sm:$0xff] %vm1332, %v1454
        %1491 = vst.msk [vmem:[%s1477 + $0x68] sm:$0xff] %vm1332, %v1456
        %1492 = vst.msk [vmem:[%s1477 + $0x70] sm:$0xff] %vm1332, %v1458
        %1493 = vst.msk [vmem:[%s1477 + $0x78] sm:$0xff] %vm1332, %v1460
        %1494 = vrot.lane.b32.xlu0 %v1316, 88
        %v1495 = vpop.permute.xlu0 %1494
        %1496 = vrot.lane.b32.xlu0 %v1317, 88
        %v1497 = vpop.permute.xlu0 %1496
        %1498 = vrot.lane.b32.xlu0 %v1318, 88
        %v1499 = vpop.permute.xlu0 %1498
        %1500 = vrot.lane.b32.xlu0 %v1319, 88
        %v1501 = vpop.permute.xlu0 %1500
        %1502 = vrot.lane.b32.xlu0 %v1320, 88
        %v1503 = vpop.permute.xlu0 %1502
        %1504 = vrot.lane.b32.xlu0 %v1321, 88
        %v1505 = vpop.permute.xlu0 %1504
        %1506 = vrot.lane.b32.xlu0 %v1322, 88
        %v1507 = vpop.permute.xlu0 %1506
        %1508 = vrot.lane.b32.xlu0 %v1323, 88
        %v1509 = vpop.permute.xlu0 %1508
        %1510 = vrot.lane.b32.xlu0 %v1324, 88
        %v1511 = vpop.permute.xlu0 %1510
        %1512 = vrot.lane.b32.xlu0 %v1325, 88
        %v1513 = vpop.permute.xlu0 %1512
        %1514 = vrot.lane.b32.xlu0 %v1326, 88
        %v1515 = vpop.permute.xlu0 %1514
        %1516 = vrot.lane.b32.xlu0 %v1327, 88
        %v1517 = vpop.permute.xlu0 %1516
        %1518 = vrot.lane.b32.xlu0 %v1328, 88
        %v1519 = vpop.permute.xlu0 %1518
        %1520 = vrot.lane.b32.xlu0 %v1329, 88
        %v1521 = vpop.permute.xlu0 %1520
        %1522 = vrot.lane.b32.xlu0 %v1330, 88
        %v1523 = vpop.permute.xlu0 %1522
        %1524 = vrot.lane.b32.xlu0 %v1331, 88
        %v1525 = vpop.permute.xlu0 %1524
        %s1542 = scalar_lea.vmem [#allocation3], 128
        %1543 = vst.msk [vmem:[%s1542] sm:$0xff] %vm1332, %v1495
        %1544 = vst.msk [vmem:[%s1542 + $0x8] sm:$0xff] %vm1332, %v1497
        %1545 = vst.msk [vmem:[%s1542 + $0x10] sm:$0xff] %vm1332, %v1499
        %1546 = vst.msk [vmem:[%s1542 + $0x18] sm:$0xff] %vm1332, %v1501
        %1547 = vst.msk [vmem:[%s1542 + $0x20] sm:$0xff] %vm1332, %v1503
        %1548 = vst.msk [vmem:[%s1542 + $0x28] sm:$0xff] %vm1332, %v1505
        %1549 = vst.msk [vmem:[%s1542 + $0x30] sm:$0xff] %vm1332, %v1507
        %1550 = vst.msk [vmem:[%s1542 + $0x38] sm:$0xff] %vm1332, %v1509
        %1551 = vst.msk [vmem:[%s1542 + $0x40] sm:$0xff] %vm1332, %v1511
        %1552 = vst.msk [vmem:[%s1542 + $0x48] sm:$0xff] %vm1332, %v1513
        %1553 = vst.msk [vmem:[%s1542 + $0x50] sm:$0xff] %vm1332, %v1515
        %1554 = vst.msk [vmem:[%s1542 + $0x58] sm:$0xff] %vm1332, %v1517
        %1555 = vst.msk [vmem:[%s1542 + $0x60] sm:$0xff] %vm1332, %v1519
        %1556 = vst.msk [vmem:[%s1542 + $0x68] sm:$0xff] %vm1332, %v1521
        %1557 = vst.msk [vmem:[%s1542 + $0x70] sm:$0xff] %vm1332, %v1523
        %1558 = vst.msk [vmem:[%s1542 + $0x78] sm:$0xff] %vm1332, %v1525
        %1559 = vrot.lane.b32.xlu0 %v1316, 112
        %v1560 = vpop.permute.xlu0 %1559
        %1561 = vrot.lane.b32.xlu0 %v1317, 112
        %v1562 = vpop.permute.xlu0 %1561
        %1563 = vrot.lane.b32.xlu0 %v1318, 112
        %v1564 = vpop.permute.xlu0 %1563
        %1565 = vrot.lane.b32.xlu0 %v1319, 112
        %v1566 = vpop.permute.xlu0 %1565
        %1567 = vrot.lane.b32.xlu0 %v1320, 112
        %v1568 = vpop.permute.xlu0 %1567
        %1569 = vrot.lane.b32.xlu0 %v1321, 112
        %v1570 = vpop.permute.xlu0 %1569
        %1571 = vrot.lane.b32.xlu0 %v1322, 112
        %v1572 = vpop.permute.xlu0 %1571
        %1573 = vrot.lane.b32.xlu0 %v1323, 112
        %v1574 = vpop.permute.xlu0 %1573
        %1575 = vrot.lane.b32.xlu0 %v1324, 112
        %v1576 = vpop.permute.xlu0 %1575
        %1577 = vrot.lane.b32.xlu0 %v1325, 112
        %v1578 = vpop.permute.xlu0 %1577
        %1579 = vrot.lane.b32.xlu0 %v1326, 112
        %v1580 = vpop.permute.xlu0 %1579
        %1581 = vrot.lane.b32.xlu0 %v1327, 112
        %v1582 = vpop.permute.xlu0 %1581
        %1583 = vrot.lane.b32.xlu0 %v1328, 112
        %v1584 = vpop.permute.xlu0 %1583
        %1585 = vrot.lane.b32.xlu0 %v1329, 112
        %v1586 = vpop.permute.xlu0 %1585
        %1587 = vrot.lane.b32.xlu0 %v1330, 112
        %v1588 = vpop.permute.xlu0 %1587
        %1589 = vrot.lane.b32.xlu0 %v1331, 112
        %v1590 = vpop.permute.xlu0 %1589
        %s1607 = scalar_lea.vmem [#allocation2], 256
        %1608 = vst.msk [vmem:[%s1607] sm:$0xff] %vm1332, %v1560
        %1609 = vst.msk [vmem:[%s1607 + $0x8] sm:$0xff] %vm1332, %v1562
        %1610 = vst.msk [vmem:[%s1607 + $0x10] sm:$0xff] %vm1332, %v1564
        %1611 = vst.msk [vmem:[%s1607 + $0x18] sm:$0xff] %vm1332, %v1566
        %1612 = vst.msk [vmem:[%s1607 + $0x20] sm:$0xff] %vm1332, %v1568
        %1613 = vst.msk [vmem:[%s1607 + $0x28] sm:$0xff] %vm1332, %v1570
        %1614 = vst.msk [vmem:[%s1607 + $0x30] sm:$0xff] %vm1332, %v1572
        %1615 = vst.msk [vmem:[%s1607 + $0x38] sm:$0xff] %vm1332, %v1574
        %1616 = vst.msk [vmem:[%s1607 + $0x40] sm:$0xff] %vm1332, %v1576
        %1617 = vst.msk [vmem:[%s1607 + $0x48] sm:$0xff] %vm1332, %v1578
        %1618 = vst.msk [vmem:[%s1607 + $0x50] sm:$0xff] %vm1332, %v1580
        %1619 = vst.msk [vmem:[%s1607 + $0x58] sm:$0xff] %vm1332, %v1582
        %1620 = vst.msk [vmem:[%s1607 + $0x60] sm:$0xff] %vm1332, %v1584
        %1621 = vst.msk [vmem:[%s1607 + $0x68] sm:$0xff] %vm1332, %v1586
        %1622 = vst.msk [vmem:[%s1607 + $0x70] sm:$0xff] %vm1332, %v1588
        %1623 = vst.msk [vmem:[%s1607 + $0x78] sm:$0xff] %vm1332, %v1590
        %1624 = vrot.lane.b32.xlu0 %v1316, 80
        %v1625 = vpop.permute.xlu0 %1624
        %1626 = vrot.lane.b32.xlu0 %v1317, 80
        %v1627 = vpop.permute.xlu0 %1626
        %1628 = vrot.lane.b32.xlu0 %v1318, 80
        %v1629 = vpop.permute.xlu0 %1628
        %1630 = vrot.lane.b32.xlu0 %v1319, 80
        %v1631 = vpop.permute.xlu0 %1630
        %1632 = vrot.lane.b32.xlu0 %v1320, 80
        %v1633 = vpop.permute.xlu0 %1632
        %1634 = vrot.lane.b32.xlu0 %v1321, 80
        %v1635 = vpop.permute.xlu0 %1634
        %1636 = vrot.lane.b32.xlu0 %v1322, 80
        %v1637 = vpop.permute.xlu0 %1636
        %1638 = vrot.lane.b32.xlu0 %v1323, 80
        %v1639 = vpop.permute.xlu0 %1638
        %1640 = vrot.lane.b32.xlu0 %v1324, 80
        %v1641 = vpop.permute.xlu0 %1640
        %1642 = vrot.lane.b32.xlu0 %v1325, 80
        %v1643 = vpop.permute.xlu0 %1642
        %1644 = vrot.lane.b32.xlu0 %v1326, 80
        %v1645 = vpop.permute.xlu0 %1644
        %1646 = vrot.lane.b32.xlu0 %v1327, 80
        %v1647 = vpop.permute.xlu0 %1646
        %1648 = vrot.lane.b32.xlu0 %v1328, 80
        %v1649 = vpop.permute.xlu0 %1648
        %1650 = vrot.lane.b32.xlu0 %v1329, 80
        %v1651 = vpop.permute.xlu0 %1650
        %1652 = vrot.lane.b32.xlu0 %v1330, 80
        %v1653 = vpop.permute.xlu0 %1652
        %1654 = vrot.lane.b32.xlu0 %v1331, 80
        %v1655 = vpop.permute.xlu0 %1654
        %s1672 = scalar_lea.vmem [#allocation3], 256
        %1673 = vst.msk [vmem:[%s1672] sm:$0xff] %vm1332, %v1625
        %1674 = vst.msk [vmem:[%s1672 + $0x8] sm:$0xff] %vm1332, %v1627
        %1675 = vst.msk [vmem:[%s1672 + $0x10] sm:$0xff] %vm1332, %v1629
        %1676 = vst.msk [vmem:[%s1672 + $0x18] sm:$0xff] %vm1332, %v1631
        %1677 = vst.msk [vmem:[%s1672 + $0x20] sm:$0xff] %vm1332, %v1633
        %1678 = vst.msk [vmem:[%s1672 + $0x28] sm:$0xff] %vm1332, %v1635
        %1679 = vst.msk [vmem:[%s1672 + $0x30] sm:$0xff] %vm1332, %v1637
        %1680 = vst.msk [vmem:[%s1672 + $0x38] sm:$0xff] %vm1332, %v1639
        %1681 = vst.msk [vmem:[%s1672 + $0x40] sm:$0xff] %vm1332, %v1641
        %1682 = vst.msk [vmem:[%s1672 + $0x48] sm:$0xff] %vm1332, %v1643
        %1683 = vst.msk [vmem:[%s1672 + $0x50] sm:$0xff] %vm1332, %v1645
        %1684 = vst.msk [vmem:[%s1672 + $0x58] sm:$0xff] %vm1332, %v1647
        %1685 = vst.msk [vmem:[%s1672 + $0x60] sm:$0xff] %vm1332, %v1649
        %1686 = vst.msk [vmem:[%s1672 + $0x68] sm:$0xff] %vm1332, %v1651
        %1687 = vst.msk [vmem:[%s1672 + $0x70] sm:$0xff] %vm1332, %v1653
        %1688 = vst.msk [vmem:[%s1672 + $0x78] sm:$0xff] %vm1332, %v1655
        %1689 = vrot.lane.b32.xlu0 %v1316, 104
        %v1690 = vpop.permute.xlu0 %1689
        %1691 = vrot.lane.b32.xlu0 %v1317, 104
        %v1692 = vpop.permute.xlu0 %1691
        %1693 = vrot.lane.b32.xlu0 %v1318, 104
        %v1694 = vpop.permute.xlu0 %1693
        %1695 = vrot.lane.b32.xlu0 %v1319, 104
        %v1696 = vpop.permute.xlu0 %1695
        %1697 = vrot.lane.b32.xlu0 %v1320, 104
        %v1698 = vpop.permute.xlu0 %1697
        %1699 = vrot.lane.b32.xlu0 %v1321, 104
        %v1700 = vpop.permute.xlu0 %1699
        %1701 = vrot.lane.b32.xlu0 %v1322, 104
        %v1702 = vpop.permute.xlu0 %1701
        %1703 = vrot.lane.b32.xlu0 %v1323, 104
        %v1704 = vpop.permute.xlu0 %1703
        %1705 = vrot.lane.b32.xlu0 %v1324, 104
        %v1706 = vpop.permute.xlu0 %1705
        %1707 = vrot.lane.b32.xlu0 %v1325, 104
        %v1708 = vpop.permute.xlu0 %1707
        %1709 = vrot.lane.b32.xlu0 %v1326, 104
        %v1710 = vpop.permute.xlu0 %1709
        %1711 = vrot.lane.b32.xlu0 %v1327, 104
        %v1712 = vpop.permute.xlu0 %1711
        %1713 = vrot.lane.b32.xlu0 %v1328, 104
        %v1714 = vpop.permute.xlu0 %1713
        %1715 = vrot.lane.b32.xlu0 %v1329, 104
        %v1716 = vpop.permute.xlu0 %1715
        %1717 = vrot.lane.b32.xlu0 %v1330, 104
        %v1718 = vpop.permute.xlu0 %1717
        %1719 = vrot.lane.b32.xlu0 %v1331, 104
        %v1720 = vpop.permute.xlu0 %1719
        %s1737 = scalar_lea.vmem [#allocation2], 384
        %1738 = vst.msk [vmem:[%s1737] sm:$0xff] %vm1332, %v1690
        %1739 = vst.msk [vmem:[%s1737 + $0x8] sm:$0xff] %vm1332, %v1692
        %1740 = vst.msk [vmem:[%s1737 + $0x10] sm:$0xff] %vm1332, %v1694
        %1741 = vst.msk [vmem:[%s1737 + $0x18] sm:$0xff] %vm1332, %v1696
        %1742 = vst.msk [vmem:[%s1737 + $0x20] sm:$0xff] %vm1332, %v1698
        %1743 = vst.msk [vmem:[%s1737 + $0x28] sm:$0xff] %vm1332, %v1700
        %1744 = vst.msk [vmem:[%s1737 + $0x30] sm:$0xff] %vm1332, %v1702
        %1745 = vst.msk [vmem:[%s1737 + $0x38] sm:$0xff] %vm1332, %v1704
        %1746 = vst.msk [vmem:[%s1737 + $0x40] sm:$0xff] %vm1332, %v1706
        %1747 = vst.msk [vmem:[%s1737 + $0x48] sm:$0xff] %vm1332, %v1708
        %1748 = vst.msk [vmem:[%s1737 + $0x50] sm:$0xff] %vm1332, %v1710
        %1749 = vst.msk [vmem:[%s1737 + $0x58] sm:$0xff] %vm1332, %v1712
        %1750 = vst.msk [vmem:[%s1737 + $0x60] sm:$0xff] %vm1332, %v1714
        %1751 = vst.msk [vmem:[%s1737 + $0x68] sm:$0xff] %vm1332, %v1716
        %1752 = vst.msk [vmem:[%s1737 + $0x70] sm:$0xff] %vm1332, %v1718
        %1753 = vst.msk [vmem:[%s1737 + $0x78] sm:$0xff] %vm1332, %v1720
        %1754 = vrot.lane.b32.xlu0 %v1316, 72
        %v1755 = vpop.permute.xlu0 %1754
        %1756 = vrot.lane.b32.xlu0 %v1317, 72
        %v1757 = vpop.permute.xlu0 %1756
        %1758 = vrot.lane.b32.xlu0 %v1318, 72
        %v1759 = vpop.permute.xlu0 %1758
        %1760 = vrot.lane.b32.xlu0 %v1319, 72
        %v1761 = vpop.permute.xlu0 %1760
        %1762 = vrot.lane.b32.xlu0 %v1320, 72
        %v1763 = vpop.permute.xlu0 %1762
        %1764 = vrot.lane.b32.xlu0 %v1321, 72
        %v1765 = vpop.permute.xlu0 %1764
        %1766 = vrot.lane.b32.xlu0 %v1322, 72
        %v1767 = vpop.permute.xlu0 %1766
        %1768 = vrot.lane.b32.xlu0 %v1323, 72
        %v1769 = vpop.permute.xlu0 %1768
        %1770 = vrot.lane.b32.xlu0 %v1324, 72
        %v1771 = vpop.permute.xlu0 %1770
        %1772 = vrot.lane.b32.xlu0 %v1325, 72
        %v1773 = vpop.permute.xlu0 %1772
        %1774 = vrot.lane.b32.xlu0 %v1326, 72
        %v1775 = vpop.permute.xlu0 %1774
        %1776 = vrot.lane.b32.xlu0 %v1327, 72
        %v1777 = vpop.permute.xlu0 %1776
        %1778 = vrot.lane.b32.xlu0 %v1328, 72
        %v1779 = vpop.permute.xlu0 %1778
        %1780 = vrot.lane.b32.xlu0 %v1329, 72
        %v1781 = vpop.permute.xlu0 %1780
        %1782 = vrot.lane.b32.xlu0 %v1330, 72
        %v1783 = vpop.permute.xlu0 %1782
        %1784 = vrot.lane.b32.xlu0 %v1331, 72
        %v1785 = vpop.permute.xlu0 %1784
        %s1802 = scalar_lea.vmem [#allocation3], 384
        %1803 = vst.msk [vmem:[%s1802] sm:$0xff] %vm1332, %v1755
        %1804 = vst.msk [vmem:[%s1802 + $0x8] sm:$0xff] %vm1332, %v1757
        %1805 = vst.msk [vmem:[%s1802 + $0x10] sm:$0xff] %vm1332, %v1759
        %1806 = vst.msk [vmem:[%s1802 + $0x18] sm:$0xff] %vm1332, %v1761
        %1807 = vst.msk [vmem:[%s1802 + $0x20] sm:$0xff] %vm1332, %v1763
        %1808 = vst.msk [vmem:[%s1802 + $0x28] sm:$0xff] %vm1332, %v1765
        %1809 = vst.msk [vmem:[%s1802 + $0x30] sm:$0xff] %vm1332, %v1767
        %1810 = vst.msk [vmem:[%s1802 + $0x38] sm:$0xff] %vm1332, %v1769
        %1811 = vst.msk [vmem:[%s1802 + $0x40] sm:$0xff] %vm1332, %v1771
        %1812 = vst.msk [vmem:[%s1802 + $0x48] sm:$0xff] %vm1332, %v1773
        %1813 = vst.msk [vmem:[%s1802 + $0x50] sm:$0xff] %vm1332, %v1775
        %1814 = vst.msk [vmem:[%s1802 + $0x58] sm:$0xff] %vm1332, %v1777
        %1815 = vst.msk [vmem:[%s1802 + $0x60] sm:$0xff] %vm1332, %v1779
        %1816 = vst.msk [vmem:[%s1802 + $0x68] sm:$0xff] %vm1332, %v1781
        %1817 = vst.msk [vmem:[%s1802 + $0x70] sm:$0xff] %vm1332, %v1783
        %1818 = vst.msk [vmem:[%s1802 + $0x78] sm:$0xff] %vm1332, %v1785
      $region80: #{tpu_custom_call.1} parent=75 // pred_fallthru
        _
      %s1819 = smul.u32 %s30, 128
      %s1820 = scalar_lea.vmem %s513, %s1819
      %v1821 = vld [vmem:[%s1820] sm:$0xff]
      %v1822 = vld [vmem:[%s1820 + $0x8] sm:$0xff]
      %v1823 = vld [vmem:[%s1820 + $0x10] sm:$0xff]
      %v1824 = vld [vmem:[%s1820 + $0x18] sm:$0xff]
      %v1825 = vld [vmem:[%s1820 + $0x20] sm:$0xff]
      %v1826 = vld [vmem:[%s1820 + $0x28] sm:$0xff]
      %v1827 = vld [vmem:[%s1820 + $0x30] sm:$0xff]
      %v1828 = vld [vmem:[%s1820 + $0x38] sm:$0xff]
      %v1829 = vld [vmem:[%s1820 + $0x40] sm:$0xff]
      %v1830 = vld [vmem:[%s1820 + $0x48] sm:$0xff]
      %v1831 = vld [vmem:[%s1820 + $0x50] sm:$0xff]
      %v1832 = vld [vmem:[%s1820 + $0x58] sm:$0xff]
      %v1833 = vld [vmem:[%s1820 + $0x60] sm:$0xff]
      %v1834 = vld [vmem:[%s1820 + $0x68] sm:$0xff]
      %v1835 = vld [vmem:[%s1820 + $0x70] sm:$0xff]
      %v1836 = vld [vmem:[%s1820 + $0x78] sm:$0xff]
      %vm1837 = vcmask 261120
      %v1838 = vsel %vm1837, %v1821, 0.0
      %1839 = vadd.xlane.f32.xlu0 %v1838
      %v1840 = vpop.xlane.xlu0 %1839
      %v1841 = vsel %vm1837, %v1822, 0.0
      %1842 = vadd.xlane.f32.xlu0 %v1841
      %v1843 = vpop.xlane.xlu0 %1842
      %v1844 = vsel %vm1837, %v1823, 0.0
      %1845 = vadd.xlane.f32.xlu0 %v1844
      %v1846 = vpop.xlane.xlu0 %1845
      %v1847 = vsel %vm1837, %v1824, 0.0
      %1848 = vadd.xlane.f32.xlu0 %v1847
      %v1849 = vpop.xlane.xlu0 %1848
      %v1850 = vsel %vm1837, %v1825, 0.0
      %1851 = vadd.xlane.f32.xlu0 %v1850
      %v1852 = vpop.xlane.xlu0 %1851
      %v1853 = vsel %vm1837, %v1826, 0.0
      %1854 = vadd.xlane.f32.xlu0 %v1853
      %v1855 = vpop.xlane.xlu0 %1854
      %v1856 = vsel %vm1837, %v1827, 0.0
      %1857 = vadd.xlane.f32.xlu0 %v1856
      %v1858 = vpop.xlane.xlu0 %1857
      %v1859 = vsel %vm1837, %v1828, 0.0
      %1860 = vadd.xlane.f32.xlu0 %v1859
      %v1861 = vpop.xlane.xlu0 %1860
      %v1862 = vsel %vm1837, %v1829, 0.0
      %1863 = vadd.xlane.f32.xlu0 %v1862
      %v1864 = vpop.xlane.xlu0 %1863
      %v1865 = vsel %vm1837, %v1830, 0.0
      %1866 = vadd.xlane.f32.xlu0 %v1865
      %v1867 = vpop.xlane.xlu0 %1866
      %v1868 = vsel %vm1837, %v1831, 0.0
      %1869 = vadd.xlane.f32.xlu0 %v1868
      %v1870 = vpop.xlane.xlu0 %1869
      %v1871 = vsel %vm1837, %v1832, 0.0
      %1872 = vadd.xlane.f32.xlu0 %v1871
      %v1873 = vpop.xlane.xlu0 %1872
      %v1874 = vsel %vm1837, %v1833, 0.0
      %1875 = vadd.xlane.f32.xlu0 %v1874
      %v1876 = vpop.xlane.xlu0 %1875
      %v1877 = vsel %vm1837, %v1834, 0.0
      %1878 = vadd.xlane.f32.xlu0 %v1877
      %v1879 = vpop.xlane.xlu0 %1878
      %v1880 = vsel %vm1837, %v1835, 0.0
      %1881 = vadd.xlane.f32.xlu0 %v1880
      %v1882 = vpop.xlane.xlu0 %1881
      %v1883 = vsel %vm1837, %v1836, 0.0
      %1884 = vadd.xlane.f32.xlu0 %v1883
      %v1885 = vpop.xlane.xlu0 %1884
      %v1886 = vrcp.pop 32.0
      %v1887 = vmul.f32 %v1840, %v1886
      %v1888 = vmul.f32 %v1843, %v1886
      %v1889 = vmul.f32 %v1846, %v1886
      %v1890 = vmul.f32 %v1849, %v1886
      %v1891 = vmul.f32 %v1852, %v1886
      %v1892 = vmul.f32 %v1855, %v1886
      %v1893 = vmul.f32 %v1858, %v1886
      %v1894 = vmul.f32 %v1861, %v1886
      %v1895 = vmul.f32 %v1864, %v1886
      %v1896 = vmul.f32 %v1867, %v1886
      %v1897 = vmul.f32 %v1870, %v1886
      %v1898 = vmul.f32 %v1873, %v1886
      %v1899 = vmul.f32 %v1876, %v1886
      %v1900 = vmul.f32 %v1879, %v1886
      %v1901 = vmul.f32 %v1882, %v1886
      %v1902 = vmul.f32 %v1885, %v1886
      %v1903 = vsub.f32 %v1821, %v1887
      %v1904 = vsub.f32 %v1822, %v1888
      %v1905 = vsub.f32 %v1823, %v1889
      %v1906 = vsub.f32 %v1824, %v1890
      %v1907 = vsub.f32 %v1825, %v1891
      %v1908 = vsub.f32 %v1826, %v1892
      %v1909 = vsub.f32 %v1827, %v1893
      %v1910 = vsub.f32 %v1828, %v1894
      %v1911 = vsub.f32 %v1829, %v1895
      %v1912 = vsub.f32 %v1830, %v1896
      %v1913 = vsub.f32 %v1831, %v1897
      %v1914 = vsub.f32 %v1832, %v1898
      %v1915 = vsub.f32 %v1833, %v1899
      %v1916 = vsub.f32 %v1834, %v1900
      %v1917 = vsub.f32 %v1835, %v1901
      %v1918 = vsub.f32 %v1836, %v1902
      %v1919 = vmul.f32 %v1903, %v1903
      %v1920 = vmul.f32 %v1904, %v1904
      %v1921 = vmul.f32 %v1905, %v1905
      %v1922 = vmul.f32 %v1906, %v1906
      %v1923 = vmul.f32 %v1907, %v1907
      %v1924 = vmul.f32 %v1908, %v1908
      %v1925 = vmul.f32 %v1909, %v1909
      %v1926 = vmul.f32 %v1910, %v1910
      %v1927 = vmul.f32 %v1911, %v1911
      %v1928 = vmul.f32 %v1912, %v1912
      %v1929 = vmul.f32 %v1913, %v1913
      %v1930 = vmul.f32 %v1914, %v1914
      %v1931 = vmul.f32 %v1915, %v1915
      %v1932 = vmul.f32 %v1916, %v1916
      %v1933 = vmul.f32 %v1917, %v1917
      %v1934 = vmul.f32 %v1918, %v1918
      %v1935 = vsel %vm1837, %v1919, 0.0
      %1936 = vadd.xlane.f32.xlu0 %v1935
      %v1937 = vpop.xlane.xlu0 %1936
      %v1938 = vsel %vm1837, %v1920, 0.0
      %1939 = vadd.xlane.f32.xlu0 %v1938
      %v1940 = vpop.xlane.xlu0 %1939
      %v1941 = vsel %vm1837, %v1921, 0.0
      %1942 = vadd.xlane.f32.xlu0 %v1941
      %v1943 = vpop.xlane.xlu0 %1942
      %v1944 = vsel %vm1837, %v1922, 0.0
      %1945 = vadd.xlane.f32.xlu0 %v1944
      %v1946 = vpop.xlane.xlu0 %1945
      %v1947 = vsel %vm1837, %v1923, 0.0
      %1948 = vadd.xlane.f32.xlu0 %v1947
      %v1949 = vpop.xlane.xlu0 %1948
      %v1950 = vsel %vm1837, %v1924, 0.0
      %1951 = vadd.xlane.f32.xlu0 %v1950
      %v1952 = vpop.xlane.xlu0 %1951
      %v1953 = vsel %vm1837, %v1925, 0.0
      %1954 = vadd.xlane.f32.xlu0 %v1953
      %v1955 = vpop.xlane.xlu0 %1954
      %v1956 = vsel %vm1837, %v1926, 0.0
      %1957 = vadd.xlane.f32.xlu0 %v1956
      %v1958 = vpop.xlane.xlu0 %1957
      %v1959 = vsel %vm1837, %v1927, 0.0
      %1960 = vadd.xlane.f32.xlu0 %v1959
      %v1961 = vpop.xlane.xlu0 %1960
      %v1962 = vsel %vm1837, %v1928, 0.0
      %1963 = vadd.xlane.f32.xlu0 %v1962
      %v1964 = vpop.xlane.xlu0 %1963
      %v1965 = vsel %vm1837, %v1929, 0.0
      %1966 = vadd.xlane.f32.xlu0 %v1965
      %v1967 = vpop.xlane.xlu0 %1966
      %v1968 = vsel %vm1837, %v1930, 0.0
      %1969 = vadd.xlane.f32.xlu0 %v1968
      %v1970 = vpop.xlane.xlu0 %1969
      %v1971 = vsel %vm1837, %v1931, 0.0
      %1972 = vadd.xlane.f32.xlu0 %v1971
      %v1973 = vpop.xlane.xlu0 %1972
      %v1974 = vsel %vm1837, %v1932, 0.0
      %1975 = vadd.xlane.f32.xlu0 %v1974
      %v1976 = vpop.xlane.xlu0 %1975
      %v1977 = vsel %vm1837, %v1933, 0.0
      %1978 = vadd.xlane.f32.xlu0 %v1977
      %v1979 = vpop.xlane.xlu0 %1978
      %v1980 = vsel %vm1837, %v1934, 0.0
      %1981 = vadd.xlane.f32.xlu0 %v1980
      %v1982 = vpop.xlane.xlu0 %1981
      %v1983 = vmul.f32 %v1937, %v1886
      %v1984 = vmul.f32 %v1940, %v1886
      %v1985 = vmul.f32 %v1943, %v1886
      %v1986 = vmul.f32 %v1946, %v1886
      %v1987 = vmul.f32 %v1949, %v1886
      %v1988 = vmul.f32 %v1952, %v1886
      %v1989 = vmul.f32 %v1955, %v1886
      %v1990 = vmul.f32 %v1958, %v1886
      %v1991 = vmul.f32 %v1961, %v1886
      %v1992 = vmul.f32 %v1964, %v1886
      %v1993 = vmul.f32 %v1967, %v1886
      %v1994 = vmul.f32 %v1970, %v1886
      %v1995 = vmul.f32 %v1973, %v1886
      %v1996 = vmul.f32 %v1976, %v1886
      %v1997 = vmul.f32 %v1979, %v1886
      %v1998 = vmul.f32 %v1982, %v1886
      %v1999 = vadd.f32 %v534, 1.0
      %v2000 = vadd.f32 %v1983, 1e-05
      %v2001 = vadd.f32 %v1984, 1e-05
      %v2002 = vadd.f32 %v1985, 1e-05
      %v2003 = vadd.f32 %v1986, 1e-05
      %v2004 = vadd.f32 %v1987, 1e-05
      %v2005 = vadd.f32 %v1988, 1e-05
      %v2006 = vadd.f32 %v1989, 1e-05
      %v2007 = vadd.f32 %v1990, 1e-05
      %v2008 = vadd.f32 %v1991, 1e-05
      %v2009 = vadd.f32 %v1992, 1e-05
      %v2010 = vadd.f32 %v1993, 1e-05
      %v2011 = vadd.f32 %v1994, 1e-05
      %v2012 = vadd.f32 %v1995, 1e-05
      %v2013 = vadd.f32 %v1996, 1e-05
      %v2014 = vadd.f32 %v1997, 1e-05
      %v2015 = vadd.f32 %v1998, 1e-05
      %v2016 = vrsqrt.pop %v2000
      %v2017 = vrsqrt.pop %v2001
      %v2018 = vrsqrt.pop %v2002
      %v2019 = vrsqrt.pop %v2003
      %v2020 = vrsqrt.pop %v2004
      %v2021 = vrsqrt.pop %v2005
      %v2022 = vrsqrt.pop %v2006
      %v2023 = vrsqrt.pop %v2007
      %v2024 = vrsqrt.pop %v2008
      %v2025 = vrsqrt.pop %v2009
      %v2026 = vrsqrt.pop %v2010
      %v2027 = vrsqrt.pop %v2011
      %v2028 = vrsqrt.pop %v2012
      %v2029 = vrsqrt.pop %v2013
      %v2030 = vrsqrt.pop %v2014
      %v2031 = vrsqrt.pop %v2015
      %v2032 = vmul.f32 %v1903, %v2016
      %v2033 = vmul.f32 %v1904, %v2017
      %v2034 = vmul.f32 %v1905, %v2018
      %v2035 = vmul.f32 %v1906, %v2019
      %v2036 = vmul.f32 %v1907, %v2020
      %v2037 = vmul.f32 %v1908, %v2021
      %v2038 = vmul.f32 %v1909, %v2022
      %v2039 = vmul.f32 %v1910, %v2023
      %v2040 = vmul.f32 %v1911, %v2024
      %v2041 = vmul.f32 %v1912, %v2025
      %v2042 = vmul.f32 %v1913, %v2026
      %v2043 = vmul.f32 %v1914, %v2027
      %v2044 = vmul.f32 %v1915, %v2028
      %v2045 = vmul.f32 %v1916, %v2029
      %v2046 = vmul.f32 %v1917, %v2030
      %v2047 = vmul.f32 %v1918, %v2031
      %v2049 = vlaneseq
      %v2050 = vshrl.u32 %v2049, 7
      %v2051 = vsub.s32 0, %v2050
      %v2052 = vrot.slane %v1999, %v2051
      %v2054 = vmul.f32 %v2052, %v2032
      %v2055 = vmul.f32 %v2052, %v2033
      %v2056 = vmul.f32 %v2052, %v2034
      %v2057 = vmul.f32 %v2052, %v2035
      %v2058 = vmul.f32 %v2052, %v2036
      %v2059 = vmul.f32 %v2052, %v2037
      %v2060 = vmul.f32 %v2052, %v2038
      %v2061 = vmul.f32 %v2052, %v2039
      %v2062 = vmul.f32 %v2052, %v2040
      %v2063 = vmul.f32 %v2052, %v2041
      %v2064 = vmul.f32 %v2052, %v2042
      %v2065 = vmul.f32 %v2052, %v2043
      %v2066 = vmul.f32 %v2052, %v2044
      %v2067 = vmul.f32 %v2052, %v2045
      %v2068 = vmul.f32 %v2052, %v2046
      %v2069 = vmul.f32 %v2052, %v2047
      %v2071 = vlaneseq
      %v2072 = vshrl.u32 %v2071, 7
      %v2073 = vsub.s32 0, %v2072
      %v2074 = vrot.slane %v535, %v2073
      %v2076 = vadd.f32 %v2054, %v2074
      %v2077 = vadd.f32 %v2055, %v2074
      %v2078 = vadd.f32 %v2056, %v2074
      %v2079 = vadd.f32 %v2057, %v2074
      %v2080 = vadd.f32 %v2058, %v2074
      %v2081 = vadd.f32 %v2059, %v2074
      %v2082 = vadd.f32 %v2060, %v2074
      %v2083 = vadd.f32 %v2061, %v2074
      %v2084 = vadd.f32 %v2062, %v2074
      %v2085 = vadd.f32 %v2063, %v2074
      %v2086 = vadd.f32 %v2064, %v2074
      %v2087 = vadd.f32 %v2065, %v2074
      %v2088 = vadd.f32 %v2066, %v2074
      %v2089 = vadd.f32 %v2067, %v2074
      %v2090 = vadd.f32 %v2068, %v2074
      %v2091 = vadd.f32 %v2069, %v2074
      %v2092 = vpack.c.bf16 %v2077, %v2076
      %v2093 = vpack.c.bf16 %v2079, %v2078
      %v2094 = vpack.c.bf16 %v2081, %v2080
      %v2095 = vpack.c.bf16 %v2083, %v2082
      %v2096 = vpack.c.bf16 %v2085, %v2084
      %v2097 = vpack.c.bf16 %v2087, %v2086
      %v2098 = vpack.c.bf16 %v2089, %v2088
      %v2099 = vpack.c.bf16 %v2091, %v2090
      %v2100 = vld [vmem:[%s4] sm:$0xf]
      %v2101 = vld [vmem:[%s4 + $0x4] sm:$0xf]
      %v2102 = vld [vmem:[%s4 + $0x8] sm:$0xf]
      %v2103 = vld [vmem:[%s4 + $0xc] sm:$0xf]
      %v2104 = vld [vmem:[%s5] sm:$0x1]
      %v2106 = vlaneseq
      %v2107 = vshrl.u32 %v2106, 7
      %v2108 = vsub.s32 0, %v2107
      %v2109 = vrot.slane %v2104, %v2108
      %v2115 = vunpack.c.l.b16 %v2100
      %v2116 = vunpack.c.l.b16 %v2101
      %v2117 = vunpack.c.l.b16 %v2102
      %v2118 = vunpack.c.l.b16 %v2103
      %v2119 = vpack.c.b16 %v2116, %v2115
      %v2120 = vpack.c.b16 %v2118, %v2117
      %v2124 = vsel %vm1837, %v2092, 0
      %v2127 = vsel %vm1837, %v2093, 0
      %v2130 = vsel %vm1837, %v2094, 0
      %v2133 = vsel %vm1837, %v2095, 0
      %v2136 = vsel %vm1837, %v2096, 0
      %v2139 = vsel %vm1837, %v2097, 0
      %v2142 = vsel %vm1837, %v2098, 0
      %v2145 = vsel %vm1837, %v2099, 0
      %2147 = vmatprep.subr.bf16.mxu0 0
      %2148 = vmatpush1.bf16.msra.mxu0 %v2119
      %2149 = vmatprep.subr.bf16.mxu0 0
      %2150 = vmatpush1.bf16.msra.mxu0 %v2120
      %2151 = vmatprep.subr.bf16.mxu0 0
      %2152 = vmatpush1.bf16.msra.mxu0 0
      %2153 = vmatprep.subr.bf16.mxu0 0
      %2154 = vmatpush1.bf16.msra.mxu0 0
      %2155 = vmatprep.subr.bf16.mxu0 0
      %2156 = vmatpush1.bf16.msra.mxu0 0
      %2157 = vmatprep.subr.bf16.mxu0 0
      %2158 = vmatpush1.bf16.msra.mxu0 0
      %2159 = vmatprep.subr.bf16.mxu0 0
      %2160 = vmatpush1.bf16.msra.mxu0 0
      %2161 = vmatprep.subr.bf16.mxu0 0
      %2162 = vmatpush1.bf16.msra.mxu0 0
      %2163 = vmatprep.subr.bf16.mxu0 0
      %2164 = vmatpush1.bf16.msra.mxu0 0
      %2165 = vmatprep.subr.bf16.mxu0 0
      %2166 = vmatpush1.bf16.msra.mxu0 0
      %2167 = vmatprep.subr.bf16.mxu0 0
      %2168 = vmatpush1.bf16.msra.mxu0 0
      %2169 = vmatprep.subr.bf16.mxu0 0
      %2170 = vmatpush1.bf16.msra.mxu0 0
      %2171 = vmatprep.subr.bf16.mxu0 0
      %2172 = vmatpush1.bf16.msra.mxu0 0
      %2173 = vmatprep.subr.bf16.mxu0 0
      %2174 = vmatpush1.bf16.msra.mxu0 0
      %2175 = vmatprep.subr.bf16.mxu0 0
      %2176 = vmatpush1.bf16.msra.mxu0 0
      %2177 = vmatprep.subr.bf16.mxu0 0
      %2178 = vmatpush1.bf16.msra.mxu0 0
      %2179 = vmatprep.mubr.bf16.mxu0 0
      %2180 = vmatmul.mubr.bf16.gmra.mrb[0].mxu0 %v2124
      %v2181 = vpop.f32.mrb[0].mxu0
      %v2182 = vadd.f32 %v2109, %v2181
      %v2183 = vpop.f32.mrb[0].mxu0
      %v2184 = vpop.f32.mrb[0].mxu0
      %v2185 = vadd.f32 %v2109, %v2184
      %v2186 = vpop.f32.mrb[0].mxu0
      %2187 = vmatprep.mubr.bf16.mxu0 0
      %2188 = vmatmul.mubr.bf16.gmra.mrb[0].mxu0 %v2127
      %v2189 = vpop.f32.mrb[0].mxu0
      %v2190 = vadd.f32 %v2109, %v2189
      %v2191 = vpop.f32.mrb[0].mxu0
      %v2192 = vpop.f32.mrb[0].mxu0
      %v2193 = vadd.f32 %v2109, %v2192
      %v2194 = vpop.f32.mrb[0].mxu0
      %2195 = vmatprep.mubr.bf16.mxu0 0
      %2196 = vmatmul.mubr.bf16.gmra.mrb[0].mxu0 %v2130
      %v2197 = vpop.f32.mrb[0].mxu0
      %v2198 = vadd.f32 %v2109, %v2197
      %v2199 = vpop.f32.mrb[0].mxu0
      %v2200 = vpop.f32.mrb[0].mxu0
      %v2201 = vadd.f32 %v2109, %v2200
      %v2202 = vpop.f32.mrb[0].mxu0
      %2203 = vmatprep.mubr.bf16.mxu0 0
      %2204 = vmatmul.mubr.bf16.gmra.mrb[0].mxu0 %v2133
      %v2205 = vpop.f32.mrb[0].mxu0
      %v2206 = vadd.f32 %v2109, %v2205
      %v2207 = vpop.f32.mrb[0].mxu0
      %v2208 = vpop.f32.mrb[0].mxu0
      %v2209 = vadd.f32 %v2109, %v2208
      %v2210 = vpop.f32.mrb[0].mxu0
      %2211 = vmatprep.mubr.bf16.mxu0 0
      %2212 = vmatmul.mubr.bf16.gmra.mrb[0].mxu0 %v2136
      %v2213 = vpop.f32.mrb[0].mxu0
      %v2214 = vadd.f32 %v2109, %v2213
      %v2215 = vpop.f32.mrb[0].mxu0
      %v2216 = vpop.f32.mrb[0].mxu0
      %v2217 = vadd.f32 %v2109, %v2216
      %v2218 = vpop.f32.mrb[0].mxu0
      %2219 = vmatprep.mubr.bf16.mxu0 0
      %2220 = vmatmul.mubr.bf16.gmra.mrb[0].mxu0 %v2139
      %v2221 = vpop.f32.mrb[0].mxu0
      %v2222 = vadd.f32 %v2109, %v2221
      %v2223 = vpop.f32.mrb[0].mxu0
      %v2224 = vpop.f32.mrb[0].mxu0
      %v2225 = vadd.f32 %v2109, %v2224
      %v2226 = vpop.f32.mrb[0].mxu0
      %2227 = vmatprep.mubr.bf16.mxu0 0
      %2228 = vmatmul.mubr.bf16.gmra.mrb[0].mxu0 %v2142
      %v2229 = vpop.f32.mrb[0].mxu0
      %v2230 = vadd.f32 %v2109, %v2229
      %v2231 = vpop.f32.mrb[0].mxu0
      %v2232 = vpop.f32.mrb[0].mxu0
      %v2233 = vadd.f32 %v2109, %v2232
      %v2234 = vpop.f32.mrb[0].mxu0
      %2235 = vmatprep.mubr.bf16.mxu0 0
      %2236 = vmatmul.mubr.bf16.gmra.mrb[0].mxu0 %v2145
      %v2237 = vpop.f32.mrb[0].mxu0
      %v2238 = vadd.f32 %v2109, %v2237
      %v2239 = vpop.f32.mrb[0].mxu0
      %v2240 = vpop.f32.mrb[0].mxu0
      %v2241 = vadd.f32 %v2109, %v2240
      %v2242 = vpop.f32.mrb[0].mxu0
      %2243 = vdwg.mxu0
      %v2244 = vpack.c.bf16 %v2185, %v2182
      %v2245 = vpack.c.bf16 %v2193, %v2190
      %v2246 = vpack.c.bf16 %v2201, %v2198
      %v2247 = vpack.c.bf16 %v2209, %v2206
      %v2248 = vpack.c.bf16 %v2217, %v2214
      %v2249 = vpack.c.bf16 %v2225, %v2222
      %v2250 = vpack.c.bf16 %v2233, %v2230
      %v2251 = vpack.c.bf16 %v2241, %v2238
      %2260 = vrot.lane.b32.xlu0 %v2244, 120
      %v2261 = vpop.permute.xlu0 %2260
      %2262 = vrot.lane.b32.xlu0 %v2245, 120
      %v2263 = vpop.permute.xlu0 %2262
      %2264 = vrot.lane.b32.xlu0 %v2246, 120
      %v2265 = vpop.permute.xlu0 %2264
      %2266 = vrot.lane.b32.xlu0 %v2247, 120
      %v2267 = vpop.permute.xlu0 %2266
      %2268 = vrot.lane.b32.xlu0 %v2248, 120
      %v2269 = vpop.permute.xlu0 %2268
      %2270 = vrot.lane.b32.xlu0 %v2249, 120
      %v2271 = vpop.permute.xlu0 %2270
      %2272 = vrot.lane.b32.xlu0 %v2250, 120
      %v2273 = vpop.permute.xlu0 %2272
      %2274 = vrot.lane.b32.xlu0 %v2251, 120
      %v2275 = vpop.permute.xlu0 %2274
      %2276 = vrot.lane.b32.xlu0 %v2244, 112
      %v2277 = vpop.permute.xlu0 %2276
      %2278 = vrot.lane.b32.xlu0 %v2245, 112
      %v2279 = vpop.permute.xlu0 %2278
      %2280 = vrot.lane.b32.xlu0 %v2246, 112
      %v2281 = vpop.permute.xlu0 %2280
      %2282 = vrot.lane.b32.xlu0 %v2247, 112
      %v2283 = vpop.permute.xlu0 %2282
      %2284 = vrot.lane.b32.xlu0 %v2248, 112
      %v2285 = vpop.permute.xlu0 %2284
      %2286 = vrot.lane.b32.xlu0 %v2249, 112
      %v2287 = vpop.permute.xlu0 %2286
      %2288 = vrot.lane.b32.xlu0 %v2250, 112
      %v2289 = vpop.permute.xlu0 %2288
      %2290 = vrot.lane.b32.xlu0 %v2251, 112
      %v2291 = vpop.permute.xlu0 %2290
      %2292 = vrot.lane.b32.xlu0 %v2244, 104
      %v2293 = vpop.permute.xlu0 %2292
      %2294 = vrot.lane.b32.xlu0 %v2245, 104
      %v2295 = vpop.permute.xlu0 %2294
      %2296 = vrot.lane.b32.xlu0 %v2246, 104
      %v2297 = vpop.permute.xlu0 %2296
      %2298 = vrot.lane.b32.xlu0 %v2247, 104
      %v2299 = vpop.permute.xlu0 %2298
      %2300 = vrot.lane.b32.xlu0 %v2248, 104
      %v2301 = vpop.permute.xlu0 %2300
      %2302 = vrot.lane.b32.xlu0 %v2249, 104
      %v2303 = vpop.permute.xlu0 %2302
      %2304 = vrot.lane.b32.xlu0 %v2250, 104
      %v2305 = vpop.permute.xlu0 %2304
      %2306 = vrot.lane.b32.xlu0 %v2251, 104
      %v2307 = vpop.permute.xlu0 %2306
      %v2308 = vld [vmem:[#allocation2] sm:$0xff]
      %v2309 = vld [vmem:[#allocation2 + $0x8] sm:$0xff]
      %v2310 = vld [vmem:[#allocation2 + $0x10] sm:$0xff]
      %v2311 = vld [vmem:[#allocation2 + $0x18] sm:$0xff]
      %v2312 = vld [vmem:[#allocation2 + $0x20] sm:$0xff]
      %v2313 = vld [vmem:[#allocation2 + $0x28] sm:$0xff]
      %v2314 = vld [vmem:[#allocation2 + $0x30] sm:$0xff]
      %v2315 = vld [vmem:[#allocation2 + $0x38] sm:$0xff]
      %v2316 = vld [vmem:[#allocation2 + $0x40] sm:$0xff]
      %v2317 = vld [vmem:[#allocation2 + $0x48] sm:$0xff]
      %v2318 = vld [vmem:[#allocation2 + $0x50] sm:$0xff]
      %v2319 = vld [vmem:[#allocation2 + $0x58] sm:$0xff]
      %v2320 = vld [vmem:[#allocation2 + $0x60] sm:$0xff]
      %v2321 = vld [vmem:[#allocation2 + $0x68] sm:$0xff]
      %v2322 = vld [vmem:[#allocation2 + $0x70] sm:$0xff]
      %v2323 = vld [vmem:[#allocation2 + $0x78] sm:$0xff]
      %v2324 = vld [vmem:[#allocation2 + $0x80] sm:$0xff]
      %v2325 = vld [vmem:[#allocation2 + $0x88] sm:$0xff]
      %v2326 = vld [vmem:[#allocation2 + $0x90] sm:$0xff]
      %v2327 = vld [vmem:[#allocation2 + $0x98] sm:$0xff]
      %v2328 = vld [vmem:[#allocation2 + $0xa0] sm:$0xff]
      %v2329 = vld [vmem:[#allocation2 + $0xa8] sm:$0xff]
      %v2330 = vld [vmem:[#allocation2 + $0xb0] sm:$0xff]
      %v2331 = vld [vmem:[#allocation2 + $0xb8] sm:$0xff]
      %v2332 = vld [vmem:[#allocation2 + $0xc0] sm:$0xff]
      %v2333 = vld [vmem:[#allocation2 + $0xc8] sm:$0xff]
      %v2334 = vld [vmem:[#allocation2 + $0xd0] sm:$0xff]
      %v2335 = vld [vmem:[#allocation2 + $0xd8] sm:$0xff]
      %v2336 = vld [vmem:[#allocation2 + $0xe0] sm:$0xff]
      %v2337 = vld [vmem:[#allocation2 + $0xe8] sm:$0xff]
      %v2338 = vld [vmem:[#allocation2 + $0xf0] sm:$0xff]
      %v2339 = vld [vmem:[#allocation2 + $0xf8] sm:$0xff]
      %v2340 = vld [vmem:[#allocation2 + $0x100] sm:$0xff]
      %v2341 = vld [vmem:[#allocation2 + $0x108] sm:$0xff]
      %v2342 = vld [vmem:[#allocation2 + $0x110] sm:$0xff]
      %v2343 = vld [vmem:[#allocation2 + $0x118] sm:$0xff]
      %v2344 = vld [vmem:[#allocation2 + $0x120] sm:$0xff]
      %v2345 = vld [vmem:[#allocation2 + $0x128] sm:$0xff]
      %v2346 = vld [vmem:[#allocation2 + $0x130] sm:$0xff]
      %v2347 = vld [vmem:[#allocation2 + $0x138] sm:$0xff]
      %v2348 = vld [vmem:[#allocation2 + $0x140] sm:$0xff]
      %v2349 = vld [vmem:[#allocation2 + $0x148] sm:$0xff]
      %v2350 = vld [vmem:[#allocation2 + $0x150] sm:$0xff]
      %v2351 = vld [vmem:[#allocation2 + $0x158] sm:$0xff]
      %v2352 = vld [vmem:[#allocation2 + $0x160] sm:$0xff]
      %v2353 = vld [vmem:[#allocation2 + $0x168] sm:$0xff]
      %v2354 = vld [vmem:[#allocation2 + $0x170] sm:$0xff]
      %v2355 = vld [vmem:[#allocation2 + $0x178] sm:$0xff]
      %v2356 = vld [vmem:[#allocation2 + $0x180] sm:$0xff]
      %v2357 = vld [vmem:[#allocation2 + $0x188] sm:$0xff]
      %v2358 = vld [vmem:[#allocation2 + $0x190] sm:$0xff]
      %v2359 = vld [vmem:[#allocation2 + $0x198] sm:$0xff]
      %v2360 = vld [vmem:[#allocation2 + $0x1a0] sm:$0xff]
      %v2361 = vld [vmem:[#allocation2 + $0x1a8] sm:$0xff]
      %v2362 = vld [vmem:[#allocation2 + $0x1b0] sm:$0xff]
      %v2363 = vld [vmem:[#allocation2 + $0x1b8] sm:$0xff]
      %v2364 = vld [vmem:[#allocation2 + $0x1c0] sm:$0xff]
      %v2365 = vld [vmem:[#allocation2 + $0x1c8] sm:$0xff]
      %v2366 = vld [vmem:[#allocation2 + $0x1d0] sm:$0xff]
      %v2367 = vld [vmem:[#allocation2 + $0x1d8] sm:$0xff]
      %v2368 = vld [vmem:[#allocation2 + $0x1e0] sm:$0xff]
      %v2369 = vld [vmem:[#allocation2 + $0x1e8] sm:$0xff]
      %v2370 = vld [vmem:[#allocation2 + $0x1f0] sm:$0xff]
      %v2371 = vld [vmem:[#allocation2 + $0x1f8] sm:$0xff]
      %vm2372 = vcmask 64512
      %v2374 = vsel %vm2372, %v2244, 0
      %v2377 = vsel %vm2372, %v2245, 0
      %v2380 = vsel %vm2372, %v2246, 0
      %v2383 = vsel %vm2372, %v2247, 0
      %v2386 = vsel %vm2372, %v2248, 0
      %v2389 = vsel %vm2372, %v2249, 0
      %v2392 = vsel %vm2372, %v2250, 0
      %v2395 = vsel %vm2372, %v2251, 0
      %v2398 = vsel %vm2372, %v2308, 0
      %v2401 = vsel %vm2372, %v2309, 0
      %v2404 = vsel %vm2372, %v2310, 0
      %v2407 = vsel %vm2372, %v2311, 0
      %v2410 = vsel %vm2372, %v2312, 0
      %v2413 = vsel %vm2372, %v2313, 0
      %v2416 = vsel %vm2372, %v2314, 0
      %v2419 = vsel %vm2372, %v2315, 0
      %v2422 = vsel %vm2372, %v2316, 0
      %v2425 = vsel %vm2372, %v2317, 0
      %v2428 = vsel %vm2372, %v2318, 0
      %v2431 = vsel %vm2372, %v2319, 0
      %v2434 = vsel %vm2372, %v2320, 0
      %v2437 = vsel %vm2372, %v2321, 0
      %v2440 = vsel %vm2372, %v2322, 0
      %v2443 = vsel %vm2372, %v2323, 0
      %2445 = vmatprep.subr.bf16.mxu0 0
      %2446 = vmatpush1.bf16.xpose.msra.mxu0 %v2398
      %2447 = vmatprep.subr.bf16.mxu0 0
      %2448 = vmatpush1.bf16.xpose.msra.mxu0 %v2401
      %2449 = vmatprep.subr.bf16.mxu0 0
      %2450 = vmatpush1.bf16.xpose.msra.mxu0 %v2404
      %2451 = vmatprep.subr.bf16.mxu0 0
      %2452 = vmatpush1.bf16.xpose.msra.mxu0 %v2407
      %2453 = vmatprep.subr.bf16.mxu0 0
      %2454 = vmatpush1.bf16.xpose.msra.mxu0 %v2410
      %2455 = vmatprep.subr.bf16.mxu0 0
      %2456 = vmatpush1.bf16.xpose.msra.mxu0 %v2413
      %2457 = vmatprep.subr.bf16.mxu0 0
      %2458 = vmatpush1.bf16.xpose.msra.mxu0 %v2416
      %2459 = vmatprep.subr.bf16.mxu0 0
      %2460 = vmatpush1.bf16.xpose.msra.mxu0 %v2419
      %2461 = vmatprep.subr.bf16.mxu0 0
      %2462 = vmatpush1.bf16.xpose.msra.mxu0 %v2422
      %2463 = vmatprep.subr.bf16.mxu0 0
      %2464 = vmatpush1.bf16.xpose.msra.mxu0 %v2425
      %2465 = vmatprep.subr.bf16.mxu0 0
      %2466 = vmatpush1.bf16.xpose.msra.mxu0 %v2428
      %2467 = vmatprep.subr.bf16.mxu0 0
      %2468 = vmatpush1.bf16.xpose.msra.mxu0 %v2431
      %2469 = vmatprep.subr.bf16.mxu0 0
      %2470 = vmatpush1.bf16.xpose.msra.mxu0 %v2434
      %2471 = vmatprep.subr.bf16.mxu0 0
      %2472 = vmatpush1.bf16.xpose.msra.mxu0 %v2437
      %2473 = vmatprep.subr.bf16.mxu0 0
      %2474 = vmatpush1.bf16.xpose.msra.mxu0 %v2440
      %2475 = vmatprep.subr.bf16.mxu0 0
      %2476 = vmatpush1.bf16.xpose.msra.mxu0 %v2443
      %2477 = vmatprep.mubr.bf16.mxu0 0
      %2478 = vmatmul.mubr.bf16.gmra.mrb[0].mxu0 %v2374
      %v2479 = vpop.f32.mrb[0].mxu0
      %v2480 = vadd.f32 0.0, %v2479
      %v2481 = vpop.f32.mrb[0].mxu0
      %v2482 = vadd.f32 0.0, %v2481
      %v2483 = vpop.f32.mrb[0].mxu0
      %v2484 = vadd.f32 0.0, %v2483
      %v2485 = vpop.f32.mrb[0].mxu0
      %v2486 = vadd.f32 0.0, %v2485
      %2487 = vmatprep.mubr.bf16.mxu0 0
      %2488 = vmatmul.mubr.bf16.gmra.mrb[0].mxu0 %v2377
      %v2489 = vpop.f32.mrb[0].mxu0
      %v2490 = vadd.f32 0.0, %v2489
      %v2491 = vpop.f32.mrb[0].mxu0
      %v2492 = vadd.f32 0.0, %v2491
      %v2493 = vpop.f32.mrb[0].mxu0
      %v2494 = vadd.f32 0.0, %v2493
      %v2495 = vpop.f32.mrb[0].mxu0
      %v2496 = vadd.f32 0.0, %v2495
      %2497 = vmatprep.mubr.bf16.mxu0 0
      %2498 = vmatmul.mubr.bf16.gmra.mrb[0].mxu0 %v2380
      %v2499 = vpop.f32.mrb[0].mxu0
      %v2500 = vadd.f32 0.0, %v2499
      %v2501 = vpop.f32.mrb[0].mxu0
      %v2502 = vadd.f32 0.0, %v2501
      %v2503 = vpop.f32.mrb[0].mxu0
      %v2504 = vadd.f32 0.0, %v2503
      %v2505 = vpop.f32.mrb[0].mxu0
      %v2506 = vadd.f32 0.0, %v2505
      %2507 = vmatprep.mubr.bf16.mxu0 0
      %2508 = vmatmul.mubr.bf16.gmra.mrb[0].mxu0 %v2383
      %v2509 = vpop.f32.mrb[0].mxu0
      %v2510 = vadd.f32 0.0, %v2509
      %v2511 = vpop.f32.mrb[0].mxu0
      %v2512 = vadd.f32 0.0, %v2511
      %v2513 = vpop.f32.mrb[0].mxu0
      %v2514 = vadd.f32 0.0, %v2513
      %v2515 = vpop.f32.mrb[0].mxu0
      %v2516 = vadd.f32 0.0, %v2515
      %2517 = vmatprep.mubr.bf16.mxu0 0
      %2518 = vmatmul.mubr.bf16.gmra.mrb[0].mxu0 %v2386
      %v2519 = vpop.f32.mrb[0].mxu0
      %v2520 = vadd.f32 0.0, %v2519
      %v2521 = vpop.f32.mrb[0].mxu0
      %v2522 = vadd.f32 0.0, %v2521
      %v2523 = vpop.f32.mrb[0].mxu0
      %v2524 = vadd.f32 0.0, %v2523
      %v2525 = vpop.f32.mrb[0].mxu0
      %v2526 = vadd.f32 0.0, %v2525
      %2527 = vmatprep.mubr.bf16.mxu0 0
      %2528 = vmatmul.mubr.bf16.gmra.mrb[0].mxu0 %v2389
      %v2529 = vpop.f32.mrb[0].mxu0
      %v2530 = vadd.f32 0.0, %v2529
      %v2531 = vpop.f32.mrb[0].mxu0
      %v2532 = vadd.f32 0.0, %v2531
      %v2533 = vpop.f32.mrb[0].mxu0
      %v2534 = vadd.f32 0.0, %v2533
      %v2535 = vpop.f32.mrb[0].mxu0
      %v2536 = vadd.f32 0.0, %v2535
      %2537 = vmatprep.mubr.bf16.mxu0 0
      %2538 = vmatmul.mubr.bf16.gmra.mrb[0].mxu0 %v2392
      %v2539 = vpop.f32.mrb[0].mxu0
      %v2540 = vadd.f32 0.0, %v2539
      %v2541 = vpop.f32.mrb[0].mxu0
      %v2542 = vadd.f32 0.0, %v2541
      %v2543 = vpop.f32.mrb[0].mxu0
      %v2544 = vadd.f32 0.0, %v2543
      %v2545 = vpop.f32.mrb[0].mxu0
      %v2546 = vadd.f32 0.0, %v2545
      %2547 = vmatprep.mubr.bf16.mxu0 0
      %2548 = vmatmul.mubr.bf16.gmra.mrb[0].mxu0 %v2395
      %v2549 = vpop.f32.mrb[0].mxu0
      %v2550 = vadd.f32 0.0, %v2549
      %v2551 = vpop.f32.mrb[0].mxu0
      %v2552 = vadd.f32 0.0, %v2551
      %v2553 = vpop.f32.mrb[0].mxu0
      %v2554 = vadd.f32 0.0, %v2553
      %v2555 = vpop.f32.mrb[0].mxu0
      %v2556 = vadd.f32 0.0, %v2555
      %2557 = vdwg.mxu0
      %v2559 = vsel %vm2372, %v2261, 0
      %v2562 = vsel %vm2372, %v2263, 0
      %v2565 = vsel %vm2372, %v2265, 0
      %v2568 = vsel %vm2372, %v2267, 0
      %v2571 = vsel %vm2372, %v2269, 0
      %v2574 = vsel %vm2372, %v2271, 0
      %v2577 = vsel %vm2372, %v2273, 0
      %v2580 = vsel %vm2372, %v2275, 0
      %v2583 = vsel %vm2372, %v2324, 0
      %v2586 = vsel %vm2372, %v2325, 0
      %v2589 = vsel %vm2372, %v2326, 0
      %v2592 = vsel %vm2372, %v2327, 0
      %v2595 = vsel %vm2372, %v2328, 0
      %v2598 = vsel %vm2372, %v2329, 0
      %v2601 = vsel %vm2372, %v2330, 0
      %v2604 = vsel %vm2372, %v2331, 0
      %v2607 = vsel %vm2372, %v2332, 0
      %v2610 = vsel %vm2372, %v2333, 0
      %v2613 = vsel %vm2372, %v2334, 0
      %v2616 = vsel %vm2372, %v2335, 0
      %v2619 = vsel %vm2372, %v2336, 0
      %v2622 = vsel %vm2372, %v2337, 0
      %v2625 = vsel %vm2372, %v2338, 0
      %v2628 = vsel %vm2372, %v2339, 0
      %2630 = vmatprep.subr.bf16.mxu0 0
      %2631 = vmatpush1.bf16.xpose.msra.mxu0 %v2583
      %2632 = vmatprep.subr.bf16.mxu0 0
      %2633 = vmatpush1.bf16.xpose.msra.mxu0 %v2586
      %2634 = vmatprep.subr.bf16.mxu0 0
      %2635 = vmatpush1.bf16.xpose.msra.mxu0 %v2589
      %2636 = vmatprep.subr.bf16.mxu0 0
      %2637 = vmatpush1.bf16.xpose.msra.mxu0 %v2592
      %2638 = vmatprep.subr.bf16.mxu0 0
      %2639 = vmatpush1.bf16.xpose.msra.mxu0 %v2595
      %2640 = vmatprep.subr.bf16.mxu0 0
      %2641 = vmatpush1.bf16.xpose.msra.mxu0 %v2598
      %2642 = vmatprep.subr.bf16.mxu0 0
      %2643 = vmatpush1.bf16.xpose.msra.mxu0 %v2601
      %2644 = vmatprep.subr.bf16.mxu0 0
      %2645 = vmatpush1.bf16.xpose.msra.mxu0 %v2604
      %2646 = vmatprep.subr.bf16.mxu0 0
      %2647 = vmatpush1.bf16.xpose.msra.mxu0 %v2607
      %2648 = vmatprep.subr.bf16.mxu0 0
      %2649 = vmatpush1.bf16.xpose.msra.mxu0 %v2610
      %2650 = vmatprep.subr.bf16.mxu0 0
      %2651 = vmatpush1.bf16.xpose.msra.mxu0 %v2613
      %2652 = vmatprep.subr.bf16.mxu0 0
      %2653 = vmatpush1.bf16.xpose.msra.mxu0 %v2616
      %2654 = vmatprep.subr.bf16.mxu0 0
      %2655 = vmatpush1.bf16.xpose.msra.mxu0 %v2619
      %2656 = vmatprep.subr.bf16.mxu0 0
      %2657 = vmatpush1.bf16.xpose.msra.mxu0 %v2622
      %2658 = vmatprep.subr.bf16.mxu0 0
      %2659 = vmatpush1.bf16.xpose.msra.mxu0 %v2625
      %2660 = vmatprep.subr.bf16.mxu0 0
      %2661 = vmatpush1.bf16.xpose.msra.mxu0 %v2628
      %2662 = vmatprep.mubr.bf16.mxu0 0
      %2663 = vmatmul.mubr.bf16.gmra.mrb[0].mxu0 %v2559
      %v2664 = vpop.f32.mrb[0].mxu0
      %v2665 = vadd.f32 0.0, %v2664
      %v2666 = vpop.f32.mrb[0].mxu0
      %v2667 = vadd.f32 0.0, %v2666
      %v2668 = vpop.f32.mrb[0].mxu0
      %v2669 = vadd.f32 0.0, %v2668
      %v2670 = vpop.f32.mrb[0].mxu0
      %v2671 = vadd.f32 0.0, %v2670
      %2672 = vmatprep.mubr.bf16.mxu0 0
      %2673 = vmatmul.mubr.bf16.gmra.mrb[0].mxu0 %v2562
      %v2674 = vpop.f32.mrb[0].mxu0
      %v2675 = vadd.f32 0.0, %v2674
      %v2676 = vpop.f32.mrb[0].mxu0
      %v2677 = vadd.f32 0.0, %v2676
      %v2678 = vpop.f32.mrb[0].mxu0
      %v2679 = vadd.f32 0.0, %v2678
      %v2680 = vpop.f32.mrb[0].mxu0
      %v2681 = vadd.f32 0.0, %v2680
      %2682 = vmatprep.mubr.bf16.mxu0 0
      %2683 = vmatmul.mubr.bf16.gmra.mrb[0].mxu0 %v2565
      %v2684 = vpop.f32.mrb[0].mxu0
      %v2685 = vadd.f32 0.0, %v2684
      %v2686 = vpop.f32.mrb[0].mxu0
      %v2687 = vadd.f32 0.0, %v2686
      %v2688 = vpop.f32.mrb[0].mxu0
      %v2689 = vadd.f32 0.0, %v2688
      %v2690 = vpop.f32.mrb[0].mxu0
      %v2691 = vadd.f32 0.0, %v2690
      %2692 = vmatprep.mubr.bf16.mxu0 0
      %2693 = vmatmul.mubr.bf16.gmra.mrb[0].mxu0 %v2568
      %v2694 = vpop.f32.mrb[0].mxu0
      %v2695 = vadd.f32 0.0, %v2694
      %v2696 = vpop.f32.mrb[0].mxu0
      %v2697 = vadd.f32 0.0, %v2696
      %v2698 = vpop.f32.mrb[0].mxu0
      %v2699 = vadd.f32 0.0, %v2698
      %v2700 = vpop.f32.mrb[0].mxu0
      %v2701 = vadd.f32 0.0, %v2700
      %2702 = vmatprep.mubr.bf16.mxu0 0
      %2703 = vmatmul.mubr.bf16.gmra.mrb[0].mxu0 %v2571
      %v2704 = vpop.f32.mrb[0].mxu0
      %v2705 = vadd.f32 0.0, %v2704
      %v2706 = vpop.f32.mrb[0].mxu0
      %v2707 = vadd.f32 0.0, %v2706
      %v2708 = vpop.f32.mrb[0].mxu0
      %v2709 = vadd.f32 0.0, %v2708
      %v2710 = vpop.f32.mrb[0].mxu0
      %v2711 = vadd.f32 0.0, %v2710
      %2712 = vmatprep.mubr.bf16.mxu0 0
      %2713 = vmatmul.mubr.bf16.gmra.mrb[0].mxu0 %v2574
      %v2714 = vpop.f32.mrb[0].mxu0
      %v2715 = vadd.f32 0.0, %v2714
      %v2716 = vpop.f32.mrb[0].mxu0
      %v2717 = vadd.f32 0.0, %v2716
      %v2718 = vpop.f32.mrb[0].mxu0
      %v2719 = vadd.f32 0.0, %v2718
      %v2720 = vpop.f32.mrb[0].mxu0
      %v2721 = vadd.f32 0.0, %v2720
      %2722 = vmatprep.mubr.bf16.mxu0 0
      %2723 = vmatmul.mubr.bf16.gmra.mrb[0].mxu0 %v2577
      %v2724 = vpop.f32.mrb[0].mxu0
      %v2725 = vadd.f32 0.0, %v2724
      %v2726 = vpop.f32.mrb[0].mxu0
      %v2727 = vadd.f32 0.0, %v2726
      %v2728 = vpop.f32.mrb[0].mxu0
      %v2729 = vadd.f32 0.0, %v2728
      %v2730 = vpop.f32.mrb[0].mxu0
      %v2731 = vadd.f32 0.0, %v2730
      %2732 = vmatprep.mubr.bf16.mxu0 0
      %2733 = vmatmul.mubr.bf16.gmra.mrb[0].mxu0 %v2580
      %v2734 = vpop.f32.mrb[0].mxu0
      %v2735 = vadd.f32 0.0, %v2734
      %v2736 = vpop.f32.mrb[0].mxu0
      %v2737 = vadd.f32 0.0, %v2736
      %v2738 = vpop.f32.mrb[0].mxu0
      %v2739 = vadd.f32 0.0, %v2738
      %v2740 = vpop.f32.mrb[0].mxu0
      %v2741 = vadd.f32 0.0, %v2740
      %2742 = vdwg.mxu0
      %v2744 = vsel %vm2372, %v2277, 0
      %v2747 = vsel %vm2372, %v2279, 0
      %v2750 = vsel %vm2372, %v2281, 0
      %v2753 = vsel %vm2372, %v2283, 0
      %v2756 = vsel %vm2372, %v2285, 0
      %v2759 = vsel %vm2372, %v2287, 0
      %v2762 = vsel %vm2372, %v2289, 0
      %v2765 = vsel %vm2372, %v2291, 0
      %v2768 = vsel %vm2372, %v2340, 0
      %v2771 = vsel %vm2372, %v2341, 0
      %v2774 = vsel %vm2372, %v2342, 0
      %v2777 = vsel %vm2372, %v2343, 0
      %v2780 = vsel %vm2372, %v2344, 0
      %v2783 = vsel %vm2372, %v2345, 0
      %v2786 = vsel %vm2372, %v2346, 0
      %v2789 = vsel %vm2372, %v2347, 0
      %v2792 = vsel %vm2372, %v2348, 0
      %v2795 = vsel %vm2372, %v2349, 0
      %v2798 = vsel %vm2372, %v2350, 0
      %v2801 = vsel %vm2372, %v2351, 0
      %v2804 = vsel %vm2372, %v2352, 0
      %v2807 = vsel %vm2372, %v2353, 0
      %v2810 = vsel %vm2372, %v2354, 0
      %v2813 = vsel %vm2372, %v2355, 0
      %2815 = vmatprep.subr.bf16.mxu0 0
      %2816 = vmatpush1.bf16.xpose.msra.mxu0 %v2768
      %2817 = vmatprep.subr.bf16.mxu0 0
      %2818 = vmatpush1.bf16.xpose.msra.mxu0 %v2771
      %2819 = vmatprep.subr.bf16.mxu0 0
      %2820 = vmatpush1.bf16.xpose.msra.mxu0 %v2774
      %2821 = vmatprep.subr.bf16.mxu0 0
      %2822 = vmatpush1.bf16.xpose.msra.mxu0 %v2777
      %2823 = vmatprep.subr.bf16.mxu0 0
      %2824 = vmatpush1.bf16.xpose.msra.mxu0 %v2780
      %2825 = vmatprep.subr.bf16.mxu0 0
      %2826 = vmatpush1.bf16.xpose.msra.mxu0 %v2783
      %2827 = vmatprep.subr.bf16.mxu0 0
      %2828 = vmatpush1.bf16.xpose.msra.mxu0 %v2786
      %2829 = vmatprep.subr.bf16.mxu0 0
      %2830 = vmatpush1.bf16.xpose.msra.mxu0 %v2789
      %2831 = vmatprep.subr.bf16.mxu0 0
      %2832 = vmatpush1.bf16.xpose.msra.mxu0 %v2792
      %2833 = vmatprep.subr.bf16.mxu0 0
      %2834 = vmatpush1.bf16.xpose.msra.mxu0 %v2795
      %2835 = vmatprep.subr.bf16.mxu0 0
      %2836 = vmatpush1.bf16.xpose.msra.mxu0 %v2798
      %2837 = vmatprep.subr.bf16.mxu0 0
      %2838 = vmatpush1.bf16.xpose.msra.mxu0 %v2801
      %2839 = vmatprep.subr.bf16.mxu0 0
      %2840 = vmatpush1.bf16.xpose.msra.mxu0 %v2804
      %2841 = vmatprep.subr.bf16.mxu0 0
      %2842 = vmatpush1.bf16.xpose.msra.mxu0 %v2807
      %2843 = vmatprep.subr.bf16.mxu0 0
      %2844 = vmatpush1.bf16.xpose.msra.mxu0 %v2810
      %2845 = vmatprep.subr.bf16.mxu0 0
      %2846 = vmatpush1.bf16.xpose.msra.mxu0 %v2813
      %2847 = vmatprep.mubr.bf16.mxu0 0
      %2848 = vmatmul.mubr.bf16.gmra.mrb[0].mxu0 %v2744
      %v2849 = vpop.f32.mrb[0].mxu0
      %v2850 = vadd.f32 0.0, %v2849
      %v2851 = vpop.f32.mrb[0].mxu0
      %v2852 = vadd.f32 0.0, %v2851
      %v2853 = vpop.f32.mrb[0].mxu0
      %v2854 = vadd.f32 0.0, %v2853
      %v2855 = vpop.f32.mrb[0].mxu0
      %v2856 = vadd.f32 0.0, %v2855
      %2857 = vmatprep.mubr.bf16.mxu0 0
      %2858 = vmatmul.mubr.bf16.gmra.mrb[0].mxu0 %v2747
      %v2859 = vpop.f32.mrb[0].mxu0
      %v2860 = vadd.f32 0.0, %v2859
      %v2861 = vpop.f32.mrb[0].mxu0
      %v2862 = vadd.f32 0.0, %v2861
      %v2863 = vpop.f32.mrb[0].mxu0
      %v2864 = vadd.f32 0.0, %v2863
      %v2865 = vpop.f32.mrb[0].mxu0
      %v2866 = vadd.f32 0.0, %v2865
      %2867 = vmatprep.mubr.bf16.mxu0 0
      %2868 = vmatmul.mubr.bf16.gmra.mrb[0].mxu0 %v2750
      %v2869 = vpop.f32.mrb[0].mxu0
      %v2870 = vadd.f32 0.0, %v2869
      %v2871 = vpop.f32.mrb[0].mxu0
      %v2872 = vadd.f32 0.0, %v2871
      %v2873 = vpop.f32.mrb[0].mxu0
      %v2874 = vadd.f32 0.0, %v2873
      %v2875 = vpop.f32.mrb[0].mxu0
      %v2876 = vadd.f32 0.0, %v2875
      %2877 = vmatprep.mubr.bf16.mxu0 0
      %2878 = vmatmul.mubr.bf16.gmra.mrb[0].mxu0 %v2753
      %v2879 = vpop.f32.mrb[0].mxu0
      %v2880 = vadd.f32 0.0, %v2879
      %v2881 = vpop.f32.mrb[0].mxu0
      %v2882 = vadd.f32 0.0, %v2881
      %v2883 = vpop.f32.mrb[0].mxu0
      %v2884 = vadd.f32 0.0, %v2883
      %v2885 = vpop.f32.mrb[0].mxu0
      %v2886 = vadd.f32 0.0, %v2885
      %2887 = vmatprep.mubr.bf16.mxu0 0
      %2888 = vmatmul.mubr.bf16.gmra.mrb[0].mxu0 %v2756
      %v2889 = vpop.f32.mrb[0].mxu0
      %v2890 = vadd.f32 0.0, %v2889
      %v2891 = vpop.f32.mrb[0].mxu0
      %v2892 = vadd.f32 0.0, %v2891
      %v2893 = vpop.f32.mrb[0].mxu0
      %v2894 = vadd.f32 0.0, %v2893
      %v2895 = vpop.f32.mrb[0].mxu0
      %v2896 = vadd.f32 0.0, %v2895
      %2897 = vmatprep.mubr.bf16.mxu0 0
      %2898 = vmatmul.mubr.bf16.gmra.mrb[0].mxu0 %v2759
      %v2899 = vpop.f32.mrb[0].mxu0
      %v2900 = vadd.f32 0.0, %v2899
      %v2901 = vpop.f32.mrb[0].mxu0
      %v2902 = vadd.f32 0.0, %v2901
      %v2903 = vpop.f32.mrb[0].mxu0
      %v2904 = vadd.f32 0.0, %v2903
      %v2905 = vpop.f32.mrb[0].mxu0
      %v2906 = vadd.f32 0.0, %v2905
      %2907 = vmatprep.mubr.bf16.mxu0 0
      %2908 = vmatmul.mubr.bf16.gmra.mrb[0].mxu0 %v2762
      %v2909 = vpop.f32.mrb[0].mxu0
      %v2910 = vadd.f32 0.0, %v2909
      %v2911 = vpop.f32.mrb[0].mxu0
      %v2912 = vadd.f32 0.0, %v2911
      %v2913 = vpop.f32.mrb[0].mxu0
      %v2914 = vadd.f32 0.0, %v2913
      %v2915 = vpop.f32.mrb[0].mxu0
      %v2916 = vadd.f32 0.0, %v2915
      %2917 = vmatprep.mubr.bf16.mxu0 0
      %2918 = vmatmul.mubr.bf16.gmra.mrb[0].mxu0 %v2765
      %v2919 = vpop.f32.mrb[0].mxu0
      %v2920 = vadd.f32 0.0, %v2919
      %v2921 = vpop.f32.mrb[0].mxu0
      %v2922 = vadd.f32 0.0, %v2921
      %v2923 = vpop.f32.mrb[0].mxu0
      %v2924 = vadd.f32 0.0, %v2923
      %v2925 = vpop.f32.mrb[0].mxu0
      %v2926 = vadd.f32 0.0, %v2925
      %2927 = vdwg.mxu0
      %v2929 = vsel %vm2372, %v2293, 0
      %v2932 = vsel %vm2372, %v2295, 0
      %v2935 = vsel %vm2372, %v2297, 0
      %v2938 = vsel %vm2372, %v2299, 0
      %v2941 = vsel %vm2372, %v2301, 0
      %v2944 = vsel %vm2372, %v2303, 0
      %v2947 = vsel %vm2372, %v2305, 0
      %v2950 = vsel %vm2372, %v2307, 0
      %v2953 = vsel %vm2372, %v2356, 0
      %v2956 = vsel %vm2372, %v2357, 0
      %v2959 = vsel %vm2372, %v2358, 0
      %v2962 = vsel %vm2372, %v2359, 0
      %v2965 = vsel %vm2372, %v2360, 0
      %v2968 = vsel %vm2372, %v2361, 0
      %v2971 = vsel %vm2372, %v2362, 0
      %v2974 = vsel %vm2372, %v2363, 0
      %v2977 = vsel %vm2372, %v2364, 0
      %v2980 = vsel %vm2372, %v2365, 0
      %v2983 = vsel %vm2372, %v2366, 0
      %v2986 = vsel %vm2372, %v2367, 0
      %v2989 = vsel %vm2372, %v2368, 0
      %v2992 = vsel %vm2372, %v2369, 0
      %v2995 = vsel %vm2372, %v2370, 0
      %v2998 = vsel %vm2372, %v2371, 0
      %3000 = vmatprep.subr.bf16.mxu0 0
      %3001 = vmatpush1.bf16.xpose.msra.mxu0 %v2953
      %3002 = vmatprep.subr.bf16.mxu0 0
      %3003 = vmatpush1.bf16.xpose.msra.mxu0 %v2956
      %3004 = vmatprep.subr.bf16.mxu0 0
      %3005 = vmatpush1.bf16.xpose.msra.mxu0 %v2959
      %3006 = vmatprep.subr.bf16.mxu0 0
      %3007 = vmatpush1.bf16.xpose.msra.mxu0 %v2962
      %3008 = vmatprep.subr.bf16.mxu0 0
      %3009 = vmatpush1.bf16.xpose.msra.mxu0 %v2965
      %3010 = vmatprep.subr.bf16.mxu0 0
      %3011 = vmatpush1.bf16.xpose.msra.mxu0 %v2968
      %3012 = vmatprep.subr.bf16.mxu0 0
      %3013 = vmatpush1.bf16.xpose.msra.mxu0 %v2971
      %3014 = vmatprep.subr.bf16.mxu0 0
      %3015 = vmatpush1.bf16.xpose.msra.mxu0 %v2974
      %3016 = vmatprep.subr.bf16.mxu0 0
      %3017 = vmatpush1.bf16.xpose.msra.mxu0 %v2977
      %3018 = vmatprep.subr.bf16.mxu0 0
      %3019 = vmatpush1.bf16.xpose.msra.mxu0 %v2980
      %3020 = vmatprep.subr.bf16.mxu0 0
      %3021 = vmatpush1.bf16.xpose.msra.mxu0 %v2983
      %3022 = vmatprep.subr.bf16.mxu0 0
      %3023 = vmatpush1.bf16.xpose.msra.mxu0 %v2986
      %3024 = vmatprep.subr.bf16.mxu0 0
      %3025 = vmatpush1.bf16.xpose.msra.mxu0 %v2989
      %3026 = vmatprep.subr.bf16.mxu0 0
      %3027 = vmatpush1.bf16.xpose.msra.mxu0 %v2992
      %3028 = vmatprep.subr.bf16.mxu0 0
      %3029 = vmatpush1.bf16.xpose.msra.mxu0 %v2995
      %3030 = vmatprep.subr.bf16.mxu0 0
      %3031 = vmatpush1.bf16.xpose.msra.mxu0 %v2998
      %3032 = vmatprep.mubr.bf16.mxu0 0
      %3033 = vmatmul.mubr.bf16.gmra.mrb[0].mxu0 %v2929
      %v3034 = vpop.f32.mrb[0].mxu0
      %v3035 = vadd.f32 0.0, %v3034
      %v3036 = vpop.f32.mrb[0].mxu0
      %v3037 = vadd.f32 0.0, %v3036
      %v3038 = vpop.f32.mrb[0].mxu0
      %v3039 = vadd.f32 0.0, %v3038
      %v3040 = vpop.f32.mrb[0].mxu0
      %v3041 = vadd.f32 0.0, %v3040
      %3042 = vmatprep.mubr.bf16.mxu0 0
      %3043 = vmatmul.mubr.bf16.gmra.mrb[0].mxu0 %v2932
      %v3044 = vpop.f32.mrb[0].mxu0
      %v3045 = vadd.f32 0.0, %v3044
      %v3046 = vpop.f32.mrb[0].mxu0
      %v3047 = vadd.f32 0.0, %v3046
      %v3048 = vpop.f32.mrb[0].mxu0
      %v3049 = vadd.f32 0.0, %v3048
      %v3050 = vpop.f32.mrb[0].mxu0
      %v3051 = vadd.f32 0.0, %v3050
      %3052 = vmatprep.mubr.bf16.mxu0 0
      %3053 = vmatmul.mubr.bf16.gmra.mrb[0].mxu0 %v2935
      %v3054 = vpop.f32.mrb[0].mxu0
      %v3055 = vadd.f32 0.0, %v3054
      %v3056 = vpop.f32.mrb[0].mxu0
      %v3057 = vadd.f32 0.0, %v3056
      %v3058 = vpop.f32.mrb[0].mxu0
      %v3059 = vadd.f32 0.0, %v3058
      %v3060 = vpop.f32.mrb[0].mxu0
      %v3061 = vadd.f32 0.0, %v3060
      %3062 = vmatprep.mubr.bf16.mxu0 0
      %3063 = vmatmul.mubr.bf16.gmra.mrb[0].mxu0 %v2938
      %v3064 = vpop.f32.mrb[0].mxu0
      %v3065 = vadd.f32 0.0, %v3064
      %v3066 = vpop.f32.mrb[0].mxu0
      %v3067 = vadd.f32 0.0, %v3066
      %v3068 = vpop.f32.mrb[0].mxu0
      %v3069 = vadd.f32 0.0, %v3068
      %v3070 = vpop.f32.mrb[0].mxu0
      %v3071 = vadd.f32 0.0, %v3070
      %3072 = vmatprep.mubr.bf16.mxu0 0
      %3073 = vmatmul.mubr.bf16.gmra.mrb[0].mxu0 %v2941
      %v3074 = vpop.f32.mrb[0].mxu0
      %v3075 = vadd.f32 0.0, %v3074
      %v3076 = vpop.f32.mrb[0].mxu0
      %v3077 = vadd.f32 0.0, %v3076
      %v3078 = vpop.f32.mrb[0].mxu0
      %v3079 = vadd.f32 0.0, %v3078
      %v3080 = vpop.f32.mrb[0].mxu0
      %v3081 = vadd.f32 0.0, %v3080
      %3082 = vmatprep.mubr.bf16.mxu0 0
      %3083 = vmatmul.mubr.bf16.gmra.mrb[0].mxu0 %v2944
      %v3084 = vpop.f32.mrb[0].mxu0
      %v3085 = vadd.f32 0.0, %v3084
      %v3086 = vpop.f32.mrb[0].mxu0
      %v3087 = vadd.f32 0.0, %v3086
      %v3088 = vpop.f32.mrb[0].mxu0
      %v3089 = vadd.f32 0.0, %v3088
      %v3090 = vpop.f32.mrb[0].mxu0
      %v3091 = vadd.f32 0.0, %v3090
      %3092 = vmatprep.mubr.bf16.mxu0 0
      %3093 = vmatmul.mubr.bf16.gmra.mrb[0].mxu0 %v2947
      %v3094 = vpop.f32.mrb[0].mxu0
      %v3095 = vadd.f32 0.0, %v3094
      %v3096 = vpop.f32.mrb[0].mxu0
      %v3097 = vadd.f32 0.0, %v3096
      %v3098 = vpop.f32.mrb[0].mxu0
      %v3099 = vadd.f32 0.0, %v3098
      %v3100 = vpop.f32.mrb[0].mxu0
      %v3101 = vadd.f32 0.0, %v3100
      %3102 = vmatprep.mubr.bf16.mxu0 0
      %3103 = vmatmul.mubr.bf16.gmra.mrb[0].mxu0 %v2950
      %v3104 = vpop.f32.mrb[0].mxu0
      %v3105 = vadd.f32 0.0, %v3104
      %v3106 = vpop.f32.mrb[0].mxu0
      %v3107 = vadd.f32 0.0, %v3106
      %v3108 = vpop.f32.mrb[0].mxu0
      %v3109 = vadd.f32 0.0, %v3108
      %v3110 = vpop.f32.mrb[0].mxu0
      %v3111 = vadd.f32 0.0, %v3110
      %3112 = vdwg.mxu0
      %v3113 = vmax.f32 %v2480, %v2482
      %3114 = vmax.xlane.f32.xlu0 %v3113
      %v3115 = vpop.xlane.xlu0 %3114
      %v3116 = vmax.f32 %v2484, %v2486
      %3117 = vmax.xlane.f32.xlu0 %v3116
      %v3118 = vpop.xlane.xlu0 %3117
      %v3119 = vmax.f32 %v2490, %v2492
      %3120 = vmax.xlane.f32.xlu0 %v3119
      %v3121 = vpop.xlane.xlu0 %3120
      %v3122 = vmax.f32 %v2494, %v2496
      %3123 = vmax.xlane.f32.xlu0 %v3122
      %v3124 = vpop.xlane.xlu0 %3123
      %v3125 = vmax.f32 %v2500, %v2502
      %3126 = vmax.xlane.f32.xlu0 %v3125
      %v3127 = vpop.xlane.xlu0 %3126
      %v3128 = vmax.f32 %v2504, %v2506
      %3129 = vmax.xlane.f32.xlu0 %v3128
      %v3130 = vpop.xlane.xlu0 %3129
      %v3131 = vmax.f32 %v2510, %v2512
      %3132 = vmax.xlane.f32.xlu0 %v3131
      %v3133 = vpop.xlane.xlu0 %3132
      %v3134 = vmax.f32 %v2514, %v2516
      %3135 = vmax.xlane.f32.xlu0 %v3134
      %v3136 = vpop.xlane.xlu0 %3135
      %v3137 = vmax.f32 %v2520, %v2522
      %3138 = vmax.xlane.f32.xlu0 %v3137
      %v3139 = vpop.xlane.xlu0 %3138
      %v3140 = vmax.f32 %v2524, %v2526
      %3141 = vmax.xlane.f32.xlu0 %v3140
      %v3142 = vpop.xlane.xlu0 %3141
      %v3143 = vmax.f32 %v2530, %v2532
      %3144 = vmax.xlane.f32.xlu0 %v3143
      %v3145 = vpop.xlane.xlu0 %3144
      %v3146 = vmax.f32 %v2534, %v2536
      %3147 = vmax.xlane.f32.xlu0 %v3146
      %v3148 = vpop.xlane.xlu0 %3147
      %v3149 = vmax.f32 %v2540, %v2542
      %3150 = vmax.xlane.f32.xlu0 %v3149
      %v3151 = vpop.xlane.xlu0 %3150
      %v3152 = vmax.f32 %v2544, %v2546
      %3153 = vmax.xlane.f32.xlu0 %v3152
      %v3154 = vpop.xlane.xlu0 %3153
      %v3155 = vmax.f32 %v2550, %v2552
      %3156 = vmax.xlane.f32.xlu0 %v3155
      %v3157 = vpop.xlane.xlu0 %3156
      %v3158 = vmax.f32 %v2554, %v2556
      %3159 = vmax.xlane.f32.xlu0 %v3158
      %v3160 = vpop.xlane.xlu0 %3159
      %v3161 = vmax.f32 %v2665, %v2667
      %3162 = vmax.xlane.f32.xlu0 %v3161
      %v3163 = vpop.xlane.xlu0 %3162
      %v3164 = vmax.f32 %v2669, %v2671
      %3165 = vmax.xlane.f32.xlu0 %v3164
      %v3166 = vpop.xlane.xlu0 %3165
      %v3167 = vmax.f32 %v2675, %v2677
      %3168 = vmax.xlane.f32.xlu0 %v3167
      %v3169 = vpop.xlane.xlu0 %3168
      %v3170 = vmax.f32 %v2679, %v2681
      %3171 = vmax.xlane.f32.xlu0 %v3170
      %v3172 = vpop.xlane.xlu0 %3171
      %v3173 = vmax.f32 %v2685, %v2687
      %3174 = vmax.xlane.f32.xlu0 %v3173
      %v3175 = vpop.xlane.xlu0 %3174
      %v3176 = vmax.f32 %v2689, %v2691
      %3177 = vmax.xlane.f32.xlu0 %v3176
      %v3178 = vpop.xlane.xlu0 %3177
      %v3179 = vmax.f32 %v2695, %v2697
      %3180 = vmax.xlane.f32.xlu0 %v3179
      %v3181 = vpop.xlane.xlu0 %3180
      %v3182 = vmax.f32 %v2699, %v2701
      %3183 = vmax.xlane.f32.xlu0 %v3182
      %v3184 = vpop.xlane.xlu0 %3183
      %v3185 = vmax.f32 %v2705, %v2707
      %3186 = vmax.xlane.f32.xlu0 %v3185
      %v3187 = vpop.xlane.xlu0 %3186
      %v3188 = vmax.f32 %v2709, %v2711
      %3189 = vmax.xlane.f32.xlu0 %v3188
      %v3190 = vpop.xlane.xlu0 %3189
      %v3191 = vmax.f32 %v2715, %v2717
      %3192 = vmax.xlane.f32.xlu0 %v3191
      %v3193 = vpop.xlane.xlu0 %3192
      %v3194 = vmax.f32 %v2719, %v2721
      %3195 = vmax.xlane.f32.xlu0 %v3194
      %v3196 = vpop.xlane.xlu0 %3195
      %v3197 = vmax.f32 %v2725, %v2727
      %3198 = vmax.xlane.f32.xlu0 %v3197
      %v3199 = vpop.xlane.xlu0 %3198
      %v3200 = vmax.f32 %v2729, %v2731
      %3201 = vmax.xlane.f32.xlu0 %v3200
      %v3202 = vpop.xlane.xlu0 %3201
      %v3203 = vmax.f32 %v2735, %v2737
      %3204 = vmax.xlane.f32.xlu0 %v3203
      %v3205 = vpop.xlane.xlu0 %3204
      %v3206 = vmax.f32 %v2739, %v2741
      %3207 = vmax.xlane.f32.xlu0 %v3206
      %v3208 = vpop.xlane.xlu0 %3207
      %v3209 = vmax.f32 %v2850, %v2852
      %3210 = vmax.xlane.f32.xlu0 %v3209
      %v3211 = vpop.xlane.xlu0 %3210
      %v3212 = vmax.f32 %v2854, %v2856
      %3213 = vmax.xlane.f32.xlu0 %v3212
      %v3214 = vpop.xlane.xlu0 %3213
      %v3215 = vmax.f32 %v2860, %v2862
      %3216 = vmax.xlane.f32.xlu0 %v3215
      %v3217 = vpop.xlane.xlu0 %3216
      %v3218 = vmax.f32 %v2864, %v2866
      %3219 = vmax.xlane.f32.xlu0 %v3218
      %v3220 = vpop.xlane.xlu0 %3219
      %v3221 = vmax.f32 %v2870, %v2872
      %3222 = vmax.xlane.f32.xlu0 %v3221
      %v3223 = vpop.xlane.xlu0 %3222
      %v3224 = vmax.f32 %v2874, %v2876
      %3225 = vmax.xlane.f32.xlu0 %v3224
      %v3226 = vpop.xlane.xlu0 %3225
      %v3227 = vmax.f32 %v2880, %v2882
      %3228 = vmax.xlane.f32.xlu0 %v3227
      %v3229 = vpop.xlane.xlu0 %3228
      %v3230 = vmax.f32 %v2884, %v2886
      %3231 = vmax.xlane.f32.xlu0 %v3230
      %v3232 = vpop.xlane.xlu0 %3231
      %v3233 = vmax.f32 %v2890, %v2892
      %3234 = vmax.xlane.f32.xlu0 %v3233
      %v3235 = vpop.xlane.xlu0 %3234
      %v3236 = vmax.f32 %v2894, %v2896
      %3237 = vmax.xlane.f32.xlu0 %v3236
      %v3238 = vpop.xlane.xlu0 %3237
      %v3239 = vmax.f32 %v2900, %v2902
      %3240 = vmax.xlane.f32.xlu0 %v3239
      %v3241 = vpop.xlane.xlu0 %3240
      %v3242 = vmax.f32 %v2904, %v2906
      %3243 = vmax.xlane.f32.xlu0 %v3242
      %v3244 = vpop.xlane.xlu0 %3243
      %v3245 = vmax.f32 %v2910, %v2912
      %3246 = vmax.xlane.f32.xlu0 %v3245
      %v3247 = vpop.xlane.xlu0 %3246
      %v3248 = vmax.f32 %v2914, %v2916
      %3249 = vmax.xlane.f32.xlu0 %v3248
      %v3250 = vpop.xlane.xlu0 %3249
      %v3251 = vmax.f32 %v2920, %v2922
      %3252 = vmax.xlane.f32.xlu0 %v3251
      %v3253 = vpop.xlane.xlu0 %3252
      %v3254 = vmax.f32 %v2924, %v2926
      %3255 = vmax.xlane.f32.xlu0 %v3254
      %v3256 = vpop.xlane.xlu0 %3255
      %v3257 = vmax.f32 %v3035, %v3037
      %3258 = vmax.xlane.f32.xlu0 %v3257
      %v3259 = vpop.xlane.xlu0 %3258
      %v3260 = vmax.f32 %v3039, %v3041
      %3261 = vmax.xlane.f32.xlu0 %v3260
      %v3262 = vpop.xlane.xlu0 %3261
      %v3263 = vmax.f32 %v3045, %v3047
      %3264 = vmax.xlane.f32.xlu0 %v3263
      %v3265 = vpop.xlane.xlu0 %3264
      %v3266 = vmax.f32 %v3049, %v3051
      %3267 = vmax.xlane.f32.xlu0 %v3266
      %v3268 = vpop.xlane.xlu0 %3267
      %v3269 = vmax.f32 %v3055, %v3057
      %3270 = vmax.xlane.f32.xlu0 %v3269
      %v3271 = vpop.xlane.xlu0 %3270
      %v3272 = vmax.f32 %v3059, %v3061
      %3273 = vmax.xlane.f32.xlu0 %v3272
      %v3274 = vpop.xlane.xlu0 %3273
      %v3275 = vmax.f32 %v3065, %v3067
      %3276 = vmax.xlane.f32.xlu0 %v3275
      %v3277 = vpop.xlane.xlu0 %3276
      %v3278 = vmax.f32 %v3069, %v3071
      %3279 = vmax.xlane.f32.xlu0 %v3278
      %v3280 = vpop.xlane.xlu0 %3279
      %v3281 = vmax.f32 %v3075, %v3077
      %3282 = vmax.xlane.f32.xlu0 %v3281
      %v3283 = vpop.xlane.xlu0 %3282
      %v3284 = vmax.f32 %v3079, %v3081
      %3285 = vmax.xlane.f32.xlu0 %v3284
      %v3286 = vpop.xlane.xlu0 %3285
      %v3287 = vmax.f32 %v3085, %v3087
      %3288 = vmax.xlane.f32.xlu0 %v3287
      %v3289 = vpop.xlane.xlu0 %3288
      %v3290 = vmax.f32 %v3089, %v3091
      %3291 = vmax.xlane.f32.xlu0 %v3290
      %v3292 = vpop.xlane.xlu0 %3291
      %v3293 = vmax.f32 %v3095, %v3097
      %3294 = vmax.xlane.f32.xlu0 %v3293
      %v3295 = vpop.xlane.xlu0 %3294
      %v3296 = vmax.f32 %v3099, %v3101
      %3297 = vmax.xlane.f32.xlu0 %v3296
      %v3298 = vpop.xlane.xlu0 %3297
      %v3299 = vmax.f32 %v3105, %v3107
      %3300 = vmax.xlane.f32.xlu0 %v3299
      %v3301 = vpop.xlane.xlu0 %3300
      %v3302 = vmax.f32 %v3109, %v3111
      %3303 = vmax.xlane.f32.xlu0 %v3302
      %v3304 = vpop.xlane.xlu0 %3303
      %v3305 = vsub.f32 %v2480, %v3115
      %v3306 = vsub.f32 %v2482, %v3115
      %v3307 = vsub.f32 %v2484, %v3118
      %v3308 = vsub.f32 %v2486, %v3118
      %v3309 = vsub.f32 %v2490, %v3121
      %v3310 = vsub.f32 %v2492, %v3121
      %v3311 = vsub.f32 %v2494, %v3124
      %v3312 = vsub.f32 %v2496, %v3124
      %v3313 = vsub.f32 %v2500, %v3127
      %v3314 = vsub.f32 %v2502, %v3127
      %v3315 = vsub.f32 %v2504, %v3130
      %v3316 = vsub.f32 %v2506, %v3130
      %v3317 = vsub.f32 %v2510, %v3133
      %v3318 = vsub.f32 %v2512, %v3133
      %v3319 = vsub.f32 %v2514, %v3136
      %v3320 = vsub.f32 %v2516, %v3136
      %v3321 = vsub.f32 %v2520, %v3139
      %v3322 = vsub.f32 %v2522, %v3139
      %v3323 = vsub.f32 %v2524, %v3142
      %v3324 = vsub.f32 %v2526, %v3142
      %v3325 = vsub.f32 %v2530, %v3145
      %v3326 = vsub.f32 %v2532, %v3145
      %v3327 = vsub.f32 %v2534, %v3148
      %v3328 = vsub.f32 %v2536, %v3148
      %v3329 = vsub.f32 %v2540, %v3151
      %v3330 = vsub.f32 %v2542, %v3151
      %v3331 = vsub.f32 %v2544, %v3154
      %v3332 = vsub.f32 %v2546, %v3154
      %v3333 = vsub.f32 %v2550, %v3157
      %v3334 = vsub.f32 %v2552, %v3157
      %v3335 = vsub.f32 %v2554, %v3160
      %v3336 = vsub.f32 %v2556, %v3160
      %v3337 = vsub.f32 %v2665, %v3163
      %v3338 = vsub.f32 %v2667, %v3163
      %v3339 = vsub.f32 %v2669, %v3166
      %v3340 = vsub.f32 %v2671, %v3166
      %v3341 = vsub.f32 %v2675, %v3169
      %v3342 = vsub.f32 %v2677, %v3169
      %v3343 = vsub.f32 %v2679, %v3172
      %v3344 = vsub.f32 %v2681, %v3172
      %v3345 = vsub.f32 %v2685, %v3175
      %v3346 = vsub.f32 %v2687, %v3175
      %v3347 = vsub.f32 %v2689, %v3178
      %v3348 = vsub.f32 %v2691, %v3178
      %v3349 = vsub.f32 %v2695, %v3181
      %v3350 = vsub.f32 %v2697, %v3181
      %v3351 = vsub.f32 %v2699, %v3184
      %v3352 = vsub.f32 %v2701, %v3184
      %v3353 = vsub.f32 %v2705, %v3187
      %v3354 = vsub.f32 %v2707, %v3187
      %v3355 = vsub.f32 %v2709, %v3190
      %v3356 = vsub.f32 %v2711, %v3190
      %v3357 = vsub.f32 %v2715, %v3193
      %v3358 = vsub.f32 %v2717, %v3193
      %v3359 = vsub.f32 %v2719, %v3196
      %v3360 = vsub.f32 %v2721, %v3196
      %v3361 = vsub.f32 %v2725, %v3199
      %v3362 = vsub.f32 %v2727, %v3199
      %v3363 = vsub.f32 %v2729, %v3202
      %v3364 = vsub.f32 %v2731, %v3202
      %v3365 = vsub.f32 %v2735, %v3205
      %v3366 = vsub.f32 %v2737, %v3205
      %v3367 = vsub.f32 %v2739, %v3208
      %v3368 = vsub.f32 %v2741, %v3208
      %v3369 = vsub.f32 %v2850, %v3211
      %v3370 = vsub.f32 %v2852, %v3211
      %v3371 = vsub.f32 %v2854, %v3214
      %v3372 = vsub.f32 %v2856, %v3214
      %v3373 = vsub.f32 %v2860, %v3217
      %v3374 = vsub.f32 %v2862, %v3217
      %v3375 = vsub.f32 %v2864, %v3220
      %v3376 = vsub.f32 %v2866, %v3220
      %v3377 = vsub.f32 %v2870, %v3223
      %v3378 = vsub.f32 %v2872, %v3223
      %v3379 = vsub.f32 %v2874, %v3226
      %v3380 = vsub.f32 %v2876, %v3226
      %v3381 = vsub.f32 %v2880, %v3229
      %v3382 = vsub.f32 %v2882, %v3229
      %v3383 = vsub.f32 %v2884, %v3232
      %v3384 = vsub.f32 %v2886, %v3232
      %v3385 = vsub.f32 %v2890, %v3235
      %v3386 = vsub.f32 %v2892, %v3235
      %v3387 = vsub.f32 %v2894, %v3238
      %v3388 = vsub.f32 %v2896, %v3238
      %v3389 = vsub.f32 %v2900, %v3241
      %v3390 = vsub.f32 %v2902, %v3241
      %v3391 = vsub.f32 %v2904, %v3244
      %v3392 = vsub.f32 %v2906, %v3244
      %v3393 = vsub.f32 %v2910, %v3247
      %v3394 = vsub.f32 %v2912, %v3247
      %v3395 = vsub.f32 %v2914, %v3250
      %v3396 = vsub.f32 %v2916, %v3250
      %v3397 = vsub.f32 %v2920, %v3253
      %v3398 = vsub.f32 %v2922, %v3253
      %v3399 = vsub.f32 %v2924, %v3256
      %v3400 = vsub.f32 %v2926, %v3256
      %v3401 = vsub.f32 %v3035, %v3259
      %v3402 = vsub.f32 %v3037, %v3259
      %v3403 = vsub.f32 %v3039, %v3262
      %v3404 = vsub.f32 %v3041, %v3262
      %v3405 = vsub.f32 %v3045, %v3265
      %v3406 = vsub.f32 %v3047, %v3265
      %v3407 = vsub.f32 %v3049, %v3268
      %v3408 = vsub.f32 %v3051, %v3268
      %v3409 = vsub.f32 %v3055, %v3271
      %v3410 = vsub.f32 %v3057, %v3271
      %v3411 = vsub.f32 %v3059, %v3274
      %v3412 = vsub.f32 %v3061, %v3274
      %v3413 = vsub.f32 %v3065, %v3277
      %v3414 = vsub.f32 %v3067, %v3277
      %v3415 = vsub.f32 %v3069, %v3280
      %v3416 = vsub.f32 %v3071, %v3280
      %v3417 = vsub.f32 %v3075, %v3283
      %v3418 = vsub.f32 %v3077, %v3283
      %v3419 = vsub.f32 %v3079, %v3286
      %v3420 = vsub.f32 %v3081, %v3286
      %v3421 = vsub.f32 %v3085, %v3289
      %v3422 = vsub.f32 %v3087, %v3289
      %v3423 = vsub.f32 %v3089, %v3292
      %v3424 = vsub.f32 %v3091, %v3292
      %v3425 = vsub.f32 %v3095, %v3295
      %v3426 = vsub.f32 %v3097, %v3295
      %v3427 = vsub.f32 %v3099, %v3298
      %v3428 = vsub.f32 %v3101, %v3298
      %v3429 = vsub.f32 %v3105, %v3301
      %v3430 = vsub.f32 %v3107, %v3301
      %v3431 = vsub.f32 %v3109, %v3304
      %v3432 = vsub.f32 %v3111, %v3304
      %v3433 = vmul.f32 %v3305, 1.442695
      %v3434 = vpow.pop %v3433
      %v3435 = vmul.f32 %v3306, 1.442695
      %v3436 = vpow.pop %v3435
      %v3437 = vmul.f32 %v3307, 1.442695
      %v3438 = vpow.pop %v3437
      %v3439 = vmul.f32 %v3308, 1.442695
      %v3440 = vpow.pop %v3439
      %v3441 = vmul.f32 %v3309, 1.442695
      %v3442 = vpow.pop %v3441
      %v3443 = vmul.f32 %v3310, 1.442695
      %v3444 = vpow.pop %v3443
      %v3445 = vmul.f32 %v3311, 1.442695
      %v3446 = vpow.pop %v3445
      %v3447 = vmul.f32 %v3312, 1.442695
      %v3448 = vpow.pop %v3447
      %v3449 = vmul.f32 %v3313, 1.442695
      %v3450 = vpow.pop %v3449
      %v3451 = vmul.f32 %v3314, 1.442695
      %v3452 = vpow.pop %v3451
      %v3453 = vmul.f32 %v3315, 1.442695
      %v3454 = vpow.pop %v3453
      %v3455 = vmul.f32 %v3316, 1.442695
      %v3456 = vpow.pop %v3455
      %v3457 = vmul.f32 %v3317, 1.442695
      %v3458 = vpow.pop %v3457
      %v3459 = vmul.f32 %v3318, 1.442695
      %v3460 = vpow.pop %v3459
      %v3461 = vmul.f32 %v3319, 1.442695
      %v3462 = vpow.pop %v3461
      %v3463 = vmul.f32 %v3320, 1.442695
      %v3464 = vpow.pop %v3463
      %v3465 = vmul.f32 %v3321, 1.442695
      %v3466 = vpow.pop %v3465
      %v3467 = vmul.f32 %v3322, 1.442695
      %v3468 = vpow.pop %v3467
      %v3469 = vmul.f32 %v3323, 1.442695
      %v3470 = vpow.pop %v3469
      %v3471 = vmul.f32 %v3324, 1.442695
      %v3472 = vpow.pop %v3471
      %v3473 = vmul.f32 %v3325, 1.442695
      %v3474 = vpow.pop %v3473
      %v3475 = vmul.f32 %v3326, 1.442695
      %v3476 = vpow.pop %v3475
      %v3477 = vmul.f32 %v3327, 1.442695
      %v3478 = vpow.pop %v3477
      %v3479 = vmul.f32 %v3328, 1.442695
      %v3480 = vpow.pop %v3479
      %v3481 = vmul.f32 %v3329, 1.442695
      %v3482 = vpow.pop %v3481
      %v3483 = vmul.f32 %v3330, 1.442695
      %v3484 = vpow.pop %v3483
      %v3485 = vmul.f32 %v3331, 1.442695
      %v3486 = vpow.pop %v3485
      %v3487 = vmul.f32 %v3332, 1.442695
      %v3488 = vpow.pop %v3487
      %v3489 = vmul.f32 %v3333, 1.442695
      %v3490 = vpow.pop %v3489
      %v3491 = vmul.f32 %v3334, 1.442695
      %v3492 = vpow.pop %v3491
      %v3493 = vmul.f32 %v3335, 1.442695
      %v3494 = vpow.pop %v3493
      %v3495 = vmul.f32 %v3336, 1.442695
      %v3496 = vpow.pop %v3495
      %v3497 = vmul.f32 %v3337, 1.442695
      %v3498 = vpow.pop %v3497
      %v3499 = vmul.f32 %v3338, 1.442695
      %v3500 = vpow.pop %v3499
      %v3501 = vmul.f32 %v3339, 1.442695
      %v3502 = vpow.pop %v3501
      %v3503 = vmul.f32 %v3340, 1.442695
      %v3504 = vpow.pop %v3503
      %v3505 = vmul.f32 %v3341, 1.442695
      %v3506 = vpow.pop %v3505
      %v3507 = vmul.f32 %v3342, 1.442695
      %v3508 = vpow.pop %v3507
      %v3509 = vmul.f32 %v3343, 1.442695
      %v3510 = vpow.pop %v3509
      %v3511 = vmul.f32 %v3344, 1.442695
      %v3512 = vpow.pop %v3511
      %v3513 = vmul.f32 %v3345, 1.442695
      %v3514 = vpow.pop %v3513
      %v3515 = vmul.f32 %v3346, 1.442695
      %v3516 = vpow.pop %v3515
      %v3517 = vmul.f32 %v3347, 1.442695
      %v3518 = vpow.pop %v3517
      %v3519 = vmul.f32 %v3348, 1.442695
      %v3520 = vpow.pop %v3519
      %v3521 = vmul.f32 %v3349, 1.442695
      %v3522 = vpow.pop %v3521
      %v3523 = vmul.f32 %v3350, 1.442695
      %v3524 = vpow.pop %v3523
      %v3525 = vmul.f32 %v3351, 1.442695
      %v3526 = vpow.pop %v3525
      %v3527 = vmul.f32 %v3352, 1.442695
      %v3528 = vpow.pop %v3527
      %v3529 = vmul.f32 %v3353, 1.442695
      %v3530 = vpow.pop %v3529
      %v3531 = vmul.f32 %v3354, 1.442695
      %v3532 = vpow.pop %v3531
      %v3533 = vmul.f32 %v3355, 1.442695
      %v3534 = vpow.pop %v3533
      %v3535 = vmul.f32 %v3356, 1.442695
      %v3536 = vpow.pop %v3535
      %v3537 = vmul.f32 %v3357, 1.442695
      %v3538 = vpow.pop %v3537
      %v3539 = vmul.f32 %v3358, 1.442695
      %v3540 = vpow.pop %v3539
      %v3541 = vmul.f32 %v3359, 1.442695
      %v3542 = vpow.pop %v3541
      %v3543 = vmul.f32 %v3360, 1.442695
      %v3544 = vpow.pop %v3543
      %v3545 = vmul.f32 %v3361, 1.442695
      %v3546 = vpow.pop %v3545
      %v3547 = vmul.f32 %v3362, 1.442695
      %v3548 = vpow.pop %v3547
      %v3549 = vmul.f32 %v3363, 1.442695
      %v3550 = vpow.pop %v3549
      %v3551 = vmul.f32 %v3364, 1.442695
      %v3552 = vpow.pop %v3551
      %v3553 = vmul.f32 %v3365, 1.442695
      %v3554 = vpow.pop %v3553
      %v3555 = vmul.f32 %v3366, 1.442695
      %v3556 = vpow.pop %v3555
      %v3557 = vmul.f32 %v3367, 1.442695
      %v3558 = vpow.pop %v3557
      %v3559 = vmul.f32 %v3368, 1.442695
      %v3560 = vpow.pop %v3559
      %v3561 = vmul.f32 %v3369, 1.442695
      %v3562 = vpow.pop %v3561
      %v3563 = vmul.f32 %v3370, 1.442695
      %v3564 = vpow.pop %v3563
      %v3565 = vmul.f32 %v3371, 1.442695
      %v3566 = vpow.pop %v3565
      %v3567 = vmul.f32 %v3372, 1.442695
      %v3568 = vpow.pop %v3567
      %v3569 = vmul.f32 %v3373, 1.442695
      %v3570 = vpow.pop %v3569
      %v3571 = vmul.f32 %v3374, 1.442695
      %v3572 = vpow.pop %v3571
      %v3573 = vmul.f32 %v3375, 1.442695
      %v3574 = vpow.pop %v3573
      %v3575 = vmul.f32 %v3376, 1.442695
      %v3576 = vpow.pop %v3575
      %v3577 = vmul.f32 %v3377, 1.442695
      %v3578 = vpow.pop %v3577
      %v3579 = vmul.f32 %v3378, 1.442695
      %v3580 = vpow.pop %v3579
      %v3581 = vmul.f32 %v3379, 1.442695
      %v3582 = vpow.pop %v3581
      %v3583 = vmul.f32 %v3380, 1.442695
      %v3584 = vpow.pop %v3583
      %v3585 = vmul.f32 %v3381, 1.442695
      %v3586 = vpow.pop %v3585
      %v3587 = vmul.f32 %v3382, 1.442695
      %v3588 = vpow.pop %v3587
      %v3589 = vmul.f32 %v3383, 1.442695
      %v3590 = vpow.pop %v3589
      %v3591 = vmul.f32 %v3384, 1.442695
      %v3592 = vpow.pop %v3591
      %v3593 = vmul.f32 %v3385, 1.442695
      %v3594 = vpow.pop %v3593
      %v3595 = vmul.f32 %v3386, 1.442695
      %v3596 = vpow.pop %v3595
      %v3597 = vmul.f32 %v3387, 1.442695
      %v3598 = vpow.pop %v3597
      %v3599 = vmul.f32 %v3388, 1.442695
      %v3600 = vpow.pop %v3599
      %v3601 = vmul.f32 %v3389, 1.442695
      %v3602 = vpow.pop %v3601
      %v3603 = vmul.f32 %v3390, 1.442695
      %v3604 = vpow.pop %v3603
      %v3605 = vmul.f32 %v3391, 1.442695
      %v3606 = vpow.pop %v3605
      %v3607 = vmul.f32 %v3392, 1.442695
      %v3608 = vpow.pop %v3607
      %v3609 = vmul.f32 %v3393, 1.442695
      %v3610 = vpow.pop %v3609
      %v3611 = vmul.f32 %v3394, 1.442695
      %v3612 = vpow.pop %v3611
      %v3613 = vmul.f32 %v3395, 1.442695
      %v3614 = vpow.pop %v3613
      %v3615 = vmul.f32 %v3396, 1.442695
      %v3616 = vpow.pop %v3615
      %v3617 = vmul.f32 %v3397, 1.442695
      %v3618 = vpow.pop %v3617
      %v3619 = vmul.f32 %v3398, 1.442695
      %v3620 = vpow.pop %v3619
      %v3621 = vmul.f32 %v3399, 1.442695
      %v3622 = vpow.pop %v3621
      %v3623 = vmul.f32 %v3400, 1.442695
      %v3624 = vpow.pop %v3623
      %v3625 = vmul.f32 %v3401, 1.442695
      %v3626 = vpow.pop %v3625
      %v3627 = vmul.f32 %v3402, 1.442695
      %v3628 = vpow.pop %v3627
      %v3629 = vmul.f32 %v3403, 1.442695
      %v3630 = vpow.pop %v3629
      %v3631 = vmul.f32 %v3404, 1.442695
      %v3632 = vpow.pop %v3631
      %v3633 = vmul.f32 %v3405, 1.442695
      %v3634 = vpow.pop %v3633
      %v3635 = vmul.f32 %v3406, 1.442695
      %v3636 = vpow.pop %v3635
      %v3637 = vmul.f32 %v3407, 1.442695
      %v3638 = vpow.pop %v3637
      %v3639 = vmul.f32 %v3408, 1.442695
      %v3640 = vpow.pop %v3639
      %v3641 = vmul.f32 %v3409, 1.442695
      %v3642 = vpow.pop %v3641
      %v3643 = vmul.f32 %v3410, 1.442695
      %v3644 = vpow.pop %v3643
      %v3645 = vmul.f32 %v3411, 1.442695
      %v3646 = vpow.pop %v3645
      %v3647 = vmul.f32 %v3412, 1.442695
      %v3648 = vpow.pop %v3647
      %v3649 = vmul.f32 %v3413, 1.442695
      %v3650 = vpow.pop %v3649
      %v3651 = vmul.f32 %v3414, 1.442695
      %v3652 = vpow.pop %v3651
      %v3653 = vmul.f32 %v3415, 1.442695
      %v3654 = vpow.pop %v3653
      %v3655 = vmul.f32 %v3416, 1.442695
      %v3656 = vpow.pop %v3655
      %v3657 = vmul.f32 %v3417, 1.442695
      %v3658 = vpow.pop %v3657
      %v3659 = vmul.f32 %v3418, 1.442695
      %v3660 = vpow.pop %v3659
      %v3661 = vmul.f32 %v3419, 1.442695
      %v3662 = vpow.pop %v3661
      %v3663 = vmul.f32 %v3420, 1.442695
      %v3664 = vpow.pop %v3663
      %v3665 = vmul.f32 %v3421, 1.442695
      %v3666 = vpow.pop %v3665
      %v3667 = vmul.f32 %v3422, 1.442695
      %v3668 = vpow.pop %v3667
      %v3669 = vmul.f32 %v3423, 1.442695
      %v3670 = vpow.pop %v3669
      %v3671 = vmul.f32 %v3424, 1.442695
      %v3672 = vpow.pop %v3671
      %v3673 = vmul.f32 %v3425, 1.442695
      %v3674 = vpow.pop %v3673
      %v3675 = vmul.f32 %v3426, 1.442695
      %v3676 = vpow.pop %v3675
      %v3677 = vmul.f32 %v3427, 1.442695
      %v3678 = vpow.pop %v3677
      %v3679 = vmul.f32 %v3428, 1.442695
      %v3680 = vpow.pop %v3679
      %v3681 = vmul.f32 %v3429, 1.442695
      %v3682 = vpow.pop %v3681
      %v3683 = vmul.f32 %v3430, 1.442695
      %v3684 = vpow.pop %v3683
      %v3685 = vmul.f32 %v3431, 1.442695
      %v3686 = vpow.pop %v3685
      %v3687 = vmul.f32 %v3432, 1.442695
      %v3688 = vpow.pop %v3687
      %v3689 = vadd.f32 %v3434, %v3436
      %3690 = vadd.xlane.f32.xlu0 %v3689
      %v3691 = vpop.xlane.xlu0 %3690
      %v3692 = vadd.f32 %v3438, %v3440
      %3693 = vadd.xlane.f32.xlu0 %v3692
      %v3694 = vpop.xlane.xlu0 %3693
      %v3695 = vadd.f32 %v3442, %v3444
      %3696 = vadd.xlane.f32.xlu0 %v3695
      %v3697 = vpop.xlane.xlu0 %3696
      %v3698 = vadd.f32 %v3446, %v3448
      %3699 = vadd.xlane.f32.xlu0 %v3698
      %v3700 = vpop.xlane.xlu0 %3699
      %v3701 = vadd.f32 %v3450, %v3452
      %3702 = vadd.xlane.f32.xlu0 %v3701
      %v3703 = vpop.xlane.xlu0 %3702
      %v3704 = vadd.f32 %v3454, %v3456
      %3705 = vadd.xlane.f32.xlu0 %v3704
      %v3706 = vpop.xlane.xlu0 %3705
      %v3707 = vadd.f32 %v3458, %v3460
      %3708 = vadd.xlane.f32.xlu0 %v3707
      %v3709 = vpop.xlane.xlu0 %3708
      %v3710 = vadd.f32 %v3462, %v3464
      %3711 = vadd.xlane.f32.xlu0 %v3710
      %v3712 = vpop.xlane.xlu0 %3711
      %v3713 = vadd.f32 %v3466, %v3468
      %3714 = vadd.xlane.f32.xlu0 %v3713
      %v3715 = vpop.xlane.xlu0 %3714
      %v3716 = vadd.f32 %v3470, %v3472
      %3717 = vadd.xlane.f32.xlu0 %v3716
      %v3718 = vpop.xlane.xlu0 %3717
      %v3719 = vadd.f32 %v3474, %v3476
      %3720 = vadd.xlane.f32.xlu0 %v3719
      %v3721 = vpop.xlane.xlu0 %3720
      %v3722 = vadd.f32 %v3478, %v3480
      %3723 = vadd.xlane.f32.xlu0 %v3722
      %v3724 = vpop.xlane.xlu0 %3723
      %v3725 = vadd.f32 %v3482, %v3484
      %3726 = vadd.xlane.f32.xlu0 %v3725
      %v3727 = vpop.xlane.xlu0 %3726
      %v3728 = vadd.f32 %v3486, %v3488
      %3729 = vadd.xlane.f32.xlu0 %v3728
      %v3730 = vpop.xlane.xlu0 %3729
      %v3731 = vadd.f32 %v3490, %v3492
      %3732 = vadd.xlane.f32.xlu0 %v3731
      %v3733 = vpop.xlane.xlu0 %3732
      %v3734 = vadd.f32 %v3494, %v3496
      %3735 = vadd.xlane.f32.xlu0 %v3734
      %v3736 = vpop.xlane.xlu0 %3735
      %v3737 = vadd.f32 %v3498, %v3500
      %3738 = vadd.xlane.f32.xlu0 %v3737
      %v3739 = vpop.xlane.xlu0 %3738
      %v3740 = vadd.f32 %v3502, %v3504
      %3741 = vadd.xlane.f32.xlu0 %v3740
      %v3742 = vpop.xlane.xlu0 %3741
      %v3743 = vadd.f32 %v3506, %v3508
      %3744 = vadd.xlane.f32.xlu0 %v3743
      %v3745 = vpop.xlane.xlu0 %3744
      %v3746 = vadd.f32 %v3510, %v3512
      %3747 = vadd.xlane.f32.xlu0 %v3746
      %v3748 = vpop.xlane.xlu0 %3747
      %v3749 = vadd.f32 %v3514, %v3516
      %3750 = vadd.xlane.f32.xlu0 %v3749
      %v3751 = vpop.xlane.xlu0 %3750
      %v3752 = vadd.f32 %v3518, %v3520
      %3753 = vadd.xlane.f32.xlu0 %v3752
      %v3754 = vpop.xlane.xlu0 %3753
      %v3755 = vadd.f32 %v3522, %v3524
      %3756 = vadd.xlane.f32.xlu0 %v3755
      %v3757 = vpop.xlane.xlu0 %3756
      %v3758 = vadd.f32 %v3526, %v3528
      %3759 = vadd.xlane.f32.xlu0 %v3758
      %v3760 = vpop.xlane.xlu0 %3759
      %v3761 = vadd.f32 %v3530, %v3532
      %3762 = vadd.xlane.f32.xlu0 %v3761
      %v3763 = vpop.xlane.xlu0 %3762
      %v3764 = vadd.f32 %v3534, %v3536
      %3765 = vadd.xlane.f32.xlu0 %v3764
      %v3766 = vpop.xlane.xlu0 %3765
      %v3767 = vadd.f32 %v3538, %v3540
      %3768 = vadd.xlane.f32.xlu0 %v3767
      %v3769 = vpop.xlane.xlu0 %3768
      %v3770 = vadd.f32 %v3542, %v3544
      %3771 = vadd.xlane.f32.xlu0 %v3770
      %v3772 = vpop.xlane.xlu0 %3771
      %v3773 = vadd.f32 %v3546, %v3548
      %3774 = vadd.xlane.f32.xlu0 %v3773
      %v3775 = vpop.xlane.xlu0 %3774
      %v3776 = vadd.f32 %v3550, %v3552
      %3777 = vadd.xlane.f32.xlu0 %v3776
      %v3778 = vpop.xlane.xlu0 %3777
      %v3779 = vadd.f32 %v3554, %v3556
      %3780 = vadd.xlane.f32.xlu0 %v3779
      %v3781 = vpop.xlane.xlu0 %3780
      %v3782 = vadd.f32 %v3558, %v3560
      %3783 = vadd.xlane.f32.xlu0 %v3782
      %v3784 = vpop.xlane.xlu0 %3783
      %v3785 = vadd.f32 %v3562, %v3564
      %3786 = vadd.xlane.f32.xlu0 %v3785
      %v3787 = vpop.xlane.xlu0 %3786
      %v3788 = vadd.f32 %v3566, %v3568
      %3789 = vadd.xlane.f32.xlu0 %v3788
      %v3790 = vpop.xlane.xlu0 %3789
      %v3791 = vadd.f32 %v3570, %v3572
      %3792 = vadd.xlane.f32.xlu0 %v3791
      %v3793 = vpop.xlane.xlu0 %3792
      %v3794 = vadd.f32 %v3574, %v3576
      %3795 = vadd.xlane.f32.xlu0 %v3794
      %v3796 = vpop.xlane.xlu0 %3795
      %v3797 = vadd.f32 %v3578, %v3580
      %3798 = vadd.xlane.f32.xlu0 %v3797
      %v3799 = vpop.xlane.xlu0 %3798
      %v3800 = vadd.f32 %v3582, %v3584
      %3801 = vadd.xlane.f32.xlu0 %v3800
      %v3802 = vpop.xlane.xlu0 %3801
      %v3803 = vadd.f32 %v3586, %v3588
      %3804 = vadd.xlane.f32.xlu0 %v3803
      %v3805 = vpop.xlane.xlu0 %3804
      %v3806 = vadd.f32 %v3590, %v3592
      %3807 = vadd.xlane.f32.xlu0 %v3806
      %v3808 = vpop.xlane.xlu0 %3807
      %v3809 = vadd.f32 %v3594, %v3596
      %3810 = vadd.xlane.f32.xlu0 %v3809
      %v3811 = vpop.xlane.xlu0 %3810
      %v3812 = vadd.f32 %v3598, %v3600
      %3813 = vadd.xlane.f32.xlu0 %v3812
      %v3814 = vpop.xlane.xlu0 %3813
      %v3815 = vadd.f32 %v3602, %v3604
      %3816 = vadd.xlane.f32.xlu0 %v3815
      %v3817 = vpop.xlane.xlu0 %3816
      %v3818 = vadd.f32 %v3606, %v3608
      %3819 = vadd.xlane.f32.xlu0 %v3818
      %v3820 = vpop.xlane.xlu0 %3819
      %v3821 = vadd.f32 %v3610, %v3612
      %3822 = vadd.xlane.f32.xlu0 %v3821
      %v3823 = vpop.xlane.xlu0 %3822
      %v3824 = vadd.f32 %v3614, %v3616
      %3825 = vadd.xlane.f32.xlu0 %v3824
      %v3826 = vpop.xlane.xlu0 %3825
      %v3827 = vadd.f32 %v3618, %v3620
      %3828 = vadd.xlane.f32.xlu0 %v3827
      %v3829 = vpop.xlane.xlu0 %3828
      %v3830 = vadd.f32 %v3622, %v3624
      %3831 = vadd.xlane.f32.xlu0 %v3830
      %v3832 = vpop.xlane.xlu0 %3831
      %v3833 = vadd.f32 %v3626, %v3628
      %3834 = vadd.xlane.f32.xlu0 %v3833
      %v3835 = vpop.xlane.xlu0 %3834
      %v3836 = vadd.f32 %v3630, %v3632
      %3837 = vadd.xlane.f32.xlu0 %v3836
      %v3838 = vpop.xlane.xlu0 %3837
      %v3839 = vadd.f32 %v3634, %v3636
      %3840 = vadd.xlane.f32.xlu0 %v3839
      %v3841 = vpop.xlane.xlu0 %3840
      %v3842 = vadd.f32 %v3638, %v3640
      %3843 = vadd.xlane.f32.xlu0 %v3842
      %v3844 = vpop.xlane.xlu0 %3843
      %v3845 = vadd.f32 %v3642, %v3644
      %3846 = vadd.xlane.f32.xlu0 %v3845
      %v3847 = vpop.xlane.xlu0 %3846
      %v3848 = vadd.f32 %v3646, %v3648
      %3849 = vadd.xlane.f32.xlu0 %v3848
      %v3850 = vpop.xlane.xlu0 %3849
      %v3851 = vadd.f32 %v3650, %v3652
      %3852 = vadd.xlane.f32.xlu0 %v3851
      %v3853 = vpop.xlane.xlu0 %3852
      %v3854 = vadd.f32 %v3654, %v3656
      %3855 = vadd.xlane.f32.xlu0 %v3854
      %v3856 = vpop.xlane.xlu0 %3855
      %v3857 = vadd.f32 %v3658, %v3660
      %3858 = vadd.xlane.f32.xlu0 %v3857
      %v3859 = vpop.xlane.xlu0 %3858
      %v3860 = vadd.f32 %v3662, %v3664
      %3861 = vadd.xlane.f32.xlu0 %v3860
      %v3862 = vpop.xlane.xlu0 %3861
      %v3863 = vadd.f32 %v3666, %v3668
      %3864 = vadd.xlane.f32.xlu0 %v3863
      %v3865 = vpop.xlane.xlu0 %3864
      %v3866 = vadd.f32 %v3670, %v3672
      %3867 = vadd.xlane.f32.xlu0 %v3866
      %v3868 = vpop.xlane.xlu0 %3867
      %v3869 = vadd.f32 %v3674, %v3676
      %3870 = vadd.xlane.f32.xlu0 %v3869
      %v3871 = vpop.xlane.xlu0 %3870
      %v3872 = vadd.f32 %v3678, %v3680
      %3873 = vadd.xlane.f32.xlu0 %v3872
      %v3874 = vpop.xlane.xlu0 %3873
      %v3875 = vadd.f32 %v3682, %v3684
      %3876 = vadd.xlane.f32.xlu0 %v3875
      %v3877 = vpop.xlane.xlu0 %3876
      %v3878 = vadd.f32 %v3686, %v3688
      %3879 = vadd.xlane.f32.xlu0 %v3878
      %v3880 = vpop.xlane.xlu0 %3879
      %v3881 = vrcp.pop %v3691
      %v3882 = vrcp.pop %v3694
      %v3883 = vrcp.pop %v3697
      %v3884 = vrcp.pop %v3700
      %v3885 = vrcp.pop %v3703
      %v3886 = vrcp.pop %v3706
      %v3887 = vrcp.pop %v3709
      %v3888 = vrcp.pop %v3712
      %v3889 = vrcp.pop %v3715
      %v3890 = vrcp.pop %v3718
      %v3891 = vrcp.pop %v3721
      %v3892 = vrcp.pop %v3724
      %v3893 = vrcp.pop %v3727
      %v3894 = vrcp.pop %v3730
      %v3895 = vrcp.pop %v3733
      %v3896 = vrcp.pop %v3736
      %v3897 = vrcp.pop %v3739
      %v3898 = vrcp.pop %v3742
      %v3899 = vrcp.pop %v3745
      %v3900 = vrcp.pop %v3748
      %v3901 = vrcp.pop %v3751
      %v3902 = vrcp.pop %v3754
      %v3903 = vrcp.pop %v3757
      %v3904 = vrcp.pop %v3760
      %v3905 = vrcp.pop %v3763
      %v3906 = vrcp.pop %v3766
      %v3907 = vrcp.pop %v3769
      %v3908 = vrcp.pop %v3772
      %v3909 = vrcp.pop %v3775
      %v3910 = vrcp.pop %v3778
      %v3911 = vrcp.pop %v3781
      %v3912 = vrcp.pop %v3784
      %v3913 = vrcp.pop %v3787
      %v3914 = vrcp.pop %v3790
      %v3915 = vrcp.pop %v3793
      %v3916 = vrcp.pop %v3796
      %v3917 = vrcp.pop %v3799
      %v3918 = vrcp.pop %v3802
      %v3919 = vrcp.pop %v3805
      %v3920 = vrcp.pop %v3808
      %v3921 = vrcp.pop %v3811
      %v3922 = vrcp.pop %v3814
      %v3923 = vrcp.pop %v3817
      %v3924 = vrcp.pop %v3820
      %v3925 = vrcp.pop %v3823
      %v3926 = vrcp.pop %v3826
      %v3927 = vrcp.pop %v3829
      %v3928 = vrcp.pop %v3832
      %v3929 = vrcp.pop %v3835
      %v3930 = vrcp.pop %v3838
      %v3931 = vrcp.pop %v3841
      %v3932 = vrcp.pop %v3844
      %v3933 = vrcp.pop %v3847
      %v3934 = vrcp.pop %v3850
      %v3935 = vrcp.pop %v3853
      %v3936 = vrcp.pop %v3856
      %v3937 = vrcp.pop %v3859
      %v3938 = vrcp.pop %v3862
      %v3939 = vrcp.pop %v3865
      %v3940 = vrcp.pop %v3868
      %v3941 = vrcp.pop %v3871
      %v3942 = vrcp.pop %v3874
      %v3943 = vrcp.pop %v3877
      %v3944 = vrcp.pop %v3880
      %v3945 = vmul.f32 %v3434, %v3881
      %v3946 = vmul.f32 %v3436, %v3881
      %v3947 = vmul.f32 %v3438, %v3882
      %v3948 = vmul.f32 %v3440, %v3882
      %v3949 = vmul.f32 %v3442, %v3883
      %v3950 = vmul.f32 %v3444, %v3883
      %v3951 = vmul.f32 %v3446, %v3884
      %v3952 = vmul.f32 %v3448, %v3884
      %v3953 = vmul.f32 %v3450, %v3885
      %v3954 = vmul.f32 %v3452, %v3885
      %v3955 = vmul.f32 %v3454, %v3886
      %v3956 = vmul.f32 %v3456, %v3886
      %v3957 = vmul.f32 %v3458, %v3887
      %v3958 = vmul.f32 %v3460, %v3887
      %v3959 = vmul.f32 %v3462, %v3888
      %v3960 = vmul.f32 %v3464, %v3888
      %v3961 = vmul.f32 %v3466, %v3889
      %v3962 = vmul.f32 %v3468, %v3889
      %v3963 = vmul.f32 %v3470, %v3890
      %v3964 = vmul.f32 %v3472, %v3890
      %v3965 = vmul.f32 %v3474, %v3891
      %v3966 = vmul.f32 %v3476, %v3891
      %v3967 = vmul.f32 %v3478, %v3892
      %v3968 = vmul.f32 %v3480, %v3892
      %v3969 = vmul.f32 %v3482, %v3893
      %v3970 = vmul.f32 %v3484, %v3893
      %v3971 = vmul.f32 %v3486, %v3894
      %v3972 = vmul.f32 %v3488, %v3894
      %v3973 = vmul.f32 %v3490, %v3895
      %v3974 = vmul.f32 %v3492, %v3895
      %v3975 = vmul.f32 %v3494, %v3896
      %v3976 = vmul.f32 %v3496, %v3896
      %v3977 = vmul.f32 %v3498, %v3897
      %v3978 = vmul.f32 %v3500, %v3897
      %v3979 = vmul.f32 %v3502, %v3898
      %v3980 = vmul.f32 %v3504, %v3898
      %v3981 = vmul.f32 %v3506, %v3899
      %v3982 = vmul.f32 %v3508, %v3899
      %v3983 = vmul.f32 %v3510, %v3900
      %v3984 = vmul.f32 %v3512, %v3900
      %v3985 = vmul.f32 %v3514, %v3901
      %v3986 = vmul.f32 %v3516, %v3901
      %v3987 = vmul.f32 %v3518, %v3902
      %v3988 = vmul.f32 %v3520, %v3902
      %v3989 = vmul.f32 %v3522, %v3903
      %v3990 = vmul.f32 %v3524, %v3903
      %v3991 = vmul.f32 %v3526, %v3904
      %v3992 = vmul.f32 %v3528, %v3904
      %v3993 = vmul.f32 %v3530, %v3905
      %v3994 = vmul.f32 %v3532, %v3905
      %v3995 = vmul.f32 %v3534, %v3906
      %v3996 = vmul.f32 %v3536, %v3906
      %v3997 = vmul.f32 %v3538, %v3907
      %v3998 = vmul.f32 %v3540, %v3907
      %v3999 = vmul.f32 %v3542, %v3908
      %v4000 = vmul.f32 %v3544, %v3908
      %v4001 = vmul.f32 %v3546, %v3909
      %v4002 = vmul.f32 %v3548, %v3909
      %v4003 = vmul.f32 %v3550, %v3910
      %v4004 = vmul.f32 %v3552, %v3910
      %v4005 = vmul.f32 %v3554, %v3911
      %v4006 = vmul.f32 %v3556, %v3911
      %v4007 = vmul.f32 %v3558, %v3912
      %v4008 = vmul.f32 %v3560, %v3912
      %v4009 = vmul.f32 %v3562, %v3913
      %v4010 = vmul.f32 %v3564, %v3913
      %v4011 = vmul.f32 %v3566, %v3914
      %v4012 = vmul.f32 %v3568, %v3914
      %v4013 = vmul.f32 %v3570, %v3915
      %v4014 = vmul.f32 %v3572, %v3915
      %v4015 = vmul.f32 %v3574, %v3916
      %v4016 = vmul.f32 %v3576, %v3916
      %v4017 = vmul.f32 %v3578, %v3917
      %v4018 = vmul.f32 %v3580, %v3917
      %v4019 = vmul.f32 %v3582, %v3918
      %v4020 = vmul.f32 %v3584, %v3918
      %v4021 = vmul.f32 %v3586, %v3919
      %v4022 = vmul.f32 %v3588, %v3919
      %v4023 = vmul.f32 %v3590, %v3920
      %v4024 = vmul.f32 %v3592, %v3920
      %v4025 = vmul.f32 %v3594, %v3921
      %v4026 = vmul.f32 %v3596, %v3921
      %v4027 = vmul.f32 %v3598, %v3922
      %v4028 = vmul.f32 %v3600, %v3922
      %v4029 = vmul.f32 %v3602, %v3923
      %v4030 = vmul.f32 %v3604, %v3923
      %v4031 = vmul.f32 %v3606, %v3924
      %v4032 = vmul.f32 %v3608, %v3924
      %v4033 = vmul.f32 %v3610, %v3925
      %v4034 = vmul.f32 %v3612, %v3925
      %v4035 = vmul.f32 %v3614, %v3926
      %v4036 = vmul.f32 %v3616, %v3926
      %v4037 = vmul.f32 %v3618, %v3927
      %v4038 = vmul.f32 %v3620, %v3927
      %v4039 = vmul.f32 %v3622, %v3928
      %v4040 = vmul.f32 %v3624, %v3928
      %v4041 = vmul.f32 %v3626, %v3929
      %v4042 = vmul.f32 %v3628, %v3929
      %v4043 = vmul.f32 %v3630, %v3930
      %v4044 = vmul.f32 %v3632, %v3930
      %v4045 = vmul.f32 %v3634, %v3931
      %v4046 = vmul.f32 %v3636, %v3931
      %v4047 = vmul.f32 %v3638, %v3932
      %v4048 = vmul.f32 %v3640, %v3932
      %v4049 = vmul.f32 %v3642, %v3933
      %v4050 = vmul.f32 %v3644, %v3933
      %v4051 = vmul.f32 %v3646, %v3934
      %v4052 = vmul.f32 %v3648, %v3934
      %v4053 = vmul.f32 %v3650, %v3935
      %v4054 = vmul.f32 %v3652, %v3935
      %v4055 = vmul.f32 %v3654, %v3936
      %v4056 = vmul.f32 %v3656, %v3936
      %v4057 = vmul.f32 %v3658, %v3937
      %v4058 = vmul.f32 %v3660, %v3937
      %v4059 = vmul.f32 %v3662, %v3938
      %v4060 = vmul.f32 %v3664, %v3938
      %v4061 = vmul.f32 %v3666, %v3939
      %v4062 = vmul.f32 %v3668, %v3939
      %v4063 = vmul.f32 %v3670, %v3940
      %v4064 = vmul.f32 %v3672, %v3940
      %v4065 = vmul.f32 %v3674, %v3941
      %v4066 = vmul.f32 %v3676, %v3941
      %v4067 = vmul.f32 %v3678, %v3942
      %v4068 = vmul.f32 %v3680, %v3942
      %v4069 = vmul.f32 %v3682, %v3943
      %v4070 = vmul.f32 %v3684, %v3943
      %v4071 = vmul.f32 %v3686, %v3944
      %v4072 = vmul.f32 %v3688, %v3944
      %v4073 = vpack.c.bf16 %v3947, %v3945
      %v4074 = vpack.c.bf16 %v3948, %v3946
      %v4075 = vpack.c.bf16 %v3951, %v3949
      %v4076 = vpack.c.bf16 %v3952, %v3950
      %v4077 = vpack.c.bf16 %v3955, %v3953
      %v4078 = vpack.c.bf16 %v3956, %v3954
      %v4079 = vpack.c.bf16 %v3959, %v3957
      %v4080 = vpack.c.bf16 %v3960, %v3958
      %v4081 = vpack.c.bf16 %v3963, %v3961
      %v4082 = vpack.c.bf16 %v3964, %v3962
      %v4083 = vpack.c.bf16 %v3967, %v3965
      %v4084 = vpack.c.bf16 %v3968, %v3966
      %v4085 = vpack.c.bf16 %v3971, %v3969
      %v4086 = vpack.c.bf16 %v3972, %v3970
      %v4087 = vpack.c.bf16 %v3975, %v3973
      %v4088 = vpack.c.bf16 %v3976, %v3974
      %v4089 = vpack.c.bf16 %v3979, %v3977
      %v4090 = vpack.c.bf16 %v3980, %v3978
      %v4091 = vpack.c.bf16 %v3983, %v3981
      %v4092 = vpack.c.bf16 %v3984, %v3982
      %v4093 = vpack.c.bf16 %v3987, %v3985
      %v4094 = vpack.c.bf16 %v3988, %v3986
      %v4095 = vpack.c.bf16 %v3991, %v3989
      %v4096 = vpack.c.bf16 %v3992, %v3990
      %v4097 = vpack.c.bf16 %v3995, %v3993
      %v4098 = vpack.c.bf16 %v3996, %v3994
      %v4099 = vpack.c.bf16 %v3999, %v3997
      %v4100 = vpack.c.bf16 %v4000, %v3998
      %v4101 = vpack.c.bf16 %v4003, %v4001
      %v4102 = vpack.c.bf16 %v4004, %v4002
      %v4103 = vpack.c.bf16 %v4007, %v4005
      %v4104 = vpack.c.bf16 %v4008, %v4006
      %v4105 = vpack.c.bf16 %v4011, %v4009
      %v4106 = vpack.c.bf16 %v4012, %v4010
      %v4107 = vpack.c.bf16 %v4015, %v4013
      %v4108 = vpack.c.bf16 %v4016, %v4014
      %v4109 = vpack.c.bf16 %v4019, %v4017
      %v4110 = vpack.c.bf16 %v4020, %v4018
      %v4111 = vpack.c.bf16 %v4023, %v4021
      %v4112 = vpack.c.bf16 %v4024, %v4022
      %v4113 = vpack.c.bf16 %v4027, %v4025
      %v4114 = vpack.c.bf16 %v4028, %v4026
      %v4115 = vpack.c.bf16 %v4031, %v4029
      %v4116 = vpack.c.bf16 %v4032, %v4030
      %v4117 = vpack.c.bf16 %v4035, %v4033
      %v4118 = vpack.c.bf16 %v4036, %v4034
      %v4119 = vpack.c.bf16 %v4039, %v4037
      %v4120 = vpack.c.bf16 %v4040, %v4038
      %v4121 = vpack.c.bf16 %v4043, %v4041
      %v4122 = vpack.c.bf16 %v4044, %v4042
      %v4123 = vpack.c.bf16 %v4047, %v4045
      %v4124 = vpack.c.bf16 %v4048, %v4046
      %v4125 = vpack.c.bf16 %v4051, %v4049
      %v4126 = vpack.c.bf16 %v4052, %v4050
      %v4127 = vpack.c.bf16 %v4055, %v4053
      %v4128 = vpack.c.bf16 %v4056, %v4054
      %v4129 = vpack.c.bf16 %v4059, %v4057
      %v4130 = vpack.c.bf16 %v4060, %v4058
      %v4131 = vpack.c.bf16 %v4063, %v4061
      %v4132 = vpack.c.bf16 %v4064, %v4062
      %v4133 = vpack.c.bf16 %v4067, %v4065
      %v4134 = vpack.c.bf16 %v4068, %v4066
      %v4135 = vpack.c.bf16 %v4071, %v4069
      %v4136 = vpack.c.bf16 %v4072, %v4070
      %v4137 = vld [vmem:[#allocation3] sm:$0xff]
      %v4138 = vld [vmem:[#allocation3 + $0x8] sm:$0xff]
      %v4139 = vld [vmem:[#allocation3 + $0x10] sm:$0xff]
      %v4140 = vld [vmem:[#allocation3 + $0x18] sm:$0xff]
      %v4141 = vld [vmem:[#allocation3 + $0x20] sm:$0xff]
      %v4142 = vld [vmem:[#allocation3 + $0x28] sm:$0xff]
      %v4143 = vld [vmem:[#allocation3 + $0x30] sm:$0xff]
      %v4144 = vld [vmem:[#allocation3 + $0x38] sm:$0xff]
      %v4145 = vld [vmem:[#allocation3 + $0x40] sm:$0xff]
      %v4146 = vld [vmem:[#allocation3 + $0x48] sm:$0xff]
      %v4147 = vld [vmem:[#allocation3 + $0x50] sm:$0xff]
      %v4148 = vld [vmem:[#allocation3 + $0x58] sm:$0xff]
      %v4149 = vld [vmem:[#allocation3 + $0x60] sm:$0xff]
      %v4150 = vld [vmem:[#allocation3 + $0x68] sm:$0xff]
      %v4151 = vld [vmem:[#allocation3 + $0x70] sm:$0xff]
      %v4152 = vld [vmem:[#allocation3 + $0x78] sm:$0xff]
      %v4153 = vld [vmem:[#allocation3 + $0x80] sm:$0xff]
      %v4154 = vld [vmem:[#allocation3 + $0x88] sm:$0xff]
      %v4155 = vld [vmem:[#allocation3 + $0x90] sm:$0xff]
      %v4156 = vld [vmem:[#allocation3 + $0x98] sm:$0xff]
      %v4157 = vld [vmem:[#allocation3 + $0xa0] sm:$0xff]
      %v4158 = vld [vmem:[#allocation3 + $0xa8] sm:$0xff]
      %v4159 = vld [vmem:[#allocation3 + $0xb0] sm:$0xff]
      %v4160 = vld [vmem:[#allocation3 + $0xb8] sm:$0xff]
      %v4161 = vld [vmem:[#allocation3 + $0xc0] sm:$0xff]
      %v4162 = vld [vmem:[#allocation3 + $0xc8] sm:$0xff]
      %v4163 = vld [vmem:[#allocation3 + $0xd0] sm:$0xff]
      %v4164 = vld [vmem:[#allocation3 + $0xd8] sm:$0xff]
      %v4165 = vld [vmem:[#allocation3 + $0xe0] sm:$0xff]
      %v4166 = vld [vmem:[#allocation3 + $0xe8] sm:$0xff]
      %v4167 = vld [vmem:[#allocation3 + $0xf0] sm:$0xff]
      %v4168 = vld [vmem:[#allocation3 + $0xf8] sm:$0xff]
      %v4169 = vld [vmem:[#allocation3 + $0x100] sm:$0xff]
      %v4170 = vld [vmem:[#allocation3 + $0x108] sm:$0xff]
      %v4171 = vld [vmem:[#allocation3 + $0x110] sm:$0xff]
      %v4172 = vld [vmem:[#allocation3 + $0x118] sm:$0xff]
      %v4173 = vld [vmem:[#allocation3 + $0x120] sm:$0xff]
      %v4174 = vld [vmem:[#allocation3 + $0x128] sm:$0xff]
      %v4175 = vld [vmem:[#allocation3 + $0x130] sm:$0xff]
      %v4176 = vld [vmem:[#allocation3 + $0x138] sm:$0xff]
      %v4177 = vld [vmem:[#allocation3 + $0x140] sm:$0xff]
      %v4178 = vld [vmem:[#allocation3 + $0x148] sm:$0xff]
      %v4179 = vld [vmem:[#allocation3 + $0x150] sm:$0xff]
      %v4180 = vld [vmem:[#allocation3 + $0x158] sm:$0xff]
      %v4181 = vld [vmem:[#allocation3 + $0x160] sm:$0xff]
      %v4182 = vld [vmem:[#allocation3 + $0x168] sm:$0xff]
      %v4183 = vld [vmem:[#allocation3 + $0x170] sm:$0xff]
      %v4184 = vld [vmem:[#allocation3 + $0x178] sm:$0xff]
      %v4185 = vld [vmem:[#allocation3 + $0x180] sm:$0xff]
      %v4186 = vld [vmem:[#allocation3 + $0x188] sm:$0xff]
      %v4187 = vld [vmem:[#allocation3 + $0x190] sm:$0xff]
      %v4188 = vld [vmem:[#allocation3 + $0x198] sm:$0xff]
      %v4189 = vld [vmem:[#allocation3 + $0x1a0] sm:$0xff]
      %v4190 = vld [vmem:[#allocation3 + $0x1a8] sm:$0xff]
      %v4191 = vld [vmem:[#allocation3 + $0x1b0] sm:$0xff]
      %v4192 = vld [vmem:[#allocation3 + $0x1b8] sm:$0xff]
      %v4193 = vld [vmem:[#allocation3 + $0x1c0] sm:$0xff]
      %v4194 = vld [vmem:[#allocation3 + $0x1c8] sm:$0xff]
      %v4195 = vld [vmem:[#allocation3 + $0x1d0] sm:$0xff]
      %v4196 = vld [vmem:[#allocation3 + $0x1d8] sm:$0xff]
      %v4197 = vld [vmem:[#allocation3 + $0x1e0] sm:$0xff]
      %v4198 = vld [vmem:[#allocation3 + $0x1e8] sm:$0xff]
      %v4199 = vld [vmem:[#allocation3 + $0x1f0] sm:$0xff]
      %v4200 = vld [vmem:[#allocation3 + $0x1f8] sm:$0xff]
      %4201 = vmatprep.subr.bf16.mxu0 0
      %4202 = vmatpush1.bf16.msra.mxu0 %v4137
      %4203 = vmatprep.subr.bf16.mxu0 0
      %4204 = vmatpush1.bf16.msra.mxu0 %v4138
      %4205 = vmatprep.subr.bf16.mxu0 0
      %4206 = vmatpush1.bf16.msra.mxu0 %v4139
      %4207 = vmatprep.subr.bf16.mxu0 0
      %4208 = vmatpush1.bf16.msra.mxu0 %v4140
      %4209 = vmatprep.subr.bf16.mxu0 0
      %4210 = vmatpush1.bf16.msra.mxu0 %v4141
      %4211 = vmatprep.subr.bf16.mxu0 0
      %4212 = vmatpush1.bf16.msra.mxu0 %v4142
      %4213 = vmatprep.subr.bf16.mxu0 0
      %4214 = vmatpush1.bf16.msra.mxu0 %v4143
      %4215 = vmatprep.subr.bf16.mxu0 0
      %4216 = vmatpush1.bf16.msra.mxu0 %v4144
      %4217 = vmatprep.subr.bf16.mxu0 0
      %4218 = vmatpush1.bf16.msra.mxu0 %v4145
      %4219 = vmatprep.subr.bf16.mxu0 0
      %4220 = vmatpush1.bf16.msra.mxu0 %v4146
      %4221 = vmatprep.subr.bf16.mxu0 0
      %4222 = vmatpush1.bf16.msra.mxu0 %v4147
      %4223 = vmatprep.subr.bf16.mxu0 0
      %4224 = vmatpush1.bf16.msra.mxu0 %v4148
      %4225 = vmatprep.subr.bf16.mxu0 0
      %4226 = vmatpush1.bf16.msra.mxu0 %v4149
      %4227 = vmatprep.subr.bf16.mxu0 0
      %4228 = vmatpush1.bf16.msra.mxu0 %v4150
      %4229 = vmatprep.subr.bf16.mxu0 0
      %4230 = vmatpush1.bf16.msra.mxu0 %v4151
      %4231 = vmatprep.subr.bf16.mxu0 0
      %4232 = vmatpush1.bf16.msra.mxu0 %v4152
      %4233 = vmatprep.mubr.bf16.mxu0 %v4074
      %4234 = vmatmul.mubr.bf16.gmra.mrb[0].mxu0 %v4073
      %v4235 = vpop.f32.mrb[0].mxu0
      %v4236 = vadd.f32 0.0, %v4235
      %v4237 = vpop.f32.mrb[0].mxu0
      %v4238 = vpop.f32.mrb[0].mxu0
      %v4239 = vadd.f32 0.0, %v4238
      %v4240 = vpop.f32.mrb[0].mxu0
      %4241 = vmatprep.mubr.bf16.mxu0 %v4076
      %4242 = vmatmul.mubr.bf16.gmra.mrb[0].mxu0 %v4075
      %v4243 = vpop.f32.mrb[0].mxu0
      %v4244 = vadd.f32 0.0, %v4243
      %v4245 = vpop.f32.mrb[0].mxu0
      %v4246 = vpop.f32.mrb[0].mxu0
      %v4247 = vadd.f32 0.0, %v4246
      %v4248 = vpop.f32.mrb[0].mxu0
      %4249 = vmatprep.mubr.bf16.mxu0 %v4078
      %4250 = vmatmul.mubr.bf16.gmra.mrb[0].mxu0 %v4077
      %v4251 = vpop.f32.mrb[0].mxu0
      %v4252 = vadd.f32 0.0, %v4251
      %v4253 = vpop.f32.mrb[0].mxu0
      %v4254 = vpop.f32.mrb[0].mxu0
      %v4255 = vadd.f32 0.0, %v4254
      %v4256 = vpop.f32.mrb[0].mxu0
      %4257 = vmatprep.mubr.bf16.mxu0 %v4080
      %4258 = vmatmul.mubr.bf16.gmra.mrb[0].mxu0 %v4079
      %v4259 = vpop.f32.mrb[0].mxu0
      %v4260 = vadd.f32 0.0, %v4259
      %v4261 = vpop.f32.mrb[0].mxu0
      %v4262 = vpop.f32.mrb[0].mxu0
      %v4263 = vadd.f32 0.0, %v4262
      %v4264 = vpop.f32.mrb[0].mxu0
      %4265 = vmatprep.mubr.bf16.mxu0 %v4082
      %4266 = vmatmul.mubr.bf16.gmra.mrb[0].mxu0 %v4081
      %v4267 = vpop.f32.mrb[0].mxu0
      %v4268 = vadd.f32 0.0, %v4267
      %v4269 = vpop.f32.mrb[0].mxu0
      %v4270 = vpop.f32.mrb[0].mxu0
      %v4271 = vadd.f32 0.0, %v4270
      %v4272 = vpop.f32.mrb[0].mxu0
      %4273 = vmatprep.mubr.bf16.mxu0 %v4084
      %4274 = vmatmul.mubr.bf16.gmra.mrb[0].mxu0 %v4083
      %v4275 = vpop.f32.mrb[0].mxu0
      %v4276 = vadd.f32 0.0, %v4275
      %v4277 = vpop.f32.mrb[0].mxu0
      %v4278 = vpop.f32.mrb[0].mxu0
      %v4279 = vadd.f32 0.0, %v4278
      %v4280 = vpop.f32.mrb[0].mxu0
      %4281 = vmatprep.mubr.bf16.mxu0 %v4086
      %4282 = vmatmul.mubr.bf16.gmra.mrb[0].mxu0 %v4085
      %v4283 = vpop.f32.mrb[0].mxu0
      %v4284 = vadd.f32 0.0, %v4283
      %v4285 = vpop.f32.mrb[0].mxu0
      %v4286 = vpop.f32.mrb[0].mxu0
      %v4287 = vadd.f32 0.0, %v4286
      %v4288 = vpop.f32.mrb[0].mxu0
      %4289 = vmatprep.mubr.bf16.mxu0 %v4088
      %4290 = vmatmul.mubr.bf16.gmra.mrb[0].mxu0 %v4087
      %v4291 = vpop.f32.mrb[0].mxu0
      %v4292 = vadd.f32 0.0, %v4291
      %v4293 = vpop.f32.mrb[0].mxu0
      %v4294 = vpop.f32.mrb[0].mxu0
      %v4295 = vadd.f32 0.0, %v4294
      %v4296 = vpop.f32.mrb[0].mxu0
      %4297 = vdwg.mxu0
      %4298 = vmatprep.subr.bf16.mxu0 0
      %4299 = vmatpush1.bf16.msra.mxu0 %v4153
      %4300 = vmatprep.subr.bf16.mxu0 0
      %4301 = vmatpush1.bf16.msra.mxu0 %v4154
      %4302 = vmatprep.subr.bf16.mxu0 0
      %4303 = vmatpush1.bf16.msra.mxu0 %v4155
      %4304 = vmatprep.subr.bf16.mxu0 0
      %4305 = vmatpush1.bf16.msra.mxu0 %v4156
      %4306 = vmatprep.subr.bf16.mxu0 0
      %4307 = vmatpush1.bf16.msra.mxu0 %v4157
      %4308 = vmatprep.subr.bf16.mxu0 0
      %4309 = vmatpush1.bf16.msra.mxu0 %v4158
      %4310 = vmatprep.subr.bf16.mxu0 0
      %4311 = vmatpush1.bf16.msra.mxu0 %v4159
      %4312 = vmatprep.subr.bf16.mxu0 0
      %4313 = vmatpush1.bf16.msra.mxu0 %v4160
      %4314 = vmatprep.subr.bf16.mxu0 0
      %4315 = vmatpush1.bf16.msra.mxu0 %v4161
      %4316 = vmatprep.subr.bf16.mxu0 0
      %4317 = vmatpush1.bf16.msra.mxu0 %v4162
      %4318 = vmatprep.subr.bf16.mxu0 0
      %4319 = vmatpush1.bf16.msra.mxu0 %v4163
      %4320 = vmatprep.subr.bf16.mxu0 0
      %4321 = vmatpush1.bf16.msra.mxu0 %v4164
      %4322 = vmatprep.subr.bf16.mxu0 0
      %4323 = vmatpush1.bf16.msra.mxu0 %v4165
      %4324 = vmatprep.subr.bf16.mxu0 0
      %4325 = vmatpush1.bf16.msra.mxu0 %v4166
      %4326 = vmatprep.subr.bf16.mxu0 0
      %4327 = vmatpush1.bf16.msra.mxu0 %v4167
      %4328 = vmatprep.subr.bf16.mxu0 0
      %4329 = vmatpush1.bf16.msra.mxu0 %v4168
      %4330 = vmatprep.mubr.bf16.mxu0 %v4090
      %4331 = vmatmul.mubr.bf16.gmra.mrb[0].mxu0 %v4089
      %v4332 = vpop.f32.mrb[0].mxu0
      %v4333 = vadd.f32 0.0, %v4332
      %v4334 = vpop.f32.mrb[0].mxu0
      %v4335 = vpop.f32.mrb[0].mxu0
      %v4336 = vadd.f32 0.0, %v4335
      %v4337 = vpop.f32.mrb[0].mxu0
      %4338 = vmatprep.mubr.bf16.mxu0 %v4092
      %4339 = vmatmul.mubr.bf16.gmra.mrb[0].mxu0 %v4091
      %v4340 = vpop.f32.mrb[0].mxu0
      %v4341 = vadd.f32 0.0, %v4340
      %v4342 = vpop.f32.mrb[0].mxu0
      %v4343 = vpop.f32.mrb[0].mxu0
      %v4344 = vadd.f32 0.0, %v4343
      %v4345 = vpop.f32.mrb[0].mxu0
      %4346 = vmatprep.mubr.bf16.mxu0 %v4094
      %4347 = vmatmul.mubr.bf16.gmra.mrb[0].mxu0 %v4093
      %v4348 = vpop.f32.mrb[0].mxu0
      %v4349 = vadd.f32 0.0, %v4348
      %v4350 = vpop.f32.mrb[0].mxu0
      %v4351 = vpop.f32.mrb[0].mxu0
      %v4352 = vadd.f32 0.0, %v4351
      %v4353 = vpop.f32.mrb[0].mxu0
      %4354 = vmatprep.mubr.bf16.mxu0 %v4096
      %4355 = vmatmul.mubr.bf16.gmra.mrb[0].mxu0 %v4095
      %v4356 = vpop.f32.mrb[0].mxu0
      %v4357 = vadd.f32 0.0, %v4356
      %v4358 = vpop.f32.mrb[0].mxu0
      %v4359 = vpop.f32.mrb[0].mxu0
      %v4360 = vadd.f32 0.0, %v4359
      %v4361 = vpop.f32.mrb[0].mxu0
      %4362 = vmatprep.mubr.bf16.mxu0 %v4098
      %4363 = vmatmul.mubr.bf16.gmra.mrb[0].mxu0 %v4097
      %v4364 = vpop.f32.mrb[0].mxu0
      %v4365 = vadd.f32 0.0, %v4364
      %v4366 = vpop.f32.mrb[0].mxu0
      %v4367 = vpop.f32.mrb[0].mxu0
      %v4368 = vadd.f32 0.0, %v4367
      %v4369 = vpop.f32.mrb[0].mxu0
      %4370 = vmatprep.mubr.bf16.mxu0 %v4100
      %4371 = vmatmul.mubr.bf16.gmra.mrb[0].mxu0 %v4099
      %v4372 = vpop.f32.mrb[0].mxu0
      %v4373 = vadd.f32 0.0, %v4372
      %v4374 = vpop.f32.mrb[0].mxu0
      %v4375 = vpop.f32.mrb[0].mxu0
      %v4376 = vadd.f32 0.0, %v4375
      %v4377 = vpop.f32.mrb[0].mxu0
      %4378 = vmatprep.mubr.bf16.mxu0 %v4102
      %4379 = vmatmul.mubr.bf16.gmra.mrb[0].mxu0 %v4101
      %v4380 = vpop.f32.mrb[0].mxu0
      %v4381 = vadd.f32 0.0, %v4380
      %v4382 = vpop.f32.mrb[0].mxu0
      %v4383 = vpop.f32.mrb[0].mxu0
      %v4384 = vadd.f32 0.0, %v4383
      %v4385 = vpop.f32.mrb[0].mxu0
      %4386 = vmatprep.mubr.bf16.mxu0 %v4104
      %4387 = vmatmul.mubr.bf16.gmra.mrb[0].mxu0 %v4103
      %v4388 = vpop.f32.mrb[0].mxu0
      %v4389 = vadd.f32 0.0, %v4388
      %v4390 = vpop.f32.mrb[0].mxu0
      %v4391 = vpop.f32.mrb[0].mxu0
      %v4392 = vadd.f32 0.0, %v4391
      %v4393 = vpop.f32.mrb[0].mxu0
      %4394 = vdwg.mxu0
      %4395 = vmatprep.subr.bf16.mxu0 0
      %4396 = vmatpush1.bf16.msra.mxu0 %v4169
      %4397 = vmatprep.subr.bf16.mxu0 0
      %4398 = vmatpush1.bf16.msra.mxu0 %v4170
      %4399 = vmatprep.subr.bf16.mxu0 0
      %4400 = vmatpush1.bf16.msra.mxu0 %v4171
      %4401 = vmatprep.subr.bf16.mxu0 0
      %4402 = vmatpush1.bf16.msra.mxu0 %v4172
      %4403 = vmatprep.subr.bf16.mxu0 0
      %4404 = vmatpush1.bf16.msra.mxu0 %v4173
      %4405 = vmatprep.subr.bf16.mxu0 0
      %4406 = vmatpush1.bf16.msra.mxu0 %v4174
      %4407 = vmatprep.subr.bf16.mxu0 0
      %4408 = vmatpush1.bf16.msra.mxu0 %v4175
      %4409 = vmatprep.subr.bf16.mxu0 0
      %4410 = vmatpush1.bf16.msra.mxu0 %v4176
      %4411 = vmatprep.subr.bf16.mxu0 0
      %4412 = vmatpush1.bf16.msra.mxu0 %v4177
      %4413 = vmatprep.subr.bf16.mxu0 0
      %4414 = vmatpush1.bf16.msra.mxu0 %v4178
      %4415 = vmatprep.subr.bf16.mxu0 0
      %4416 = vmatpush1.bf16.msra.mxu0 %v4179
      %4417 = vmatprep.subr.bf16.mxu0 0
      %4418 = vmatpush1.bf16.msra.mxu0 %v4180
      %4419 = vmatprep.subr.bf16.mxu0 0
      %4420 = vmatpush1.bf16.msra.mxu0 %v4181
      %4421 = vmatprep.subr.bf16.mxu0 0
      %4422 = vmatpush1.bf16.msra.mxu0 %v4182
      %4423 = vmatprep.subr.bf16.mxu0 0
      %4424 = vmatpush1.bf16.msra.mxu0 %v4183
      %4425 = vmatprep.subr.bf16.mxu0 0
      %4426 = vmatpush1.bf16.msra.mxu0 %v4184
      %4427 = vmatprep.mubr.bf16.mxu0 %v4106
      %4428 = vmatmul.mubr.bf16.gmra.mrb[0].mxu0 %v4105
      %v4429 = vpop.f32.mrb[0].mxu0
      %v4430 = vadd.f32 0.0, %v4429
      %v4431 = vpop.f32.mrb[0].mxu0
      %v4432 = vpop.f32.mrb[0].mxu0
      %v4433 = vadd.f32 0.0, %v4432
      %v4434 = vpop.f32.mrb[0].mxu0
      %4435 = vmatprep.mubr.bf16.mxu0 %v4108
      %4436 = vmatmul.mubr.bf16.gmra.mrb[0].mxu0 %v4107
      %v4437 = vpop.f32.mrb[0].mxu0
      %v4438 = vadd.f32 0.0, %v4437
      %v4439 = vpop.f32.mrb[0].mxu0
      %v4440 = vpop.f32.mrb[0].mxu0
      %v4441 = vadd.f32 0.0, %v4440
      %v4442 = vpop.f32.mrb[0].mxu0
      %4443 = vmatprep.mubr.bf16.mxu0 %v4110
      %4444 = vmatmul.mubr.bf16.gmra.mrb[0].mxu0 %v4109
      %v4445 = vpop.f32.mrb[0].mxu0
      %v4446 = vadd.f32 0.0, %v4445
      %v4447 = vpop.f32.mrb[0].mxu0
      %v4448 = vpop.f32.mrb[0].mxu0
      %v4449 = vadd.f32 0.0, %v4448
      %v4450 = vpop.f32.mrb[0].mxu0
      %4451 = vmatprep.mubr.bf16.mxu0 %v4112
      %4452 = vmatmul.mubr.bf16.gmra.mrb[0].mxu0 %v4111
      %v4453 = vpop.f32.mrb[0].mxu0
      %v4454 = vadd.f32 0.0, %v4453
      %v4455 = vpop.f32.mrb[0].mxu0
      %v4456 = vpop.f32.mrb[0].mxu0
      %v4457 = vadd.f32 0.0, %v4456
      %v4458 = vpop.f32.mrb[0].mxu0
      %4459 = vmatprep.mubr.bf16.mxu0 %v4114
      %4460 = vmatmul.mubr.bf16.gmra.mrb[0].mxu0 %v4113
      %v4461 = vpop.f32.mrb[0].mxu0
      %v4462 = vadd.f32 0.0, %v4461
      %v4463 = vpop.f32.mrb[0].mxu0
      %v4464 = vpop.f32.mrb[0].mxu0
      %v4465 = vadd.f32 0.0, %v4464
      %v4466 = vpop.f32.mrb[0].mxu0
      %4467 = vmatprep.mubr.bf16.mxu0 %v4116
      %4468 = vmatmul.mubr.bf16.gmra.mrb[0].mxu0 %v4115
      %v4469 = vpop.f32.mrb[0].mxu0
      %v4470 = vadd.f32 0.0, %v4469
      %v4471 = vpop.f32.mrb[0].mxu0
      %v4472 = vpop.f32.mrb[0].mxu0
      %v4473 = vadd.f32 0.0, %v4472
      %v4474 = vpop.f32.mrb[0].mxu0
      %4475 = vmatprep.mubr.bf16.mxu0 %v4118
      %4476 = vmatmul.mubr.bf16.gmra.mrb[0].mxu0 %v4117
      %v4477 = vpop.f32.mrb[0].mxu0
      %v4478 = vadd.f32 0.0, %v4477
      %v4479 = vpop.f32.mrb[0].mxu0
      %v4480 = vpop.f32.mrb[0].mxu0
      %v4481 = vadd.f32 0.0, %v4480
      %v4482 = vpop.f32.mrb[0].mxu0
      %4483 = vmatprep.mubr.bf16.mxu0 %v4120
      %4484 = vmatmul.mubr.bf16.gmra.mrb[0].mxu0 %v4119
      %v4485 = vpop.f32.mrb[0].mxu0
      %v4486 = vadd.f32 0.0, %v4485
      %v4487 = vpop.f32.mrb[0].mxu0
      %v4488 = vpop.f32.mrb[0].mxu0
      %v4489 = vadd.f32 0.0, %v4488
      %v4490 = vpop.f32.mrb[0].mxu0
      %4491 = vdwg.mxu0
      %4492 = vmatprep.subr.bf16.mxu0 0
      %4493 = vmatpush1.bf16.msra.mxu0 %v4185
      %4494 = vmatprep.subr.bf16.mxu0 0
      %4495 = vmatpush1.bf16.msra.mxu0 %v4186
      %4496 = vmatprep.subr.bf16.mxu0 0
      %4497 = vmatpush1.bf16.msra.mxu0 %v4187
      %4498 = vmatprep.subr.bf16.mxu0 0
      %4499 = vmatpush1.bf16.msra.mxu0 %v4188
      %4500 = vmatprep.subr.bf16.mxu0 0
      %4501 = vmatpush1.bf16.msra.mxu0 %v4189
      %4502 = vmatprep.subr.bf16.mxu0 0
      %4503 = vmatpush1.bf16.msra.mxu0 %v4190
      %4504 = vmatprep.subr.bf16.mxu0 0
      %4505 = vmatpush1.bf16.msra.mxu0 %v4191
      %4506 = vmatprep.subr.bf16.mxu0 0
      %4507 = vmatpush1.bf16.msra.mxu0 %v4192
      %4508 = vmatprep.subr.bf16.mxu0 0
      %4509 = vmatpush1.bf16.msra.mxu0 %v4193
      %4510 = vmatprep.subr.bf16.mxu0 0
      %4511 = vmatpush1.bf16.msra.mxu0 %v4194
      %4512 = vmatprep.subr.bf16.mxu0 0
      %4513 = vmatpush1.bf16.msra.mxu0 %v4195
      %4514 = vmatprep.subr.bf16.mxu0 0
      %4515 = vmatpush1.bf16.msra.mxu0 %v4196
      %4516 = vmatprep.subr.bf16.mxu0 0
      %4517 = vmatpush1.bf16.msra.mxu0 %v4197
      %4518 = vmatprep.subr.bf16.mxu0 0
      %4519 = vmatpush1.bf16.msra.mxu0 %v4198
      %4520 = vmatprep.subr.bf16.mxu0 0
      %4521 = vmatpush1.bf16.msra.mxu0 %v4199
      %4522 = vmatprep.subr.bf16.mxu0 0
      %4523 = vmatpush1.bf16.msra.mxu0 %v4200
      %4524 = vmatprep.mubr.bf16.mxu0 %v4122
      %4525 = vmatmul.mubr.bf16.gmra.mrb[0].mxu0 %v4121
      %v4526 = vpop.f32.mrb[0].mxu0
      %v4527 = vadd.f32 0.0, %v4526
      %v4528 = vpop.f32.mrb[0].mxu0
      %v4529 = vpop.f32.mrb[0].mxu0
      %v4530 = vadd.f32 0.0, %v4529
      %v4531 = vpop.f32.mrb[0].mxu0
      %4532 = vmatprep.mubr.bf16.mxu0 %v4124
      %4533 = vmatmul.mubr.bf16.gmra.mrb[0].mxu0 %v4123
      %v4534 = vpop.f32.mrb[0].mxu0
      %v4535 = vadd.f32 0.0, %v4534
      %v4536 = vpop.f32.mrb[0].mxu0
      %v4537 = vpop.f32.mrb[0].mxu0
      %v4538 = vadd.f32 0.0, %v4537
      %v4539 = vpop.f32.mrb[0].mxu0
      %4540 = vmatprep.mubr.bf16.mxu0 %v4126
      %4541 = vmatmul.mubr.bf16.gmra.mrb[0].mxu0 %v4125
      %v4542 = vpop.f32.mrb[0].mxu0
      %v4543 = vadd.f32 0.0, %v4542
      %v4544 = vpop.f32.mrb[0].mxu0
      %v4545 = vpop.f32.mrb[0].mxu0
      %v4546 = vadd.f32 0.0, %v4545
      %v4547 = vpop.f32.mrb[0].mxu0
      %4548 = vmatprep.mubr.bf16.mxu0 %v4128
      %4549 = vmatmul.mubr.bf16.gmra.mrb[0].mxu0 %v4127
      %v4550 = vpop.f32.mrb[0].mxu0
      %v4551 = vadd.f32 0.0, %v4550
      %v4552 = vpop.f32.mrb[0].mxu0
      %v4553 = vpop.f32.mrb[0].mxu0
      %v4554 = vadd.f32 0.0, %v4553
      %v4555 = vpop.f32.mrb[0].mxu0
      %4556 = vmatprep.mubr.bf16.mxu0 %v4130
      %4557 = vmatmul.mubr.bf16.gmra.mrb[0].mxu0 %v4129
      %v4558 = vpop.f32.mrb[0].mxu0
      %v4559 = vadd.f32 0.0, %v4558
      %v4560 = vpop.f32.mrb[0].mxu0
      %v4561 = vpop.f32.mrb[0].mxu0
      %v4562 = vadd.f32 0.0, %v4561
      %v4563 = vpop.f32.mrb[0].mxu0
      %4564 = vmatprep.mubr.bf16.mxu0 %v4132
      %4565 = vmatmul.mubr.bf16.gmra.mrb[0].mxu0 %v4131
      %v4566 = vpop.f32.mrb[0].mxu0
      %v4567 = vadd.f32 0.0, %v4566
      %v4568 = vpop.f32.mrb[0].mxu0
      %v4569 = vpop.f32.mrb[0].mxu0
      %v4570 = vadd.f32 0.0, %v4569
      %v4571 = vpop.f32.mrb[0].mxu0
      %4572 = vmatprep.mubr.bf16.mxu0 %v4134
      %4573 = vmatmul.mubr.bf16.gmra.mrb[0].mxu0 %v4133
      %v4574 = vpop.f32.mrb[0].mxu0
      %v4575 = vadd.f32 0.0, %v4574
      %v4576 = vpop.f32.mrb[0].mxu0
      %v4577 = vpop.f32.mrb[0].mxu0
      %v4578 = vadd.f32 0.0, %v4577
      %v4579 = vpop.f32.mrb[0].mxu0
      %4580 = vmatprep.mubr.bf16.mxu0 %v4136
      %4581 = vmatmul.mubr.bf16.gmra.mrb[0].mxu0 %v4135
      %v4582 = vpop.f32.mrb[0].mxu0
      %v4583 = vadd.f32 0.0, %v4582
      %v4584 = vpop.f32.mrb[0].mxu0
      %v4585 = vpop.f32.mrb[0].mxu0
      %v4586 = vadd.f32 0.0, %v4585
      %v4587 = vpop.f32.mrb[0].mxu0
      %4588 = vdwg.mxu0
      %4605 = vrot.lane.b32.xlu0 %v4333, 8
      %v4606 = vpop.permute.xlu0 %4605
      %4607 = vrot.lane.b32.xlu0 %v4336, 8
      %v4608 = vpop.permute.xlu0 %4607
      %4609 = vrot.lane.b32.xlu0 %v4341, 8
      %v4610 = vpop.permute.xlu0 %4609
      %4611 = vrot.lane.b32.xlu0 %v4344, 8
      %v4612 = vpop.permute.xlu0 %4611
      %4613 = vrot.lane.b32.xlu0 %v4349, 8
      %v4614 = vpop.permute.xlu0 %4613
      %4615 = vrot.lane.b32.xlu0 %v4352, 8
      %v4616 = vpop.permute.xlu0 %4615
      %4617 = vrot.lane.b32.xlu0 %v4357, 8
      %v4618 = vpop.permute.xlu0 %4617
      %4619 = vrot.lane.b32.xlu0 %v4360, 8
      %v4620 = vpop.permute.xlu0 %4619
      %4621 = vrot.lane.b32.xlu0 %v4365, 8
      %v4622 = vpop.permute.xlu0 %4621
      %4623 = vrot.lane.b32.xlu0 %v4368, 8
      %v4624 = vpop.permute.xlu0 %4623
      %4625 = vrot.lane.b32.xlu0 %v4373, 8
      %v4626 = vpop.permute.xlu0 %4625
      %4627 = vrot.lane.b32.xlu0 %v4376, 8
      %v4628 = vpop.permute.xlu0 %4627
      %4629 = vrot.lane.b32.xlu0 %v4381, 8
      %v4630 = vpop.permute.xlu0 %4629
      %4631 = vrot.lane.b32.xlu0 %v4384, 8
      %v4632 = vpop.permute.xlu0 %4631
      %4633 = vrot.lane.b32.xlu0 %v4389, 8
      %v4634 = vpop.permute.xlu0 %4633
      %4635 = vrot.lane.b32.xlu0 %v4392, 8
      %v4636 = vpop.permute.xlu0 %4635
      %4669 = vrot.lane.b32.xlu0 %v4430, 16
      %v4670 = vpop.permute.xlu0 %4669
      %4671 = vrot.lane.b32.xlu0 %v4433, 16
      %v4672 = vpop.permute.xlu0 %4671
      %4673 = vrot.lane.b32.xlu0 %v4438, 16
      %v4674 = vpop.permute.xlu0 %4673
      %4675 = vrot.lane.b32.xlu0 %v4441, 16
      %v4676 = vpop.permute.xlu0 %4675
      %4677 = vrot.lane.b32.xlu0 %v4446, 16
      %v4678 = vpop.permute.xlu0 %4677
      %4679 = vrot.lane.b32.xlu0 %v4449, 16
      %v4680 = vpop.permute.xlu0 %4679
      %4681 = vrot.lane.b32.xlu0 %v4454, 16
      %v4682 = vpop.permute.xlu0 %4681
      %4683 = vrot.lane.b32.xlu0 %v4457, 16
      %v4684 = vpop.permute.xlu0 %4683
      %4685 = vrot.lane.b32.xlu0 %v4462, 16
      %v4686 = vpop.permute.xlu0 %4685
      %4687 = vrot.lane.b32.xlu0 %v4465, 16
      %v4688 = vpop.permute.xlu0 %4687
      %4689 = vrot.lane.b32.xlu0 %v4470, 16
      %v4690 = vpop.permute.xlu0 %4689
      %4691 = vrot.lane.b32.xlu0 %v4473, 16
      %v4692 = vpop.permute.xlu0 %4691
      %4693 = vrot.lane.b32.xlu0 %v4478, 16
      %v4694 = vpop.permute.xlu0 %4693
      %4695 = vrot.lane.b32.xlu0 %v4481, 16
      %v4696 = vpop.permute.xlu0 %4695
      %4697 = vrot.lane.b32.xlu0 %v4486, 16
      %v4698 = vpop.permute.xlu0 %4697
      %4699 = vrot.lane.b32.xlu0 %v4489, 16
      %v4700 = vpop.permute.xlu0 %4699
      %4733 = vrot.lane.b32.xlu0 %v4527, 24
      %v4734 = vpop.permute.xlu0 %4733
      %4735 = vrot.lane.b32.xlu0 %v4530, 24
      %v4736 = vpop.permute.xlu0 %4735
      %4737 = vrot.lane.b32.xlu0 %v4535, 24
      %v4738 = vpop.permute.xlu0 %4737
      %4739 = vrot.lane.b32.xlu0 %v4538, 24
      %v4740 = vpop.permute.xlu0 %4739
      %4741 = vrot.lane.b32.xlu0 %v4543, 24
      %v4742 = vpop.permute.xlu0 %4741
      %4743 = vrot.lane.b32.xlu0 %v4546, 24
      %v4744 = vpop.permute.xlu0 %4743
      %4745 = vrot.lane.b32.xlu0 %v4551, 24
      %v4746 = vpop.permute.xlu0 %4745
      %4747 = vrot.lane.b32.xlu0 %v4554, 24
      %v4748 = vpop.permute.xlu0 %4747
      %4749 = vrot.lane.b32.xlu0 %v4559, 24
      %v4750 = vpop.permute.xlu0 %4749
      %4751 = vrot.lane.b32.xlu0 %v4562, 24
      %v4752 = vpop.permute.xlu0 %4751
      %4753 = vrot.lane.b32.xlu0 %v4567, 24
      %v4754 = vpop.permute.xlu0 %4753
      %4755 = vrot.lane.b32.xlu0 %v4570, 24
      %v4756 = vpop.permute.xlu0 %4755
      %4757 = vrot.lane.b32.xlu0 %v4575, 24
      %v4758 = vpop.permute.xlu0 %4757
      %4759 = vrot.lane.b32.xlu0 %v4578, 24
      %v4760 = vpop.permute.xlu0 %4759
      %4761 = vrot.lane.b32.xlu0 %v4583, 24
      %v4762 = vpop.permute.xlu0 %4761
      %4763 = vrot.lane.b32.xlu0 %v4586, 24
      %v4764 = vpop.permute.xlu0 %4763
      %v4781 = vsel %vm2372, %v4236, %v4606
      %v4782 = vsel %vm2372, %v4239, %v4608
      %v4783 = vsel %vm2372, %v4244, %v4610
      %v4784 = vsel %vm2372, %v4247, %v4612
      %v4785 = vsel %vm2372, %v4252, %v4614
      %v4786 = vsel %vm2372, %v4255, %v4616
      %v4787 = vsel %vm2372, %v4260, %v4618
      %v4788 = vsel %vm2372, %v4263, %v4620
      %v4789 = vsel %vm2372, %v4268, %v4622
      %v4790 = vsel %vm2372, %v4271, %v4624
      %v4791 = vsel %vm2372, %v4276, %v4626
      %v4792 = vsel %vm2372, %v4279, %v4628
      %v4793 = vsel %vm2372, %v4284, %v4630
      %v4794 = vsel %vm2372, %v4287, %v4632
      %v4795 = vsel %vm2372, %v4292, %v4634
      %v4796 = vsel %vm2372, %v4295, %v4636
      %vm4797 = vcmask 130048
      %v4798 = vsel %vm4797, %v4781, %v4670
      %v4799 = vsel %vm4797, %v4782, %v4672
      %v4800 = vsel %vm4797, %v4783, %v4674
      %v4801 = vsel %vm4797, %v4784, %v4676
      %v4802 = vsel %vm4797, %v4785, %v4678
      %v4803 = vsel %vm4797, %v4786, %v4680
      %v4804 = vsel %vm4797, %v4787, %v4682
      %v4805 = vsel %vm4797, %v4788, %v4684
      %v4806 = vsel %vm4797, %v4789, %v4686
      %v4807 = vsel %vm4797, %v4790, %v4688
      %v4808 = vsel %vm4797, %v4791, %v4690
      %v4809 = vsel %vm4797, %v4792, %v4692
      %v4810 = vsel %vm4797, %v4793, %v4694
      %v4811 = vsel %vm4797, %v4794, %v4696
      %v4812 = vsel %vm4797, %v4795, %v4698
      %v4813 = vsel %vm4797, %v4796, %v4700
      %vm4814 = vcmask 195584
      %v4815 = vsel %vm4814, %v4798, %v4734
      %v4816 = vsel %vm4814, %v4799, %v4736
      %v4817 = vsel %vm4814, %v4800, %v4738
      %v4818 = vsel %vm4814, %v4801, %v4740
      %v4819 = vsel %vm4814, %v4802, %v4742
      %v4820 = vsel %vm4814, %v4803, %v4744
      %v4821 = vsel %vm4814, %v4804, %v4746
      %v4822 = vsel %vm4814, %v4805, %v4748
      %v4823 = vsel %vm4814, %v4806, %v4750
      %v4824 = vsel %vm4814, %v4807, %v4752
      %v4825 = vsel %vm4814, %v4808, %v4754
      %v4826 = vsel %vm4814, %v4809, %v4756
      %v4827 = vsel %vm4814, %v4810, %v4758
      %v4828 = vsel %vm4814, %v4811, %v4760
      %v4829 = vsel %vm4814, %v4812, %v4762
      %v4830 = vsel %vm4814, %v4813, %v4764
      %v4831 = vpack.c.bf16 %v4816, %v4815
      %v4832 = vpack.c.bf16 %v4818, %v4817
      %v4833 = vpack.c.bf16 %v4820, %v4819
      %v4834 = vpack.c.bf16 %v4822, %v4821
      %v4835 = vpack.c.bf16 %v4824, %v4823
      %v4836 = vpack.c.bf16 %v4826, %v4825
      %v4837 = vpack.c.bf16 %v4828, %v4827
      %v4838 = vpack.c.bf16 %v4830, %v4829
      %v4839 = vld [vmem:[%s8] sm:$0xf]
      %v4840 = vld [vmem:[%s8 + $0x4] sm:$0xf]
      %v4841 = vld [vmem:[%s8 + $0x8] sm:$0xf]
      %v4842 = vld [vmem:[%s8 + $0xc] sm:$0xf]
      %v4843 = vld [vmem:[%s9] sm:$0x1]
      %v4845 = vlaneseq
      %v4846 = vshrl.u32 %v4845, 7
      %v4847 = vsub.s32 0, %v4846
      %v4848 = vrot.slane %v4843, %v4847
      %v4854 = vunpack.c.l.b16 %v4839
      %v4855 = vunpack.c.l.b16 %v4840
      %v4856 = vunpack.c.l.b16 %v4841
      %v4857 = vunpack.c.l.b16 %v4842
      %v4858 = vpack.c.b16 %v4855, %v4854
      %v4859 = vpack.c.b16 %v4857, %v4856
      %v4863 = vsel %vm1837, %v4831, 0
      %v4866 = vsel %vm1837, %v4832, 0
      %v4869 = vsel %vm1837, %v4833, 0
      %v4872 = vsel %vm1837, %v4834, 0
      %v4875 = vsel %vm1837, %v4835, 0
      %v4878 = vsel %vm1837, %v4836, 0
      %v4881 = vsel %vm1837, %v4837, 0
      %v4884 = vsel %vm1837, %v4838, 0
      %4886 = vmatprep.subr.bf16.mxu0 0
      %4887 = vmatpush1.bf16.msra.mxu0 %v4858
      %4888 = vmatprep.subr.bf16.mxu0 0
      %4889 = vmatpush1.bf16.msra.mxu0 %v4859
      %4890 = vmatprep.subr.bf16.mxu0 0
      %4891 = vmatpush1.bf16.msra.mxu0 0
      %4892 = vmatprep.subr.bf16.mxu0 0
      %4893 = vmatpush1.bf16.msra.mxu0 0
      %4894 = vmatprep.subr.bf16.mxu0 0
      %4895 = vmatpush1.bf16.msra.mxu0 0
      %4896 = vmatprep.subr.bf16.mxu0 0
      %4897 = vmatpush1.bf16.msra.mxu0 0
      %4898 = vmatprep.subr.bf16.mxu0 0
      %4899 = vmatpush1.bf16.msra.mxu0 0
      %4900 = vmatprep.subr.bf16.mxu0 0
      %4901 = vmatpush1.bf16.msra.mxu0 0
      %4902 = vmatprep.subr.bf16.mxu0 0
      %4903 = vmatpush1.bf16.msra.mxu0 0
      %4904 = vmatprep.subr.bf16.mxu0 0
      %4905 = vmatpush1.bf16.msra.mxu0 0
      %4906 = vmatprep.subr.bf16.mxu0 0
      %4907 = vmatpush1.bf16.msra.mxu0 0
      %4908 = vmatprep.subr.bf16.mxu0 0
      %4909 = vmatpush1.bf16.msra.mxu0 0
      %4910 = vmatprep.subr.bf16.mxu0 0
      %4911 = vmatpush1.bf16.msra.mxu0 0
      %4912 = vmatprep.subr.bf16.mxu0 0
      %4913 = vmatpush1.bf16.msra.mxu0 0
      %4914 = vmatprep.subr.bf16.mxu0 0
      %4915 = vmatpush1.bf16.msra.mxu0 0
      %4916 = vmatprep.subr.bf16.mxu0 0
      %4917 = vmatpush1.bf16.msra.mxu0 0
      %4918 = vmatprep.mubr.bf16.mxu0 0
      %4919 = vmatmul.mubr.bf16.gmra.mrb[0].mxu0 %v4863
      %v4920 = vpop.f32.mrb[0].mxu0
      %v4921 = vadd.f32 %v4848, %v4920
      %v4922 = vpop.f32.mrb[0].mxu0
      %v4923 = vpop.f32.mrb[0].mxu0
      %v4924 = vadd.f32 %v4848, %v4923
      %v4925 = vpop.f32.mrb[0].mxu0
      %4926 = vmatprep.mubr.bf16.mxu0 0
      %4927 = vmatmul.mubr.bf16.gmra.mrb[0].mxu0 %v4866
      %v4928 = vpop.f32.mrb[0].mxu0
      %v4929 = vadd.f32 %v4848, %v4928
      %v4930 = vpop.f32.mrb[0].mxu0
      %v4931 = vpop.f32.mrb[0].mxu0
      %v4932 = vadd.f32 %v4848, %v4931
      %v4933 = vpop.f32.mrb[0].mxu0
      %4934 = vmatprep.mubr.bf16.mxu0 0
      %4935 = vmatmul.mubr.bf16.gmra.mrb[0].mxu0 %v4869
      %v4936 = vpop.f32.mrb[0].mxu0
      %v4937 = vadd.f32 %v4848, %v4936
      %v4938 = vpop.f32.mrb[0].mxu0
      %v4939 = vpop.f32.mrb[0].mxu0
      %v4940 = vadd.f32 %v4848, %v4939
      %v4941 = vpop.f32.mrb[0].mxu0
      %4942 = vmatprep.mubr.bf16.mxu0 0
      %4943 = vmatmul.mubr.bf16.gmra.mrb[0].mxu0 %v4872
      %v4944 = vpop.f32.mrb[0].mxu0
      %v4945 = vadd.f32 %v4848, %v4944
      %v4946 = vpop.f32.mrb[0].mxu0
      %v4947 = vpop.f32.mrb[0].mxu0
      %v4948 = vadd.f32 %v4848, %v4947
      %v4949 = vpop.f32.mrb[0].mxu0
      %4950 = vmatprep.mubr.bf16.mxu0 0
      %4951 = vmatmul.mubr.bf16.gmra.mrb[0].mxu0 %v4875
      %v4952 = vpop.f32.mrb[0].mxu0
      %v4953 = vadd.f32 %v4848, %v4952
      %v4954 = vpop.f32.mrb[0].mxu0
      %v4955 = vpop.f32.mrb[0].mxu0
      %v4956 = vadd.f32 %v4848, %v4955
      %v4957 = vpop.f32.mrb[0].mxu0
      %4958 = vmatprep.mubr.bf16.mxu0 0
      %4959 = vmatmul.mubr.bf16.gmra.mrb[0].mxu0 %v4878
      %v4960 = vpop.f32.mrb[0].mxu0
      %v4961 = vadd.f32 %v4848, %v4960
      %v4962 = vpop.f32.mrb[0].mxu0
      %v4963 = vpop.f32.mrb[0].mxu0
      %v4964 = vadd.f32 %v4848, %v4963
      %v4965 = vpop.f32.mrb[0].mxu0
      %4966 = vmatprep.mubr.bf16.mxu0 0
      %4967 = vmatmul.mubr.bf16.gmra.mrb[0].mxu0 %v4881
      %v4968 = vpop.f32.mrb[0].mxu0
      %v4969 = vadd.f32 %v4848, %v4968
      %v4970 = vpop.f32.mrb[0].mxu0
      %v4971 = vpop.f32.mrb[0].mxu0
      %v4972 = vadd.f32 %v4848, %v4971
      %v4973 = vpop.f32.mrb[0].mxu0
      %4974 = vmatprep.mubr.bf16.mxu0 0
      %4975 = vmatmul.mubr.bf16.gmra.mrb[0].mxu0 %v4884
      %v4976 = vpop.f32.mrb[0].mxu0
      %v4977 = vadd.f32 %v4848, %v4976
      %v4978 = vpop.f32.mrb[0].mxu0
      %v4979 = vpop.f32.mrb[0].mxu0
      %v4980 = vadd.f32 %v4848, %v4979
      %v4981 = vpop.f32.mrb[0].mxu0
      %4982 = vdwg.mxu0
      %v4983 = vadd.f32 %v2076, %v4921
      %v4984 = vadd.f32 %v2077, %v4924
      %v4985 = vadd.f32 %v2078, %v4929
      %v4986 = vadd.f32 %v2079, %v4932
      %v4987 = vadd.f32 %v2080, %v4937
      %v4988 = vadd.f32 %v2081, %v4940
      %v4989 = vadd.f32 %v2082, %v4945
      %v4990 = vadd.f32 %v2083, %v4948
      %v4991 = vadd.f32 %v2084, %v4953
      %v4992 = vadd.f32 %v2085, %v4956
      %v4993 = vadd.f32 %v2086, %v4961
      %v4994 = vadd.f32 %v2087, %v4964
      %v4995 = vadd.f32 %v2088, %v4969
      %v4996 = vadd.f32 %v2089, %v4972
      %v4997 = vadd.f32 %v2090, %v4977
      %v4998 = vadd.f32 %v2091, %v4980
      %v4999 = vpack.c.bf16 %v4984, %v4983
      %v5000 = vpack.c.bf16 %v4986, %v4985
      %v5001 = vpack.c.bf16 %v4988, %v4987
      %v5002 = vpack.c.bf16 %v4990, %v4989
      %v5003 = vpack.c.bf16 %v4992, %v4991
      %v5004 = vpack.c.bf16 %v4994, %v4993
      %v5005 = vpack.c.bf16 %v4996, %v4995
      %v5006 = vpack.c.bf16 %v4998, %v4997
      %v5007 = vld [vmem:[%s10] sm:$0xf]
      %v5008 = vld [vmem:[%s10 + $0x4] sm:$0xf]
      %v5009 = vld [vmem:[%s10 + $0x8] sm:$0xf]
      %v5010 = vld [vmem:[%s10 + $0xc] sm:$0xf]
      %v5011 = vld [vmem:[%s11] sm:$0x1]
      %v5013 = vlaneseq
      %v5014 = vshrl.u32 %v5013, 7
      %v5015 = vsub.s32 0, %v5014
      %v5016 = vrot.slane %v5011, %v5015
      %v5022 = vunpack.c.l.b16 %v5007
      %v5023 = vunpack.c.l.b16 %v5008
      %v5024 = vunpack.c.l.b16 %v5009
      %v5025 = vunpack.c.l.b16 %v5010
      %v5026 = vpack.c.b16 %v5023, %v5022
      %v5027 = vpack.c.b16 %v5025, %v5024
      %v5031 = vsel %vm1837, %v4999, 0
      %v5034 = vsel %vm1837, %v5000, 0
      %v5037 = vsel %vm1837, %v5001, 0
      %v5040 = vsel %vm1837, %v5002, 0
      %v5043 = vsel %vm1837, %v5003, 0
      %v5046 = vsel %vm1837, %v5004, 0
      %v5049 = vsel %vm1837, %v5005, 0
      %v5052 = vsel %vm1837, %v5006, 0
      %5054 = vmatprep.subr.bf16.mxu0 0
      %5055 = vmatpush1.bf16.msra.mxu0 %v5026
      %5056 = vmatprep.subr.bf16.mxu0 0
      %5057 = vmatpush1.bf16.msra.mxu0 %v5027
      %5058 = vmatprep.subr.bf16.mxu0 0
      %5059 = vmatpush1.bf16.msra.mxu0 0
      %5060 = vmatprep.subr.bf16.mxu0 0
      %5061 = vmatpush1.bf16.msra.mxu0 0
      %5062 = vmatprep.subr.bf16.mxu0 0
      %5063 = vmatpush1.bf16.msra.mxu0 0
      %5064 = vmatprep.subr.bf16.mxu0 0
      %5065 = vmatpush1.bf16.msra.mxu0 0
      %5066 = vmatprep.subr.bf16.mxu0 0
      %5067 = vmatpush1.bf16.msra.mxu0 0
      %5068 = vmatprep.subr.bf16.mxu0 0
      %5069 = vmatpush1.bf16.msra.mxu0 0
      %5070 = vmatprep.subr.bf16.mxu0 0
      %5071 = vmatpush1.bf16.msra.mxu0 0
      %5072 = vmatprep.subr.bf16.mxu0 0
      %5073 = vmatpush1.bf16.msra.mxu0 0
      %5074 = vmatprep.subr.bf16.mxu0 0
      %5075 = vmatpush1.bf16.msra.mxu0 0
      %5076 = vmatprep.subr.bf16.mxu0 0
      %5077 = vmatpush1.bf16.msra.mxu0 0
      %5078 = vmatprep.subr.bf16.mxu0 0
      %5079 = vmatpush1.bf16.msra.mxu0 0
      %5080 = vmatprep.subr.bf16.mxu0 0
      %5081 = vmatpush1.bf16.msra.mxu0 0
      %5082 = vmatprep.subr.bf16.mxu0 0
      %5083 = vmatpush1.bf16.msra.mxu0 0
      %5084 = vmatprep.subr.bf16.mxu0 0
      %5085 = vmatpush1.bf16.msra.mxu0 0
      %5086 = vmatprep.mubr.bf16.mxu0 0
      %5087 = vmatmul.mubr.bf16.gmra.mrb[0].mxu0 %v5031
      %v5088 = vpop.f32.mrb[0].mxu0
      %v5089 = vadd.f32 %v5016, %v5088
      %v5090 = vpop.f32.mrb[0].mxu0
      %v5091 = vpop.f32.mrb[0].mxu0
      %v5092 = vadd.f32 %v5016, %v5091
      %v5093 = vpop.f32.mrb[0].mxu0
      %5094 = vmatprep.mubr.bf16.mxu0 0
      %5095 = vmatmul.mubr.bf16.gmra.mrb[0].mxu0 %v5034
      %v5096 = vpop.f32.mrb[0].mxu0
      %v5097 = vadd.f32 %v5016, %v5096
      %v5098 = vpop.f32.mrb[0].mxu0
      %v5099 = vpop.f32.mrb[0].mxu0
      %v5100 = vadd.f32 %v5016, %v5099
      %v5101 = vpop.f32.mrb[0].mxu0
      %5102 = vmatprep.mubr.bf16.mxu0 0
      %5103 = vmatmul.mubr.bf16.gmra.mrb[0].mxu0 %v5037
      %v5104 = vpop.f32.mrb[0].mxu0
      %v5105 = vadd.f32 %v5016, %v5104
      %v5106 = vpop.f32.mrb[0].mxu0
      %v5107 = vpop.f32.mrb[0].mxu0
      %v5108 = vadd.f32 %v5016, %v5107
      %v5109 = vpop.f32.mrb[0].mxu0
      %5110 = vmatprep.mubr.bf16.mxu0 0
      %5111 = vmatmul.mubr.bf16.gmra.mrb[0].mxu0 %v5040
      %v5112 = vpop.f32.mrb[0].mxu0
      %v5113 = vadd.f32 %v5016, %v5112
      %v5114 = vpop.f32.mrb[0].mxu0
      %v5115 = vpop.f32.mrb[0].mxu0
      %v5116 = vadd.f32 %v5016, %v5115
      %v5117 = vpop.f32.mrb[0].mxu0
      %5118 = vmatprep.mubr.bf16.mxu0 0
      %5119 = vmatmul.mubr.bf16.gmra.mrb[0].mxu0 %v5043
      %v5120 = vpop.f32.mrb[0].mxu0
      %v5121 = vadd.f32 %v5016, %v5120
      %v5122 = vpop.f32.mrb[0].mxu0
      %v5123 = vpop.f32.mrb[0].mxu0
      %v5124 = vadd.f32 %v5016, %v5123
      %v5125 = vpop.f32.mrb[0].mxu0
      %5126 = vmatprep.mubr.bf16.mxu0 0
      %5127 = vmatmul.mubr.bf16.gmra.mrb[0].mxu0 %v5046
      %v5128 = vpop.f32.mrb[0].mxu0
      %v5129 = vadd.f32 %v5016, %v5128
      %v5130 = vpop.f32.mrb[0].mxu0
      %v5131 = vpop.f32.mrb[0].mxu0
      %v5132 = vadd.f32 %v5016, %v5131
      %v5133 = vpop.f32.mrb[0].mxu0
      %5134 = vmatprep.mubr.bf16.mxu0 0
      %5135 = vmatmul.mubr.bf16.gmra.mrb[0].mxu0 %v5049
      %v5136 = vpop.f32.mrb[0].mxu0
      %v5137 = vadd.f32 %v5016, %v5136
      %v5138 = vpop.f32.mrb[0].mxu0
      %v5139 = vpop.f32.mrb[0].mxu0
      %v5140 = vadd.f32 %v5016, %v5139
      %v5141 = vpop.f32.mrb[0].mxu0
      %5142 = vmatprep.mubr.bf16.mxu0 0
      %5143 = vmatmul.mubr.bf16.gmra.mrb[0].mxu0 %v5052
      %v5144 = vpop.f32.mrb[0].mxu0
      %v5145 = vadd.f32 %v5016, %v5144
      %v5146 = vpop.f32.mrb[0].mxu0
      %v5147 = vpop.f32.mrb[0].mxu0
      %v5148 = vadd.f32 %v5016, %v5147
      %v5149 = vpop.f32.mrb[0].mxu0
      %5150 = vdwg.mxu0
      %v5151 = vxor.u32 %v5089, 2147483648
      %v5152 = vxor.u32 %v5092, 2147483648
      %v5153 = vxor.u32 %v5097, 2147483648
      %v5154 = vxor.u32 %v5100, 2147483648
      %v5155 = vxor.u32 %v5105, 2147483648
      %v5156 = vxor.u32 %v5108, 2147483648
      %v5157 = vxor.u32 %v5113, 2147483648
      %v5158 = vxor.u32 %v5116, 2147483648
      %v5159 = vxor.u32 %v5121, 2147483648
      %v5160 = vxor.u32 %v5124, 2147483648
      %v5161 = vxor.u32 %v5129, 2147483648
      %v5162 = vxor.u32 %v5132, 2147483648
      %v5163 = vxor.u32 %v5137, 2147483648
      %v5164 = vxor.u32 %v5140, 2147483648
      %v5165 = vxor.u32 %v5145, 2147483648
      %v5166 = vxor.u32 %v5148, 2147483648
      %v5167 = vmul.f32 %v5151, 1.442695
      %v5168 = vpow.pop %v5167
      %v5169 = vmul.f32 %v5152, 1.442695
      %v5170 = vpow.pop %v5169
      %v5171 = vmul.f32 %v5153, 1.442695
      %v5172 = vpow.pop %v5171
      %v5173 = vmul.f32 %v5154, 1.442695
      %v5174 = vpow.pop %v5173
      %v5175 = vmul.f32 %v5155, 1.442695
      %v5176 = vpow.pop %v5175
      %v5177 = vmul.f32 %v5156, 1.442695
      %v5178 = vpow.pop %v5177
      %v5179 = vmul.f32 %v5157, 1.442695
      %v5180 = vpow.pop %v5179
      %v5181 = vmul.f32 %v5158, 1.442695
      %v5182 = vpow.pop %v5181
      %v5183 = vmul.f32 %v5159, 1.442695
      %v5184 = vpow.pop %v5183
      %v5185 = vmul.f32 %v5160, 1.442695
      %v5186 = vpow.pop %v5185
      %v5187 = vmul.f32 %v5161, 1.442695
      %v5188 = vpow.pop %v5187
      %v5189 = vmul.f32 %v5162, 1.442695
      %v5190 = vpow.pop %v5189
      %v5191 = vmul.f32 %v5163, 1.442695
      %v5192 = vpow.pop %v5191
      %v5193 = vmul.f32 %v5164, 1.442695
      %v5194 = vpow.pop %v5193
      %v5195 = vmul.f32 %v5165, 1.442695
      %v5196 = vpow.pop %v5195
      %v5197 = vmul.f32 %v5166, 1.442695
      %v5198 = vpow.pop %v5197
      %v5199 = vadd.f32 %v5168, 1.0
      %v5200 = vadd.f32 %v5170, 1.0
      %v5201 = vadd.f32 %v5172, 1.0
      %v5202 = vadd.f32 %v5174, 1.0
      %v5203 = vadd.f32 %v5176, 1.0
      %v5204 = vadd.f32 %v5178, 1.0
      %v5205 = vadd.f32 %v5180, 1.0
      %v5206 = vadd.f32 %v5182, 1.0
      %v5207 = vadd.f32 %v5184, 1.0
      %v5208 = vadd.f32 %v5186, 1.0
      %v5209 = vadd.f32 %v5188, 1.0
      %v5210 = vadd.f32 %v5190, 1.0
      %v5211 = vadd.f32 %v5192, 1.0
      %v5212 = vadd.f32 %v5194, 1.0
      %v5213 = vadd.f32 %v5196, 1.0
      %v5214 = vadd.f32 %v5198, 1.0
      %v5215 = vrcp.pop %v5199
      %v5216 = vmul.f32 1.0, %v5215
      %v5217 = vrcp.pop %v5200
      %v5218 = vmul.f32 1.0, %v5217
      %v5219 = vrcp.pop %v5201
      %v5220 = vmul.f32 1.0, %v5219
      %v5221 = vrcp.pop %v5202
      %v5222 = vmul.f32 1.0, %v5221
      %v5223 = vrcp.pop %v5203
      %v5224 = vmul.f32 1.0, %v5223
      %v5225 = vrcp.pop %v5204
      %v5226 = vmul.f32 1.0, %v5225
      %v5227 = vrcp.pop %v5205
      %v5228 = vmul.f32 1.0, %v5227
      %v5229 = vrcp.pop %v5206
      %v5230 = vmul.f32 1.0, %v5229
      %v5231 = vrcp.pop %v5207
      %v5232 = vmul.f32 1.0, %v5231
      %v5233 = vrcp.pop %v5208
      %v5234 = vmul.f32 1.0, %v5233
      %v5235 = vrcp.pop %v5209
      %v5236 = vmul.f32 1.0, %v5235
      %v5237 = vrcp.pop %v5210
      %v5238 = vmul.f32 1.0, %v5237
      %v5239 = vrcp.pop %v5211
      %v5240 = vmul.f32 1.0, %v5239
      %v5241 = vrcp.pop %v5212
      %v5242 = vmul.f32 1.0, %v5241
      %v5243 = vrcp.pop %v5213
      %v5244 = vmul.f32 1.0, %v5243
      %v5245 = vrcp.pop %v5214
      %v5246 = vmul.f32 1.0, %v5245
      %v5247 = vmul.f32 %v5089, %v5216
      %v5248 = vmul.f32 %v5092, %v5218
      %v5249 = vmul.f32 %v5097, %v5220
      %v5250 = vmul.f32 %v5100, %v5222
      %v5251 = vmul.f32 %v5105, %v5224
      %v5252 = vmul.f32 %v5108, %v5226
      %v5253 = vmul.f32 %v5113, %v5228
      %v5254 = vmul.f32 %v5116, %v5230
      %v5255 = vmul.f32 %v5121, %v5232
      %v5256 = vmul.f32 %v5124, %v5234
      %v5257 = vmul.f32 %v5129, %v5236
      %v5258 = vmul.f32 %v5132, %v5238
      %v5259 = vmul.f32 %v5137, %v5240
      %v5260 = vmul.f32 %v5140, %v5242
      %v5261 = vmul.f32 %v5145, %v5244
      %v5262 = vmul.f32 %v5148, %v5246
      %v5263 = vpack.c.bf16 %v5248, %v5247
      %v5264 = vpack.c.bf16 %v5250, %v5249
      %v5265 = vpack.c.bf16 %v5252, %v5251
      %v5266 = vpack.c.bf16 %v5254, %v5253
      %v5267 = vpack.c.bf16 %v5256, %v5255
      %v5268 = vpack.c.bf16 %v5258, %v5257
      %v5269 = vpack.c.bf16 %v5260, %v5259
      %v5270 = vpack.c.bf16 %v5262, %v5261
      %v5271 = vld [vmem:[%s12] sm:$0xf]
      %v5272 = vld [vmem:[%s12 + $0x4] sm:$0xf]
      %v5273 = vld [vmem:[%s12 + $0x8] sm:$0xf]
      %v5274 = vld [vmem:[%s12 + $0xc] sm:$0xf]
      %v5275 = vld [vmem:[%s12 + $0x10] sm:$0xf]
      %v5276 = vld [vmem:[%s12 + $0x14] sm:$0xf]
      %v5277 = vld [vmem:[%s12 + $0x18] sm:$0xf]
      %v5278 = vld [vmem:[%s12 + $0x1c] sm:$0xf]
      %v5279 = vld [vmem:[%s13] sm:$0x1]
      %v5281 = vlaneseq
      %v5282 = vshrl.u32 %v5281, 7
      %v5283 = vsub.s32 0, %v5282
      %v5284 = vrot.slane %v5279, %v5283
      %v5294 = vunpack.c.l.b16 %v5271
      %v5295 = vunpack.c.l.b16 %v5272
      %v5296 = vunpack.c.l.b16 %v5273
      %v5297 = vunpack.c.l.b16 %v5274
      %v5298 = vunpack.c.l.b16 %v5275
      %v5299 = vunpack.c.l.b16 %v5276
      %v5300 = vunpack.c.l.b16 %v5277
      %v5301 = vunpack.c.l.b16 %v5278
      %v5302 = vpack.c.b16 %v5295, %v5294
      %v5303 = vpack.c.b16 %v5297, %v5296
      %v5304 = vpack.c.b16 %v5299, %v5298
      %v5305 = vpack.c.b16 %v5301, %v5300
      %vm5310 = vcmask 523264
      %v5312 = vsel %vm5310, %v5263, 0
      %v5315 = vsel %vm5310, %v5264, 0
      %v5318 = vsel %vm5310, %v5265, 0
      %v5321 = vsel %vm5310, %v5266, 0
      %v5324 = vsel %vm5310, %v5267, 0
      %v5327 = vsel %vm5310, %v5268, 0
      %v5330 = vsel %vm5310, %v5269, 0
      %v5333 = vsel %vm5310, %v5270, 0
      %5335 = vmatprep.subr.bf16.mxu0 0
      %5336 = vmatpush1.bf16.msra.mxu0 %v5302
      %5337 = vmatprep.subr.bf16.mxu0 0
      %5338 = vmatpush1.bf16.msra.mxu0 %v5303
      %5339 = vmatprep.subr.bf16.mxu0 0
      %5340 = vmatpush1.bf16.msra.mxu0 %v5304
      %5341 = vmatprep.subr.bf16.mxu0 0
      %5342 = vmatpush1.bf16.msra.mxu0 %v5305
      %5343 = vmatprep.subr.bf16.mxu0 0
      %5344 = vmatpush1.bf16.msra.mxu0 0
      %5345 = vmatprep.subr.bf16.mxu0 0
      %5346 = vmatpush1.bf16.msra.mxu0 0
      %5347 = vmatprep.subr.bf16.mxu0 0
      %5348 = vmatpush1.bf16.msra.mxu0 0
      %5349 = vmatprep.subr.bf16.mxu0 0
      %5350 = vmatpush1.bf16.msra.mxu0 0
      %5351 = vmatprep.subr.bf16.mxu0 0
      %5352 = vmatpush1.bf16.msra.mxu0 0
      %5353 = vmatprep.subr.bf16.mxu0 0
      %5354 = vmatpush1.bf16.msra.mxu0 0
      %5355 = vmatprep.subr.bf16.mxu0 0
      %5356 = vmatpush1.bf16.msra.mxu0 0
      %5357 = vmatprep.subr.bf16.mxu0 0
      %5358 = vmatpush1.bf16.msra.mxu0 0
      %5359 = vmatprep.subr.bf16.mxu0 0
      %5360 = vmatpush1.bf16.msra.mxu0 0
      %5361 = vmatprep.subr.bf16.mxu0 0
      %5362 = vmatpush1.bf16.msra.mxu0 0
      %5363 = vmatprep.subr.bf16.mxu0 0
      %5364 = vmatpush1.bf16.msra.mxu0 0
      %5365 = vmatprep.subr.bf16.mxu0 0
      %5366 = vmatpush1.bf16.msra.mxu0 0
      %5367 = vmatprep.mubr.bf16.mxu0 0
      %5368 = vmatmul.mubr.bf16.gmra.mrb[0].mxu0 %v5312
      %v5369 = vpop.f32.mrb[0].mxu0
      %v5370 = vadd.f32 %v5284, %v5369
      %v5371 = vpop.f32.mrb[0].mxu0
      %v5372 = vpop.f32.mrb[0].mxu0
      %v5373 = vadd.f32 %v5284, %v5372
      %v5374 = vpop.f32.mrb[0].mxu0
      %5375 = vmatprep.mubr.bf16.mxu0 0
      %5376 = vmatmul.mubr.bf16.gmra.mrb[0].mxu0 %v5315
      %v5377 = vpop.f32.mrb[0].mxu0
      %v5378 = vadd.f32 %v5284, %v5377
      %v5379 = vpop.f32.mrb[0].mxu0
      %v5380 = vpop.f32.mrb[0].mxu0
      %v5381 = vadd.f32 %v5284, %v5380
      %v5382 = vpop.f32.mrb[0].mxu0
      %5383 = vmatprep.mubr.bf16.mxu0 0
      %5384 = vmatmul.mubr.bf16.gmra.mrb[0].mxu0 %v5318
      %v5385 = vpop.f32.mrb[0].mxu0
      %v5386 = vadd.f32 %v5284, %v5385
      %v5387 = vpop.f32.mrb[0].mxu0
      %v5388 = vpop.f32.mrb[0].mxu0
      %v5389 = vadd.f32 %v5284, %v5388
      %v5390 = vpop.f32.mrb[0].mxu0
      %5391 = vmatprep.mubr.bf16.mxu0 0
      %5392 = vmatmul.mubr.bf16.gmra.mrb[0].mxu0 %v5321
      %v5393 = vpop.f32.mrb[0].mxu0
      %v5394 = vadd.f32 %v5284, %v5393
      %v5395 = vpop.f32.mrb[0].mxu0
      %v5396 = vpop.f32.mrb[0].mxu0
      %v5397 = vadd.f32 %v5284, %v5396
      %v5398 = vpop.f32.mrb[0].mxu0
      %5399 = vmatprep.mubr.bf16.mxu0 0
      %5400 = vmatmul.mubr.bf16.gmra.mrb[0].mxu0 %v5324
      %v5401 = vpop.f32.mrb[0].mxu0
      %v5402 = vadd.f32 %v5284, %v5401
      %v5403 = vpop.f32.mrb[0].mxu0
      %v5404 = vpop.f32.mrb[0].mxu0
      %v5405 = vadd.f32 %v5284, %v5404
      %v5406 = vpop.f32.mrb[0].mxu0
      %5407 = vmatprep.mubr.bf16.mxu0 0
      %5408 = vmatmul.mubr.bf16.gmra.mrb[0].mxu0 %v5327
      %v5409 = vpop.f32.mrb[0].mxu0
      %v5410 = vadd.f32 %v5284, %v5409
      %v5411 = vpop.f32.mrb[0].mxu0
      %v5412 = vpop.f32.mrb[0].mxu0
      %v5413 = vadd.f32 %v5284, %v5412
      %v5414 = vpop.f32.mrb[0].mxu0
      %5415 = vmatprep.mubr.bf16.mxu0 0
      %5416 = vmatmul.mubr.bf16.gmra.mrb[0].mxu0 %v5330
      %v5417 = vpop.f32.mrb[0].mxu0
      %v5418 = vadd.f32 %v5284, %v5417
      %v5419 = vpop.f32.mrb[0].mxu0
      %v5420 = vpop.f32.mrb[0].mxu0
      %v5421 = vadd.f32 %v5284, %v5420
      %v5422 = vpop.f32.mrb[0].mxu0
      %5423 = vmatprep.mubr.bf16.mxu0 0
      %5424 = vmatmul.mubr.bf16.gmra.mrb[0].mxu0 %v5333
      %v5425 = vpop.f32.mrb[0].mxu0
      %v5426 = vadd.f32 %v5284, %v5425
      %v5427 = vpop.f32.mrb[0].mxu0
      %v5428 = vpop.f32.mrb[0].mxu0
      %v5429 = vadd.f32 %v5284, %v5428
      %v5430 = vpop.f32.mrb[0].mxu0
      %5431 = vdwg.mxu0
      %v5433 = vlaneseq
      %v5434 = vshrl.u32 %v5433, 7
      %v5435 = vsub.s32 0, %v5434
      %v5436 = vrot.slane %v536, %v5435
      %v5438 = vmul.f32 %v5436, %v5370
      %v5439 = vmul.f32 %v5436, %v5373
      %v5440 = vmul.f32 %v5436, %v5378
      %v5441 = vmul.f32 %v5436, %v5381
      %v5442 = vmul.f32 %v5436, %v5386
      %v5443 = vmul.f32 %v5436, %v5389
      %v5444 = vmul.f32 %v5436, %v5394
      %v5445 = vmul.f32 %v5436, %v5397
      %v5446 = vmul.f32 %v5436, %v5402
      %v5447 = vmul.f32 %v5436, %v5405
      %v5448 = vmul.f32 %v5436, %v5410
      %v5449 = vmul.f32 %v5436, %v5413
      %v5450 = vmul.f32 %v5436, %v5418
      %v5451 = vmul.f32 %v5436, %v5421
      %v5452 = vmul.f32 %v5436, %v5426
      %v5453 = vmul.f32 %v5436, %v5429
      %v5454 = vadd.f32 %v1821, %v5438
      %v5455 = vadd.f32 %v1822, %v5439
      %v5456 = vadd.f32 %v1823, %v5440
      %v5457 = vadd.f32 %v1824, %v5441
      %v5458 = vadd.f32 %v1825, %v5442
      %v5459 = vadd.f32 %v1826, %v5443
      %v5460 = vadd.f32 %v1827, %v5444
      %v5461 = vadd.f32 %v1828, %v5445
      %v5462 = vadd.f32 %v1829, %v5446
      %v5463 = vadd.f32 %v1830, %v5447
      %v5464 = vadd.f32 %v1831, %v5448
      %v5465 = vadd.f32 %v1832, %v5449
      %v5466 = vadd.f32 %v1833, %v5450
      %v5467 = vadd.f32 %v1834, %v5451
      %v5468 = vadd.f32 %v1835, %v5452
      %v5469 = vadd.f32 %v1836, %v5453
      %v5470 = vmul.f32 %v536, %v536
      %v5471 = vadd.f32 %v5470, 1.0
      %v5472 = vrsqrt.pop %v5471
      %v5474 = vlaneseq
      %v5475 = vshrl.u32 %v5474, 7
      %v5476 = vsub.s32 0, %v5475
      %v5477 = vrot.slane %v5472, %v5476
      %v5479 = vmul.f32 %v5454, %v5477
      %v5480 = vmul.f32 %v5455, %v5477
      %v5481 = vmul.f32 %v5456, %v5477
      %v5482 = vmul.f32 %v5457, %v5477
      %v5483 = vmul.f32 %v5458, %v5477
      %v5484 = vmul.f32 %v5459, %v5477
      %v5485 = vmul.f32 %v5460, %v5477
      %v5486 = vmul.f32 %v5461, %v5477
      %v5487 = vmul.f32 %v5462, %v5477
      %v5488 = vmul.f32 %v5463, %v5477
      %v5489 = vmul.f32 %v5464, %v5477
      %v5490 = vmul.f32 %v5465, %v5477
      %v5491 = vmul.f32 %v5466, %v5477
      %v5492 = vmul.f32 %v5467, %v5477
      %v5493 = vmul.f32 %v5468, %v5477
      %v5494 = vmul.f32 %v5469, %v5477
      %5495 = vst.msk [vmem:[%s531] sm:$0xff] %vm1837, %v5479
      %5496 = vst.msk [vmem:[%s531 + $0x8] sm:$0xff] %vm1837, %v5480
      %5497 = vst.msk [vmem:[%s531 + $0x10] sm:$0xff] %vm1837, %v5481
      %5498 = vst.msk [vmem:[%s531 + $0x18] sm:$0xff] %vm1837, %v5482
      %5499 = vst.msk [vmem:[%s531 + $0x20] sm:$0xff] %vm1837, %v5483
      %5500 = vst.msk [vmem:[%s531 + $0x28] sm:$0xff] %vm1837, %v5484
      %5501 = vst.msk [vmem:[%s531 + $0x30] sm:$0xff] %vm1837, %v5485
      %5502 = vst.msk [vmem:[%s531 + $0x38] sm:$0xff] %vm1837, %v5486
      %5503 = vst.msk [vmem:[%s531 + $0x40] sm:$0xff] %vm1837, %v5487
      %5504 = vst.msk [vmem:[%s531 + $0x48] sm:$0xff] %vm1837, %v5488
      %5505 = vst.msk [vmem:[%s531 + $0x50] sm:$0xff] %vm1837, %v5489
      %5506 = vst.msk [vmem:[%s531 + $0x58] sm:$0xff] %vm1837, %v5490
      %5507 = vst.msk [vmem:[%s531 + $0x60] sm:$0xff] %vm1837, %v5491
      %5508 = vst.msk [vmem:[%s531 + $0x68] sm:$0xff] %vm1837, %v5492
      %5509 = vst.msk [vmem:[%s531 + $0x70] sm:$0xff] %vm1837, %v5493
      %5510 = vst.msk [vmem:[%s531 + $0x78] sm:$0xff] %vm1837, %v5494
      %s5511 = smul.u32 16, %s30
      %p5512 = scmp.lt.s32.totalorder %s29, 1
      %s5513 = scalar_select %p5512, %s29, 1
      %p5514 = scmp.lt.s32.totalorder %s5511, 31
      %s5515 = scalar_select %p5514, %s5511, 31
      %s5516 = smul.addr %s5513, 32
      %s5517 = sadd.s32 %s5515, %s5516
      %s5518 = smul.addr %s5517, 8
      %s5519 = scalar_lea.vmem %s14, %s5518
      // Predicated region
      $region81: #{tpu_custom_call.1} parent=75 // pred_check
        %p5520 = pneg %p371
      $region82: #{tpu_custom_call.1} parent=75 // pred_check_branch
        %5522 = sbr.rel (%p5520) target = $region84
      $region83: #{tpu_custom_call.1} parent=75 // pred_region
        %s5523 = smul.u32 16, %s30
      $region84: #{tpu_custom_call.1} parent=75 // pred_fallthru
        _
    $region76: #{tpu_custom_call.1} parent=5 // pred_fallthru
      _
    %p5524 = scmp.le.s32.totalorder 2, %s20
    // Predicated region
    $region85: #{tpu_custom_call.1} parent=5 // pred_check
      %p5525 = pneg %p5524
    $region86: #{tpu_custom_call.1} parent=5 // pred_check_branch
      %5527 = sbr.rel (%p5525) target = $region88
    $region87: #{tpu_custom_call.1} parent=5 // pred_region
      %s5528 = ssub.s32 %s20, 2
      // Predicated region
      $region89: #{tpu_custom_call.1} parent=87 // pred_check
        %p5529 = pneg %p377
      $region90: #{tpu_custom_call.1} parent=87 // pred_check_branch
        %5531 = sbr.rel (%p5529) target = $region92
      $region91: #{tpu_custom_call.1} parent=87 // pred_region
        %s5532 = smul.u32 16, %s32
        %p5533 = scmp.lt.s32.totalorder %s31, 1
        %s5534 = scalar_select %p5533, %s31, 1
        %p5535 = scmp.lt.s32.totalorder %s5532, 31
        %s5536 = scalar_select %p5535, %s5532, 31
        %s5537 = smul.addr %s5534, 32
        %s5538 = sadd.s32 %s5536, %s5537
        %s5539 = smul.addr %s5538, 8
        %s5540 = scalar_lea.vmem %s14, %s5539
      $region92: #{tpu_custom_call.1} parent=87 // pred_fallthru
        _
    $region88: #{tpu_custom_call.1} parent=5 // pred_fallthru
      _
  $region6: #{tpu_custom_call.1} parent=0 // loop_footer
    %s24 = sadd.s32 1, %s20
  $region7: #{tpu_custom_call.1} parent=0 // loop_footer_branch
    %19 = sbr.rel target = $region3
  $region8: #{tpu_custom_call.1} parent=0 // loop_exit
    _

</llo_original>
